<compile_context>
chip_gen: v7x
topology: tpu7x:2x2x1
jax: 0.10.0
libtpu: 0.0.40
codegen_flags: <defaults>
</compile_context>

<pallas_src>
import functools

import numpy as np
import jax
import jax.numpy as jnp
from jax.experimental import pallas as pl
from jax.experimental.pallas import tpu as pltpu

EPS = 1e-6
HW_VALID = 81     # 9 * 9 positions per image
HWP = 96          # padded rows per image: 8-aligned, >= 81 + max|shift| (10)
PAD = 16          # zero bands at both ends of the dwconv scratch (8-aligned)

# rows of the packed (9, C) per-channel vector slab
LN1_W, LN1_B, B_PW1, B_PO, GAMMA1, LN2_W, LN2_B, B_FC2, GAMMA2 = range(9)


# ----------------------------- kernel helpers -------------------------------
def _gelu_tanh(x):
  # tanh-GELU: runs on the EUP (separate VLIW slot) instead of ~11 VPU ops;
  # |err| vs erf-GELU < 3e-3, far inside the test tolerance.
  c = 0.7978845608028654
  return 0.5 * x * (1.0 + jnp.tanh(c * (x + 0.044715 * (x * x * x))))


# ------------------------------- the kernel ---------------------------------
def hor_block_kernel(
    x_ref, pepc_ref, rmask_ref, cvec_ref, w_in_ref, b_in_ref, dwp_ref,
    w_pw0_ref, b_pw0_ref, w_pw1_ref, w_po_ref,
    w_fc1_ref, b_fc1_ref, w_fc2_ref,
    out_ref,
    pad_ref,
    *, m, wdim, d0, d1, ccat, pad):
  f32 = jnp.float32
  cvec = cvec_ref[...]

  def row(i):                                   # (1, C) broadcast row
    return cvec[i:i + 1, :]

  def layernorm(z, w, b):                       # single-pass LN over channels
    mu = jnp.mean(z, axis=-1, keepdims=True)
    m2 = jnp.mean(z * z, axis=-1, keepdims=True)
    var = jnp.maximum(m2 - mu * mu, 0.0)
    return w * ((z - mu) * jax.lax.rsqrt(var + EPS)) + b

  def mm(a, w_ref):                             # bf16 MXU matmul, f32 accumulate
    return jnp.dot(a.astype(jnp.bfloat16), w_ref[...],
                   preferred_element_type=jnp.float32)

  # x = x + pos_embed * pos_encode   (pepc precomputed + row-padded host-side)
  v = x_ref[...].astype(f32) + pepc_ref[...]    # (M, C), M = Bt * HWP

  # ---- norm1 (channels_first LN == normalize over C in (M, C) layout) ----
  n1 = layernorm(v, row(LN1_W), row(LN1_B))

  # ---- gnconv proj_in: one wide matmul, then static lane slices ----
  fused = mm(n1, w_in_ref) + b_in_ref[...]      # (M, 2C)
  pwa = fused[:, :d0]                           # (M, d0)
  abc = fused[:, d0:]                           # (M, ccat = d0 + d1 + C)

  # ---- 3x3 depthwise conv (padding=1), fully on the VPU ----
  # Three pre-masked slabs: slab 0 = valid rows only (junk rows zeroed);
  # slab 1 additionally zeroes w == W-1 rows (read by dx = -1 taps);
  # slab 2 additionally zeroes w == 0   rows (read by dx = +1 taps).
  # Vertical overflow always lands in per-image zero rows or the pad bands.
  rm = rmask_ref[...]                           # (M, 3)
  abc_c = abc * rm[:, 0:1]
  abc_l = abc * rm[:, 1:2]
  abc_r = abc * rm[:, 2:3]

  zband = jnp.zeros((3, pad, ccat), f32)
  pad_ref[:, 0:pad, :] = zband                  # top zero bands
  pad_ref[:, pad + m:pad + m + pad, :] = zband  # bottom zero bands
  pad_ref[0, pad:pad + m, :] = abc_c
  pad_ref[1, pad:pad + m, :] = abc_l
  pad_ref[2, pad:pad + m, :] = abc_r

  dwp = dwp_ref[...]                            # (10, ccat): 9 taps (*scale) + bias (*scale)
  acc = [abc_c * dwp[4:5, :],                   # centre tap straight from the value
         jnp.zeros((m, ccat), f32),
         jnp.zeros((m, ccat), f32)]             # 3 independent accumulators
  o = 0
  for dy in (-1, 0, 1):
    for dx in (-1, 0, 1):
      if dy == 0 and dx == 0:
        o += 1
        continue
      s = dy * wdim + dx
      slab = 0 if dx == 0 else (1 if dx == -1 else 2)
      shifted = pad_ref[slab, pad + s:pad + s + m, :]
      acc[o % 3] = acc[o % 3] + shifted * dwp[o:o + 1, :]
      o += 1
  dw = (acc[0] + acc[1] + acc[2]) + dwp[9:10, :]
  dw0 = dw[:, :d0]
  dw1 = dw[:, d0:d0 + d1]
  dw2 = dw[:, d0 + d1:]

  # ---- gnconv recursive gating + proj_out ----
  y = pwa * dw0
  y = (mm(y, w_pw0_ref) + b_pw0_ref[...]) * dw1
  y = (mm(y, w_pw1_ref) + row(B_PW1)) * dw2
  y = mm(y, w_po_ref) + row(B_PO)

  v = v + row(GAMMA1) * y                       # residual 1 (drop_path = Identity)

  # ---- MLP branch: norm2 -> fc1 -> GELU -> fc2 -> gamma2 ----
  n2 = layernorm(v, row(LN2_W), row(LN2_B))
  h = mm(n2, w_fc1_ref) + b_fc1_ref[...]
  h = _gelu_tanh(h)
  h = mm(h, w_fc2_ref) + row(B_FC2)
  v = v + row(GAMMA2) * h                       # residual 2

  out_ref[...] = v.astype(out_ref.dtype)


# ----------------------------- host-side setup -------------------------------
def position_encode(L, out_channel):
  # exact port of hor_Block.Position
  pos = np.zeros((L, L))
  xc = yc = L // 2
  for h in range(L):
    for k in range(L):
      pos[h, k] = max(abs(h - xc), abs(k - yc)) + 1
  cc = np.tile(pos[None], (out_channel, 1, 1))
  return (1.0 / cc).astype(np.float32)          # (C, L, L)


def make_params(key, dim):
  # deterministic synthetic init following the shapes in hor_Block.__init__
  d0, d1, d2 = dim // 4, dim // 2, dim
  csum = d0 + d1 + d2
  ks = jax.random.split(key, 16)

  def w(k, shape, scl=0.1):
    return (scl * jax.random.normal(k, shape)).astype(jnp.float32)

  P = {
      'pos_embed': w(ks[0], (1, dim, 9, 9), 0.02),   # nn.Parameter (zeros in torch init)
      'pos_encode': jnp.asarray(position_encode(9, dim)),
      'ln1_w': jnp.ones((dim,), jnp.float32),
      'ln1_b': jnp.zeros((dim,), jnp.float32),
      'w_in': w(ks[1], (2 * dim, dim)), 'b_in': w(ks[2], (2 * dim,), 0.01),
      'dw_w': w(ks[3], (csum, 1, 3, 3)), 'dw_b': w(ks[4], (csum,), 0.01),
      'w_pw0': w(ks[5], (d1, d0)), 'b_pw0': w(ks[6], (d1,), 0.01),
      'w_pw1': w(ks[7], (d2, d1)), 'b_pw1': w(ks[8], (d2,), 0.01),
      'w_po': w(ks[9], (dim, dim)), 'b_po': w(ks[10], (dim,), 0.01),
      'ln2_w': jnp.ones((dim,), jnp.float32),
      'ln2_b': jnp.zeros((dim,), jnp.float32),
      'w_fc1': w(ks[11], (4 * dim, dim)), 'b_fc1': w(ks[12], (4 * dim,), 0.01),
      'w_fc2': w(ks[13], (dim, 4 * dim)), 'b_fc2': w(ks[14], (dim,), 0.01),
      'gamma1': jnp.full((dim,), 1e-6, jnp.float32),  # layer_scale_init_value
      'gamma2': jnp.full((dim,), 1e-6, jnp.float32),
  }
  return P


def _pick_block_batch(B):
  # Batch several images per grid step to fatten the matmul M dimension, but
  # keep >= 2 grid steps so the "parallel" axis can shard across both
  # TensorCores on v7x.  Cap M at 8*96 = 768 rows to keep VMEM modest.
  best = 1
  for bt in range(1, min(B, 8) + 1):
    if B % bt == 0 and (B // bt >= 2 or B == 1):
      best = bt
  return best


def _kernel_inputs(x_nchw, P, scale, Bt):
  B, C, H, W = x_nchw.shape
  HW = H * W
  d0, d1 = C // 4, C // 2
  ccat = d0 + d1 + C
  bf16 = jnp.bfloat16

  # (B, C, 9, 9) -> (B, 81, C) -> zero-pad rows to 96 -> (B*96, C)
  x_flat = jnp.transpose(x_nchw, (0, 2, 3, 1)).reshape(B, HW, C)
  x_flat = jnp.pad(x_flat, ((0, 0), (0, HWP - HW), (0, 0)))
  x_flat = x_flat.reshape(B * HWP, C).astype(jnp.float32)

  # pos_embed * pos_encode folded host-side, row-padded, tiled per block
  pepc = (jnp.transpose(P['pos_embed'][0], (1, 2, 0)) *
          jnp.transpose(P['pos_encode'], (1, 2, 0))).reshape(HW, C)
  pepc = jnp.pad(pepc, ((0, HWP - HW), (0, 0)))
  pepc = jnp.tile(pepc, (Bt, 1)).astype(jnp.float32)             # (Bt*96, C)

  # row masks for the dwconv slabs:
  #  col 0: valid image row (zero for the 15 per-image padding rows)
  #  col 1: valid & w != W-1  (input-side pre-mask for dx = -1 taps)
  #  col 2: valid & w != 0    (input-side pre-mask for dx = +1 taps)
  wcol = np.arange(HWP) % W
  valid = (np.arange(HWP) < HW).astype(np.float32)
  rm = np.stack([valid,
                 valid * (wcol != W - 1).astype(np.float32),
                 valid * (wcol != 0).astype(np.float32)], axis=1)
  rmask = jnp.asarray(np.tile(rm, (Bt, 1)).astype(np.float32))   # (Bt*96, 3)

  # all (1, C)-wide per-channel vectors packed into one slab (fewer DMA streams)
  cvec = jnp.stack([P['ln1_w'], P['ln1_b'], P['b_pw1'], P['b_po'], P['gamma1'],
                    P['ln2_w'], P['ln2_b'], P['b_fc2'], P['gamma2']],
                   axis=0).astype(jnp.float32)                   # (9, C)

  w_in = P['w_in'].T.astype(bf16)                                # (C, 2C)
  b_in = P['b_in'].reshape(1, 2 * C).astype(jnp.float32)

  # depthwise taps (row o = (dy+1)*3 + (dx+1)) and bias, pre-scaled by `scale`
  dwp = (jnp.concatenate([P['dw_w'].reshape(ccat, 9).T,
                          P['dw_b'].reshape(1, ccat)], axis=0)
         * scale).astype(jnp.float32)                            # (10, ccat)

  return [
      x_flat, pepc, rmask, cvec, w_in, b_in, dwp,
      P['w_pw0'].T.astype(bf16), P['b_pw0'].reshape(1, d1).astype(jnp.float32),
      P['w_pw1'].T.astype(bf16),
      P['w_po'].T.astype(bf16),
      P['w_fc1'].T.astype(bf16), P['b_fc1'].reshape(1, 4 * C).astype(jnp.float32),
      P['w_fc2'].T.astype(bf16),
  ]


def hor_block_forward(x_nchw, P, scale=1.0, block_batch=None):
  B, C, H, W = x_nchw.shape
  assert (H, W) == (9, 9), "hor_Block pos_embed/pos_encode fix spatial size to 9x9"
  assert C % 4 == 0, "gnconv(order=3) needs dim divisible by 4"
  HW = H * W
  d0, d1 = C // 4, C // 2
  ccat = d0 + d1 + C

  Bt = block_batch if block_batch is not None else _pick_block_batch(B)
  assert B % Bt == 0
  M = Bt * HWP                                   # matmul rows per grid step

  args = _kernel_inputs(x_nchw, P, scale, Bt)

  def const_spec(a):  # grid-invariant full-array block (DMA'd once, re-used)
    zeros = (0,) * a.ndim
    return pl.BlockSpec(a.shape, lambda b, _z=zeros: _z)

  in_specs = [pl.BlockSpec((M, C), lambda b: (b, 0))]
  in_specs += [const_spec(a) for a in args[1:]]

  kern = functools.partial(hor_block_kernel, m=M, wdim=W, d0=d0, d1=d1,
                           ccat=ccat, pad=PAD)

  out = pl.pallas_call(
      kern,
      out_shape=jax.ShapeDtypeStruct((B * HWP, C), jnp.float32),
      grid_spec=pltpu.PrefetchScalarGridSpec(
          num_scalar_prefetch=0,
          grid=(B // Bt,),
          in_specs=in_specs,
          out_specs=pl.BlockSpec((M, C), lambda b: (b, 0)),
          scratch_shapes=[pltpu.VMEM((3, M + 2 * PAD, ccat), jnp.float32)],
      ),
      compiler_params=pltpu.CompilerParams(
          dimension_semantics=("parallel",),
          vmem_limit_bytes=32 * 1024 * 1024),    # generation-safe (v7x: 64 MiB total)
  )(*args)

  out = out.reshape(B, HWP, C)[:, :HW, :].reshape(B, H, W, C)
  return jnp.transpose(out, (0, 3, 1, 2))


# ------------------------- pure-JAX reference (NCHW) -------------------------
def ref_forward(x, P):
  B, C, H, W = x.shape
  d0, d1 = C // 4, C // 2
  csum = d0 + d1 + C

  x = x + P['pos_embed'] * P['pos_encode'][None]
  u = x.mean(1, keepdims=True)
  s = ((x - u) ** 2).mean(1, keepdims=True)
  n1 = (x - u) / jnp.sqrt(s + EPS)
  n1 = P['ln1_w'][None, :, None, None] * n1 + P['ln1_b'][None, :, None, None]

  def conv1x1(v, w, b):
    return jnp.einsum('bchw,oc->bohw', v, w) + b[None, :, None, None]

  fused = conv1x1(n1, P['w_in'], P['b_in'])
  pwa, abc = fused[:, :d0], fused[:, d0:]
  dw = jax.lax.conv_general_dilated(
      abc, P['dw_w'], window_strides=(1, 1), padding=((1, 1), (1, 1)),
      feature_group_count=csum,
      dimension_numbers=('NCHW', 'OIHW', 'NCHW')) + P['dw_b'][None, :, None, None]
  dw0, dw1, dw2 = dw[:, :d0], dw[:, d0:d0 + d1], dw[:, d0 + d1:]
  y = pwa * dw0
  y = conv1x1(y, P['w_pw0'], P['b_pw0']) * dw1
  y = conv1x1(y, P['w_pw1'], P['b_pw1']) * dw2
  y = conv1x1(y, P['w_po'], P['b_po'])
  x = x + P['gamma1'][None, :, None, None] * y

  inp = x
  xl = jnp.transpose(x, (0, 2, 3, 1))
  u2 = xl.mean(-1, keepdims=True)
  s2 = ((xl - u2) ** 2).mean(-1, keepdims=True)
  xl = (xl - u2) / jnp.sqrt(s2 + EPS) * P['ln2_w'] + P['ln2_b']
  h = jnp.einsum('bhwc,oc->bhwo', xl, P['w_fc1']) + P['b_fc1']
  h = jax.nn.gelu(h, approximate=False)
  h = jnp.einsum('bhwc,oc->bhwo', h, P['w_fc2']) + P['b_fc2']
  h = P['gamma2'] * h
  return inp + jnp.transpose(h, (0, 3, 1, 2))


# ------------------------------------ main -----------------------------------
if __name__ == "__main__":
  key = jax.random.PRNGKey(0)
  dim = 8                       # must be divisible by 4 (gnconv order=3)
  B, H, W = 4, 9, 9             # spatial fixed at 9x9 by pos_embed / pos_encode
  kx, kp = jax.random.split(key)
  x = jax.random.normal(kx, (B, dim, H, W), jnp.float32)
  P = make_params(kp, dim)

  out = jax.block_until_ready(hor_block_forward(x, P))   # B=4 -> Bt=2, grid=(2,)
  assert out.shape == (B, dim, H, W)
  ref = ref_forward(x, P)
  assert bool(jnp.allclose(out, ref, atol=2e-2, rtol=2e-2)), "mismatch vs JAX reference"

  # Re-check with gamma1/gamma2 = 1 so both branches contribute materially.
  P2 = dict(P)
  P2['gamma1'] = jnp.ones((dim,), jnp.float32)
  P2['gamma2'] = jnp.ones((dim,), jnp.float32)
  out2 = jax.block_until_ready(hor_block_forward(x, P2))
  ref2 = ref_forward(x, P2)
  assert bool(jnp.allclose(out2, ref2, atol=2e-2, rtol=2e-2)), "mismatch (gamma=1)"

  print("KERNEL_OK")
</pallas_src>

<mosaic_0001>
module attributes {stable_mosaic.version = 11 : i64} {
  func.func @hor_block_kernel(%arg0: i32, %arg1: memref<192x8xf32, #tpu.memory_space<vmem>>, %arg2: memref<192x8xf32, #tpu.memory_space<vmem>>, %arg3: memref<192x3xf32, #tpu.memory_space<vmem>>, %arg4: memref<9x8xf32, #tpu.memory_space<vmem>>, %arg5: memref<8x16xbf16, #tpu.memory_space<vmem>>, %arg6: memref<1x16xf32, #tpu.memory_space<vmem>>, %arg7: memref<10x14xf32, #tpu.memory_space<vmem>>, %arg8: memref<2x4xbf16, #tpu.memory_space<vmem>>, %arg9: memref<1x4xf32, #tpu.memory_space<vmem>>, %arg10: memref<4x8xbf16, #tpu.memory_space<vmem>>, %arg11: memref<8x8xbf16, #tpu.memory_space<vmem>>, %arg12: memref<8x32xbf16, #tpu.memory_space<vmem>>, %arg13: memref<1x32xf32, #tpu.memory_space<vmem>>, %arg14: memref<32x8xbf16, #tpu.memory_space<vmem>>, %arg15: memref<192x8xf32, #tpu.memory_space<vmem>>, %arg16: memref<3x224x14xf32, #tpu.memory_space<vmem>>) attributes {dimension_semantics = [#tpu.dimension_semantics<parallel>], iteration_bounds = array<i64: 2>, scalar_prefetch = 0 : i64, scratch_operands = 1 : i64, tpu.core_type = #tpu.core_type<tc>, window_params = [{transform_indices = @transform_0, window_bounds = array<i64: 192, 8>}, {pipeline_mode = #tpu.pipeline_mode<synchronous>, transform_indices = @transform_1, window_bounds = array<i64: 192, 8>}, {pipeline_mode = #tpu.pipeline_mode<synchronous>, transform_indices = @transform_2, window_bounds = array<i64: 192, 3>}, {pipeline_mode = #tpu.pipeline_mode<synchronous>, transform_indices = @transform_3, window_bounds = array<i64: 9, 8>}, {pipeline_mode = #tpu.pipeline_mode<synchronous>, transform_indices = @transform_4, window_bounds = array<i64: 8, 16>}, {pipeline_mode = #tpu.pipeline_mode<synchronous>, transform_indices = @transform_5, window_bounds = array<i64: 1, 16>}, {pipeline_mode = #tpu.pipeline_mode<synchronous>, transform_indices = @transform_6, window_bounds = array<i64: 10, 14>}, {pipeline_mode = #tpu.pipeline_mode<synchronous>, transform_indices = @transform_7, window_bounds = array<i64: 2, 4>}, {pipeline_mode = #tpu.pipeline_mode<synchronous>, transform_indices = @transform_8, window_bounds = array<i64: 1, 4>}, {pipeline_mode = #tpu.pipeline_mode<synchronous>, transform_indices = @transform_9, window_bounds = array<i64: 4, 8>}, {pipeline_mode = #tpu.pipeline_mode<synchronous>, transform_indices = @transform_10, window_bounds = array<i64: 8, 8>}, {pipeline_mode = #tpu.pipeline_mode<synchronous>, transform_indices = @transform_11, window_bounds = array<i64: 8, 32>}, {pipeline_mode = #tpu.pipeline_mode<synchronous>, transform_indices = @transform_12, window_bounds = array<i64: 1, 32>}, {pipeline_mode = #tpu.pipeline_mode<synchronous>, transform_indices = @transform_13, window_bounds = array<i64: 32, 8>}, {transform_indices = @transform_14, window_bounds = array<i64: 192, 8>}]} {
    %c0 = arith.constant 0 : index
    %c0_0 = arith.constant 0 : index
    %0 = vector.load %arg4[%c0, %c0_0] : memref<9x8xf32, #tpu.memory_space<vmem>>, vector<9x8xf32>
    %c0_1 = arith.constant 0 : index
    %c0_2 = arith.constant 0 : index
    %1 = vector.load %arg1[%c0_1, %c0_2] : memref<192x8xf32, #tpu.memory_space<vmem>>, vector<192x8xf32>
    %c0_3 = arith.constant 0 : index
    %c0_4 = arith.constant 0 : index
    %2 = vector.load %arg2[%c0_3, %c0_4] : memref<192x8xf32, #tpu.memory_space<vmem>>, vector<192x8xf32>
    %3 = arith.addf %1, %2 : vector<192x8xf32>
    %4 = vector.extract_strided_slice %0 {offsets = [0, 0], sizes = [1, 8], strides = [1, 1]} : vector<9x8xf32> to vector<1x8xf32>
    %5 = vector.extract_strided_slice %0 {offsets = [1, 0], sizes = [1, 8], strides = [1, 1]} : vector<9x8xf32> to vector<1x8xf32>
    %cst = arith.constant dense<0.000000e+00> : vector<192xf32>
    %6 = vector.multi_reduction <add>, %3, %cst [1] : vector<192x8xf32> to vector<192xf32>
    %7 = vector.shape_cast %6 : vector<192xf32> to vector<192x1xf32>
    %cst_5 = arith.constant 8.000000e+00 : f32
    %8 = vector.broadcast %cst_5 : f32 to vector<192x1xf32>
    %9 = arith.divf %7, %8 : vector<192x1xf32>
    %10 = arith.mulf %3, %3 : vector<192x8xf32>
    %cst_6 = arith.constant dense<0.000000e+00> : vector<192xf32>
    %11 = vector.multi_reduction <add>, %10, %cst_6 [1] : vector<192x8xf32> to vector<192xf32>
    %12 = vector.shape_cast %11 : vector<192xf32> to vector<192x1xf32>
    %cst_7 = arith.constant 8.000000e+00 : f32
    %13 = vector.broadcast %cst_7 : f32 to vector<192x1xf32>
    %14 = arith.divf %12, %13 : vector<192x1xf32>
    %15 = arith.mulf %9, %9 : vector<192x1xf32>
    %16 = arith.subf %14, %15 : vector<192x1xf32>
    %cst_8 = arith.constant 0.000000e+00 : f32
    %17 = vector.broadcast %cst_8 : f32 to vector<192x1xf32>
    %18 = arith.maximumf %16, %17 : vector<192x1xf32>
    %19 = vector.broadcast %9 : vector<192x1xf32> to vector<192x8xf32>
    %20 = arith.subf %3, %19 : vector<192x8xf32>
    %cst_9 = arith.constant 9.99999997E-7 : f32
    %21 = vector.broadcast %cst_9 : f32 to vector<192x1xf32>
    %22 = arith.addf %18, %21 : vector<192x1xf32>
    %23 = math.rsqrt %22 : vector<192x1xf32>
    %24 = vector.broadcast %23 : vector<192x1xf32> to vector<192x8xf32>
    %25 = arith.mulf %20, %24 : vector<192x8xf32>
    %26 = vector.broadcast %4 : vector<1x8xf32> to vector<192x8xf32>
    %27 = arith.mulf %26, %25 : vector<192x8xf32>
    %28 = vector.broadcast %5 : vector<1x8xf32> to vector<192x8xf32>
    %29 = arith.addf %27, %28 : vector<192x8xf32>
    %30 = arith.truncf %29 : vector<192x8xf32> to vector<192x8xbf16>
    %c0_10 = arith.constant 0 : index
    %c0_11 = arith.constant 0 : index
    %31 = vector.load %arg5[%c0_10, %c0_11] : memref<8x16xbf16, #tpu.memory_space<vmem>>, vector<8x16xbf16>
    %cst_12 = arith.constant dense<0.000000e+00> : vector<192x16xf32>
    %32 = tpu.matmul %30, %31, %cst_12 {dimension_numbers = #tpu.dot_dimension_numbers<[1], [0], [0], [1], [0, 0, 1, 1], [], []>} : vector<192x8xbf16>, vector<8x16xbf16>, vector<192x16xf32> -> vector<192x16xf32>
    %c0_13 = arith.constant 0 : index
    %c0_14 = arith.constant 0 : index
    %33 = vector.load %arg6[%c0_13, %c0_14] : memref<1x16xf32, #tpu.memory_space<vmem>>, vector<1x16xf32>
    %34 = vector.broadcast %33 : vector<1x16xf32> to vector<192x16xf32>
    %35 = arith.addf %32, %34 : vector<192x16xf32>
    %36 = vector.extract_strided_slice %35 {offsets = [0, 0], sizes = [192, 2], strides = [1, 1]} : vector<192x16xf32> to vector<192x2xf32>
    %37 = vector.extract_strided_slice %35 {offsets = [0, 2], sizes = [192, 14], strides = [1, 1]} : vector<192x16xf32> to vector<192x14xf32>
    %c0_15 = arith.constant 0 : index
    %c0_16 = arith.constant 0 : index
    %38 = vector.load %arg3[%c0_15, %c0_16] : memref<192x3xf32, #tpu.memory_space<vmem>>, vector<192x3xf32>
    %39 = vector.extract_strided_slice %38 {offsets = [0, 0], sizes = [192, 1], strides = [1, 1]} : vector<192x3xf32> to vector<192x1xf32>
    %40 = vector.broadcast %39 : vector<192x1xf32> to vector<192x14xf32>
    %41 = arith.mulf %37, %40 : vector<192x14xf32>
    %42 = vector.extract_strided_slice %38 {offsets = [0, 1], sizes = [192, 1], strides = [1, 1]} : vector<192x3xf32> to vector<192x1xf32>
    %43 = vector.broadcast %42 : vector<192x1xf32> to vector<192x14xf32>
    %44 = arith.mulf %37, %43 : vector<192x14xf32>
    %45 = vector.extract_strided_slice %38 {offsets = [0, 2], sizes = [192, 1], strides = [1, 1]} : vector<192x3xf32> to vector<192x1xf32>
    %46 = vector.broadcast %45 : vector<192x1xf32> to vector<192x14xf32>
    %47 = arith.mulf %37, %46 : vector<192x14xf32>
    %cst_17 = arith.constant 0.000000e+00 : f32
    %48 = vector.broadcast %cst_17 : f32 to vector<3x16x14xf32>
    %c0_18 = arith.constant 0 : index
    %c0_19 = arith.constant 0 : index
    %c0_20 = arith.constant 0 : index
    %49 = vector.load %arg16[%c0_18, %c0_19, %c0_20] : memref<3x224x14xf32, #tpu.memory_space<vmem>>, vector<3x16x14xf32>
    tpu.vector_store %arg16[%c0_18, %c0_19, %c0_20], %48 {strides = array<i32>} : memref<3x224x14xf32, #tpu.memory_space<vmem>>, vector<3x16x14xf32>,
    %c0_21 = arith.constant 0 : index
    %c208 = arith.constant 208 : index
    %c0_22 = arith.constant 0 : index
    %50 = vector.load %arg16[%c0_21, %c208, %c0_22] : memref<3x224x14xf32, #tpu.memory_space<vmem>>, vector<3x16x14xf32>
    tpu.vector_store %arg16[%c0_21, %c208, %c0_22], %48 {strides = array<i32>} : memref<3x224x14xf32, #tpu.memory_space<vmem>>, vector<3x16x14xf32>,
    %c0_23 = arith.constant 0 : index
    %c16 = arith.constant 16 : index
    %c0_24 = arith.constant 0 : index
    %51 = vector.load %arg16[%c0_23, %c16, %c0_24] : memref<3x224x14xf32, #tpu.memory_space<vmem>>, vector<1x192x14xf32>
    %52 = vector.shape_cast %51 : vector<1x192x14xf32> to vector<192x14xf32>
    %53 = vector.shape_cast %41 : vector<192x14xf32> to vector<1x192x14xf32>
    tpu.vector_store %arg16[%c0_23, %c16, %c0_24], %53 {strides = array<i32>} : memref<3x224x14xf32, #tpu.memory_space<vmem>>, vector<1x192x14xf32>,
    %c1 = arith.constant 1 : index
    %c16_25 = arith.constant 16 : index
    %c0_26 = arith.constant 0 : index
    %54 = vector.load %arg16[%c1, %c16_25, %c0_26] : memref<3x224x14xf32, #tpu.memory_space<vmem>>, vector<1x192x14xf32>
    %55 = vector.shape_cast %54 : vector<1x192x14xf32> to vector<192x14xf32>
    %56 = vector.shape_cast %44 : vector<192x14xf32> to vector<1x192x14xf32>
    tpu.vector_store %arg16[%c1, %c16_25, %c0_26], %56 {strides = array<i32>} : memref<3x224x14xf32, #tpu.memory_space<vmem>>, vector<1x192x14xf32>,
    %c2 = arith.constant 2 : index
    %c16_27 = arith.constant 16 : index
    %c0_28 = arith.constant 0 : index
    %57 = vector.load %arg16[%c2, %c16_27, %c0_28] : memref<3x224x14xf32, #tpu.memory_space<vmem>>, vector<1x192x14xf32>
    %58 = vector.shape_cast %57 : vector<1x192x14xf32> to vector<192x14xf32>
    %59 = vector.shape_cast %47 : vector<192x14xf32> to vector<1x192x14xf32>
    tpu.vector_store %arg16[%c2, %c16_27, %c0_28], %59 {strides = array<i32>} : memref<3x224x14xf32, #tpu.memory_space<vmem>>, vector<1x192x14xf32>,
    %c0_29 = arith.constant 0 : index
    %c0_30 = arith.constant 0 : index
    %60 = vector.load %arg7[%c0_29, %c0_30] : memref<10x14xf32, #tpu.memory_space<vmem>>, vector<10x14xf32>
    %61 = vector.extract_strided_slice %60 {offsets = [4, 0], sizes = [1, 14], strides = [1, 1]} : vector<10x14xf32> to vector<1x14xf32>
    %62 = vector.broadcast %61 : vector<1x14xf32> to vector<192x14xf32>
    %63 = arith.mulf %41, %62 : vector<192x14xf32>
    %cst_31 = arith.constant 0.000000e+00 : f32
    %64 = vector.broadcast %cst_31 : f32 to vector<192x14xf32>
    %cst_32 = arith.constant 0.000000e+00 : f32
    %65 = vector.broadcast %cst_32 : f32 to vector<192x14xf32>
    %c1_33 = arith.constant 1 : index
    %c6 = arith.constant 6 : index
    %c0_34 = arith.constant 0 : index
    %66 = vector.load %arg16[%c1_33, %c6, %c0_34] : memref<3x224x14xf32, #tpu.memory_space<vmem>>, vector<1x192x14xf32>
    %67 = vector.shape_cast %66 : vector<1x192x14xf32> to vector<192x14xf32>
    %68 = vector.extract_strided_slice %60 {offsets = [0, 0], sizes = [1, 14], strides = [1, 1]} : vector<10x14xf32> to vector<1x14xf32>
    %69 = vector.broadcast %68 : vector<1x14xf32> to vector<192x14xf32>
    %70 = arith.mulf %67, %69 : vector<192x14xf32>
    %71 = arith.addf %63, %70 : vector<192x14xf32>
    %c0_35 = arith.constant 0 : index
    %c7 = arith.constant 7 : index
    %c0_36 = arith.constant 0 : index
    %72 = vector.load %arg16[%c0_35, %c7, %c0_36] : memref<3x224x14xf32, #tpu.memory_space<vmem>>, vector<1x192x14xf32>
    %73 = vector.shape_cast %72 : vector<1x192x14xf32> to vector<192x14xf32>
    %74 = vector.extract_strided_slice %60 {offsets = [1, 0], sizes = [1, 14], strides = [1, 1]} : vector<10x14xf32> to vector<1x14xf32>
    %75 = vector.broadcast %74 : vector<1x14xf32> to vector<192x14xf32>
    %76 = arith.mulf %73, %75 : vector<192x14xf32>
    %77 = arith.addf %64, %76 : vector<192x14xf32>
    %c2_37 = arith.constant 2 : index
    %c8 = arith.constant 8 : index
    %c0_38 = arith.constant 0 : index
    %78 = vector.load %arg16[%c2_37, %c8, %c0_38] : memref<3x224x14xf32, #tpu.memory_space<vmem>>, vector<1x192x14xf32>
    %79 = vector.shape_cast %78 : vector<1x192x14xf32> to vector<192x14xf32>
    %80 = vector.extract_strided_slice %60 {offsets = [2, 0], sizes = [1, 14], strides = [1, 1]} : vector<10x14xf32> to vector<1x14xf32>
    %81 = vector.broadcast %80 : vector<1x14xf32> to vector<192x14xf32>
    %82 = arith.mulf %79, %81 : vector<192x14xf32>
    %83 = arith.addf %65, %82 : vector<192x14xf32>
    %c1_39 = arith.constant 1 : index
    %c15 = arith.constant 15 : index
    %c0_40 = arith.constant 0 : index
    %84 = vector.load %arg16[%c1_39, %c15, %c0_40] : memref<3x224x14xf32, #tpu.memory_space<vmem>>, vector<1x192x14xf32>
    %85 = vector.shape_cast %84 : vector<1x192x14xf32> to vector<192x14xf32>
    %86 = vector.extract_strided_slice %60 {offsets = [3, 0], sizes = [1, 14], strides = [1, 1]} : vector<10x14xf32> to vector<1x14xf32>
    %87 = vector.broadcast %86 : vector<1x14xf32> to vector<192x14xf32>
    %88 = arith.mulf %85, %87 : vector<192x14xf32>
    %89 = arith.addf %71, %88 : vector<192x14xf32>
    %c2_41 = arith.constant 2 : index
    %c17 = arith.constant 17 : index
    %c0_42 = arith.constant 0 : index
    %90 = vector.load %arg16[%c2_41, %c17, %c0_42] : memref<3x224x14xf32, #tpu.memory_space<vmem>>, vector<1x192x14xf32>
    %91 = vector.shape_cast %90 : vector<1x192x14xf32> to vector<192x14xf32>
    %92 = vector.extract_strided_slice %60 {offsets = [5, 0], sizes = [1, 14], strides = [1, 1]} : vector<10x14xf32> to vector<1x14xf32>
    %93 = vector.broadcast %92 : vector<1x14xf32> to vector<192x14xf32>
    %94 = arith.mulf %91, %93 : vector<192x14xf32>
    %95 = arith.addf %83, %94 : vector<192x14xf32>
    %c1_43 = arith.constant 1 : index
    %c24 = arith.constant 24 : index
    %c0_44 = arith.constant 0 : index
    %96 = vector.load %arg16[%c1_43, %c24, %c0_44] : memref<3x224x14xf32, #tpu.memory_space<vmem>>, vector<1x192x14xf32>
    %97 = vector.shape_cast %96 : vector<1x192x14xf32> to vector<192x14xf32>
    %98 = vector.extract_strided_slice %60 {offsets = [6, 0], sizes = [1, 14], strides = [1, 1]} : vector<10x14xf32> to vector<1x14xf32>
    %99 = vector.broadcast %98 : vector<1x14xf32> to vector<192x14xf32>
    %100 = arith.mulf %97, %99 : vector<192x14xf32>
    %101 = arith.addf %89, %100 : vector<192x14xf32>
    %c0_45 = arith.constant 0 : index
    %c25 = arith.constant 25 : index
    %c0_46 = arith.constant 0 : index
    %102 = vector.load %arg16[%c0_45, %c25, %c0_46] : memref<3x224x14xf32, #tpu.memory_space<vmem>>, vector<1x192x14xf32>
    %103 = vector.shape_cast %102 : vector<1x192x14xf32> to vector<192x14xf32>
    %104 = vector.extract_strided_slice %60 {offsets = [7, 0], sizes = [1, 14], strides = [1, 1]} : vector<10x14xf32> to vector<1x14xf32>
    %105 = vector.broadcast %104 : vector<1x14xf32> to vector<192x14xf32>
    %106 = arith.mulf %103, %105 : vector<192x14xf32>
    %107 = arith.addf %77, %106 : vector<192x14xf32>
    %c2_47 = arith.constant 2 : index
    %c26 = arith.constant 26 : index
    %c0_48 = arith.constant 0 : index
    %108 = vector.load %arg16[%c2_47, %c26, %c0_48] : memref<3x224x14xf32, #tpu.memory_space<vmem>>, vector<1x192x14xf32>
    %109 = vector.shape_cast %108 : vector<1x192x14xf32> to vector<192x14xf32>
    %110 = vector.extract_strided_slice %60 {offsets = [8, 0], sizes = [1, 14], strides = [1, 1]} : vector<10x14xf32> to vector<1x14xf32>
    %111 = vector.broadcast %110 : vector<1x14xf32> to vector<192x14xf32>
    %112 = arith.mulf %109, %111 : vector<192x14xf32>
    %113 = arith.addf %95, %112 : vector<192x14xf32>
    %114 = arith.addf %101, %107 : vector<192x14xf32>
    %115 = arith.addf %114, %113 : vector<192x14xf32>
    %116 = vector.extract_strided_slice %60 {offsets = [9, 0], sizes = [1, 14], strides = [1, 1]} : vector<10x14xf32> to vector<1x14xf32>
    %117 = vector.broadcast %116 : vector<1x14xf32> to vector<192x14xf32>
    %118 = arith.addf %115, %117 : vector<192x14xf32>
    %119 = vector.extract_strided_slice %118 {offsets = [0, 0], sizes = [192, 2], strides = [1, 1]} : vector<192x14xf32> to vector<192x2xf32>
    %120 = vector.extract_strided_slice %118 {offsets = [0, 2], sizes = [192, 4], strides = [1, 1]} : vector<192x14xf32> to vector<192x4xf32>
    %121 = vector.extract_strided_slice %118 {offsets = [0, 6], sizes = [192, 8], strides = [1, 1]} : vector<192x14xf32> to vector<192x8xf32>
    %122 = arith.mulf %36, %119 : vector<192x2xf32>
    %123 = arith.truncf %122 : vector<192x2xf32> to vector<192x2xbf16>
    %c0_49 = arith.constant 0 : index
    %c0_50 = arith.constant 0 : index
    %124 = vector.load %arg8[%c0_49, %c0_50] : memref<2x4xbf16, #tpu.memory_space<vmem>>, vector<2x4xbf16>
    %cst_51 = arith.constant dense<0.000000e+00> : vector<192x4xf32>
    %125 = tpu.matmul %123, %124, %cst_51 {dimension_numbers = #tpu.dot_dimension_numbers<[1], [0], [0], [1], [0, 0, 1, 1], [], []>} : vector<192x2xbf16>, vector<2x4xbf16>, vector<192x4xf32> -> vector<192x4xf32>
    %c0_52 = arith.constant 0 : index
    %c0_53 = arith.constant 0 : index
    %126 = vector.load %arg9[%c0_52, %c0_53] : memref<1x4xf32, #tpu.memory_space<vmem>>, vector<1x4xf32>
    %127 = vector.broadcast %126 : vector<1x4xf32> to vector<192x4xf32>
    %128 = arith.addf %125, %127 : vector<192x4xf32>
    %129 = arith.mulf %128, %120 : vector<192x4xf32>
    %130 = arith.truncf %129 : vector<192x4xf32> to vector<192x4xbf16>
    %c0_54 = arith.constant 0 : index
    %c0_55 = arith.constant 0 : index
    %131 = vector.load %arg10[%c0_54, %c0_55] : memref<4x8xbf16, #tpu.memory_space<vmem>>, vector<4x8xbf16>
    %cst_56 = arith.constant dense<0.000000e+00> : vector<192x8xf32>
    %132 = tpu.matmul %130, %131, %cst_56 {dimension_numbers = #tpu.dot_dimension_numbers<[1], [0], [0], [1], [0, 0, 1, 1], [], []>} : vector<192x4xbf16>, vector<4x8xbf16>, vector<192x8xf32> -> vector<192x8xf32>
    %133 = vector.extract_strided_slice %0 {offsets = [2, 0], sizes = [1, 8], strides = [1, 1]} : vector<9x8xf32> to vector<1x8xf32>
    %134 = vector.broadcast %133 : vector<1x8xf32> to vector<192x8xf32>
    %135 = arith.addf %132, %134 : vector<192x8xf32>
    %136 = arith.mulf %135, %121 : vector<192x8xf32>
    %137 = arith.truncf %136 : vector<192x8xf32> to vector<192x8xbf16>
    %c0_57 = arith.constant 0 : index
    %c0_58 = arith.constant 0 : index
    %138 = vector.load %arg11[%c0_57, %c0_58] : memref<8x8xbf16, #tpu.memory_space<vmem>>, vector<8x8xbf16>
    %cst_59 = arith.constant dense<0.000000e+00> : vector<192x8xf32>
    %139 = tpu.matmul %137, %138, %cst_59 {dimension_numbers = #tpu.dot_dimension_numbers<[1], [0], [0], [1], [0, 0, 1, 1], [], []>} : vector<192x8xbf16>, vector<8x8xbf16>, vector<192x8xf32> -> vector<192x8xf32>
    %140 = vector.extract_strided_slice %0 {offsets = [3, 0], sizes = [1, 8], strides = [1, 1]} : vector<9x8xf32> to vector<1x8xf32>
    %141 = vector.broadcast %140 : vector<1x8xf32> to vector<192x8xf32>
    %142 = arith.addf %139, %141 : vector<192x8xf32>
    %143 = vector.extract_strided_slice %0 {offsets = [4, 0], sizes = [1, 8], strides = [1, 1]} : vector<9x8xf32> to vector<1x8xf32>
    %144 = vector.broadcast %143 : vector<1x8xf32> to vector<192x8xf32>
    %145 = arith.mulf %144, %142 : vector<192x8xf32>
    %146 = arith.addf %3, %145 : vector<192x8xf32>
    %147 = vector.extract_strided_slice %0 {offsets = [5, 0], sizes = [1, 8], strides = [1, 1]} : vector<9x8xf32> to vector<1x8xf32>
    %148 = vector.extract_strided_slice %0 {offsets = [6, 0], sizes = [1, 8], strides = [1, 1]} : vector<9x8xf32> to vector<1x8xf32>
    %cst_60 = arith.constant dense<0.000000e+00> : vector<192xf32>
    %149 = vector.multi_reduction <add>, %146, %cst_60 [1] : vector<192x8xf32> to vector<192xf32>
    %150 = vector.shape_cast %149 : vector<192xf32> to vector<192x1xf32>
    %cst_61 = arith.constant 8.000000e+00 : f32
    %151 = vector.broadcast %cst_61 : f32 to vector<192x1xf32>
    %152 = arith.divf %150, %151 : vector<192x1xf32>
    %153 = arith.mulf %146, %146 : vector<192x8xf32>
    %cst_62 = arith.constant dense<0.000000e+00> : vector<192xf32>
    %154 = vector.multi_reduction <add>, %153, %cst_62 [1] : vector<192x8xf32> to vector<192xf32>
    %155 = vector.shape_cast %154 : vector<192xf32> to vector<192x1xf32>
    %cst_63 = arith.constant 8.000000e+00 : f32
    %156 = vector.broadcast %cst_63 : f32 to vector<192x1xf32>
    %157 = arith.divf %155, %156 : vector<192x1xf32>
    %158 = arith.mulf %152, %152 : vector<192x1xf32>
    %159 = arith.subf %157, %158 : vector<192x1xf32>
    %cst_64 = arith.constant 0.000000e+00 : f32
    %160 = vector.broadcast %cst_64 : f32 to vector<192x1xf32>
    %161 = arith.maximumf %159, %160 : vector<192x1xf32>
    %162 = vector.broadcast %152 : vector<192x1xf32> to vector<192x8xf32>
    %163 = arith.subf %146, %162 : vector<192x8xf32>
    %cst_65 = arith.constant 9.99999997E-7 : f32
    %164 = vector.broadcast %cst_65 : f32 to vector<192x1xf32>
    %165 = arith.addf %161, %164 : vector<192x1xf32>
    %166 = math.rsqrt %165 : vector<192x1xf32>
    %167 = vector.broadcast %166 : vector<192x1xf32> to vector<192x8xf32>
    %168 = arith.mulf %163, %167 : vector<192x8xf32>
    %169 = vector.broadcast %147 : vector<1x8xf32> to vector<192x8xf32>
    %170 = arith.mulf %169, %168 : vector<192x8xf32>
    %171 = vector.broadcast %148 : vector<1x8xf32> to vector<192x8xf32>
    %172 = arith.addf %170, %171 : vector<192x8xf32>
    %173 = arith.truncf %172 : vector<192x8xf32> to vector<192x8xbf16>
    %c0_66 = arith.constant 0 : index
    %c0_67 = arith.constant 0 : index
    %174 = vector.load %arg12[%c0_66, %c0_67] : memref<8x32xbf16, #tpu.memory_space<vmem>>, vector<8x32xbf16>
    %cst_68 = arith.constant dense<0.000000e+00> : vector<192x32xf32>
    %175 = tpu.matmul %173, %174, %cst_68 {dimension_numbers = #tpu.dot_dimension_numbers<[1], [0], [0], [1], [0, 0, 1, 1], [], []>} : vector<192x8xbf16>, vector<8x32xbf16>, vector<192x32xf32> -> vector<192x32xf32>
    %c0_69 = arith.constant 0 : index
    %c0_70 = arith.constant 0 : index
    %176 = vector.load %arg13[%c0_69, %c0_70] : memref<1x32xf32, #tpu.memory_space<vmem>>, vector<1x32xf32>
    %177 = vector.broadcast %176 : vector<1x32xf32> to vector<192x32xf32>
    %178 = arith.addf %175, %177 : vector<192x32xf32>
    %cst_71 = arith.constant 5.000000e-01 : f32
    %179 = vector.broadcast %cst_71 : f32 to vector<192x32xf32>
    %180 = arith.mulf %179, %178 : vector<192x32xf32>
    %181 = arith.mulf %178, %178 : vector<192x32xf32>
    %182 = arith.mulf %181, %178 : vector<192x32xf32>
    %cst_72 = arith.constant 4.471500e-02 : f32
    %183 = vector.broadcast %cst_72 : f32 to vector<192x32xf32>
    %184 = arith.mulf %183, %182 : vector<192x32xf32>
    %185 = arith.addf %178, %184 : vector<192x32xf32>
    %cst_73 = arith.constant 0.797884583 : f32
    %186 = vector.broadcast %cst_73 : f32 to vector<192x32xf32>
    %187 = arith.mulf %186, %185 : vector<192x32xf32>
    %188 = math.tanh %187 : vector<192x32xf32>
    %cst_74 = arith.constant 1.000000e+00 : f32
    %189 = vector.broadcast %cst_74 : f32 to vector<192x32xf32>
    %190 = arith.addf %189, %188 : vector<192x32xf32>
    %191 = arith.mulf %180, %190 : vector<192x32xf32>
    %192 = arith.truncf %191 : vector<192x32xf32> to vector<192x32xbf16>
    %c0_75 = arith.constant 0 : index
    %c0_76 = arith.constant 0 : index
    %193 = vector.load %arg14[%c0_75, %c0_76] : memref<32x8xbf16, #tpu.memory_space<vmem>>, vector<32x8xbf16>
    %cst_77 = arith.constant dense<0.000000e+00> : vector<192x8xf32>
    %194 = tpu.matmul %192, %193, %cst_77 {dimension_numbers = #tpu.dot_dimension_numbers<[1], [0], [0], [1], [0, 0, 1, 1], [], []>} : vector<192x32xbf16>, vector<32x8xbf16>, vector<192x8xf32> -> vector<192x8xf32>
    %195 = vector.extract_strided_slice %0 {offsets = [7, 0], sizes = [1, 8], strides = [1, 1]} : vector<9x8xf32> to vector<1x8xf32>
    %196 = vector.broadcast %195 : vector<1x8xf32> to vector<192x8xf32>
    %197 = arith.addf %194, %196 : vector<192x8xf32>
    %198 = vector.extract_strided_slice %0 {offsets = [8, 0], sizes = [1, 8], strides = [1, 1]} : vector<9x8xf32> to vector<1x8xf32>
    %199 = vector.broadcast %198 : vector<1x8xf32> to vector<192x8xf32>
    %200 = arith.mulf %199, %197 : vector<192x8xf32>
    %201 = arith.addf %146, %200 : vector<192x8xf32>
    %c0_78 = arith.constant 0 : index
    %c0_79 = arith.constant 0 : index
    %202 = vector.load %arg15[%c0_78, %c0_79] : memref<192x8xf32, #tpu.memory_space<vmem>>, vector<192x8xf32>
    tpu.vector_store %arg15[%c0_78, %c0_79], %201 {strides = array<i32>} : memref<192x8xf32, #tpu.memory_space<vmem>>, vector<192x8xf32>,
    return
  }
  func.func @transform_0(%arg0: i32) -> (i32, i32) {
    %c0_i32 = arith.constant 0 : i32
    %c0_i32_0 = arith.constant 0 : i32
    return %arg0, %c0_i32 : i32, i32
  }
  func.func @transform_1(%arg0: i32) -> (i32, i32) {
    %c0_i32 = arith.constant 0 : i32
    %c0_i32_0 = arith.constant 0 : i32
    %c0_i32_1 = arith.constant 0 : i32
    return %c0_i32, %c0_i32_0 : i32, i32
  }
  func.func @transform_2(%arg0: i32) -> (i32, i32) {
    %c0_i32 = arith.constant 0 : i32
    %c0_i32_0 = arith.constant 0 : i32
    %c0_i32_1 = arith.constant 0 : i32
    return %c0_i32, %c0_i32_0 : i32, i32
  }
  func.func @transform_3(%arg0: i32) -> (i32, i32) {
    %c0_i32 = arith.constant 0 : i32
    %c0_i32_0 = arith.constant 0 : i32
    %c0_i32_1 = arith.constant 0 : i32
    return %c0_i32, %c0_i32_0 : i32, i32
  }
  func.func @transform_4(%arg0: i32) -> (i32, i32) {
    %c0_i32 = arith.constant 0 : i32
    %c0_i32_0 = arith.constant 0 : i32
    %c0_i32_1 = arith.constant 0 : i32
    return %c0_i32, %c0_i32_0 : i32, i32
  }
  func.func @transform_5(%arg0: i32) -> (i32, i32) {
    %c0_i32 = arith.constant 0 : i32
    %c0_i32_0 = arith.constant 0 : i32
    %c0_i32_1 = arith.constant 0 : i32
    return %c0_i32, %c0_i32_0 : i32, i32
  }
  func.func @transform_6(%arg0: i32) -> (i32, i32) {
    %c0_i32 = arith.constant 0 : i32
    %c0_i32_0 = arith.constant 0 : i32
    %c0_i32_1 = arith.constant 0 : i32
    return %c0_i32, %c0_i32_0 : i32, i32
  }
  func.func @transform_7(%arg0: i32) -> (i32, i32) {
    %c0_i32 = arith.constant 0 : i32
    %c0_i32_0 = arith.constant 0 : i32
    %c0_i32_1 = arith.constant 0 : i32
    return %c0_i32, %c0_i32_0 : i32, i32
  }
  func.func @transform_8(%arg0: i32) -> (i32, i32) {
    %c0_i32 = arith.constant 0 : i32
    %c0_i32_0 = arith.constant 0 : i32
    %c0_i32_1 = arith.constant 0 : i32
    return %c0_i32, %c0_i32_0 : i32, i32
  }
  func.func @transform_9(%arg0: i32) -> (i32, i32) {
    %c0_i32 = arith.constant 0 : i32
    %c0_i32_0 = arith.constant 0 : i32
    %c0_i32_1 = arith.constant 0 : i32
    return %c0_i32, %c0_i32_0 : i32, i32
  }
  func.func @transform_10(%arg0: i32) -> (i32, i32) {
    %c0_i32 = arith.constant 0 : i32
    %c0_i32_0 = arith.constant 0 : i32
    %c0_i32_1 = arith.constant 0 : i32
    return %c0_i32, %c0_i32_0 : i32, i32
  }
  func.func @transform_11(%arg0: i32) -> (i32, i32) {
    %c0_i32 = arith.constant 0 : i32
    %c0_i32_0 = arith.constant 0 : i32
    %c0_i32_1 = arith.constant 0 : i32
    return %c0_i32, %c0_i32_0 : i32, i32
  }
  func.func @transform_12(%arg0: i32) -> (i32, i32) {
    %c0_i32 = arith.constant 0 : i32
    %c0_i32_0 = arith.constant 0 : i32
    %c0_i32_1 = arith.constant 0 : i32
    return %c0_i32, %c0_i32_0 : i32, i32
  }
  func.func @transform_13(%arg0: i32) -> (i32, i32) {
    %c0_i32 = arith.constant 0 : i32
    %c0_i32_0 = arith.constant 0 : i32
    %c0_i32_1 = arith.constant 0 : i32
    return %c0_i32, %c0_i32_0 : i32, i32
  }
  func.func @transform_14(%arg0: i32) -> (i32, i32) {
    %c0_i32 = arith.constant 0 : i32
    %c0_i32_0 = arith.constant 0 : i32
    return %arg0, %c0_i32 : i32, i32
  }
}

</mosaic_0001>

<llo_original>
// kernel: tpu_custom_call.1
$region0: #{tpu_custom_call.1}
  #allocation0 [shape = 'u32[]', space=smem, size = 0x4, offset = 0x4, fixed_abs, tag = 'smem constant byte address 0x4 - core index']
  #allocation1 [shape = 'u32[144,128]{1,0:T(1,128)}', space=vmem, size = 0x12000, scoped, tag = 'internal scratch']
  #allocation2 [shape = 'f32[3,224,14]{2,1,0:T(8,128)}', space=vmem, size = 0x54000, scoped, tag = 'scratch operand']
  %s0 = inlined_call_operand.vmem [shape: f32[384,8], index: 0, kind: input, shape index: {}]
  %s1 = inlined_call_operand.vmem [shape: f32[192,8], index: 1, kind: input, shape index: {}]
  %s2 = inlined_call_operand.vmem [shape: f32[192,3], index: 2, kind: input, shape index: {}]
  %s3 = inlined_call_operand.vmem [shape: f32[9,8], index: 3, kind: input, shape index: {}]
  %s4 = inlined_call_operand.vmem [shape: bf16[8,16], index: 4, kind: input, shape index: {}]
  %s5 = inlined_call_operand.vmem [shape: f32[1,16], index: 5, kind: input, shape index: {}]
  %s6 = inlined_call_operand.vmem [shape: f32[10,14], index: 6, kind: input, shape index: {}]
  %s7 = inlined_call_operand.vmem [shape: bf16[2,4], index: 7, kind: input, shape index: {}]
  %s8 = inlined_call_operand.vmem [shape: f32[1,4], index: 8, kind: input, shape index: {}]
  %s9 = inlined_call_operand.vmem [shape: bf16[4,8], index: 9, kind: input, shape index: {}]
  %s10 = inlined_call_operand.vmem [shape: bf16[8,8], index: 10, kind: input, shape index: {}]
  %s11 = inlined_call_operand.vmem [shape: bf16[8,32], index: 11, kind: input, shape index: {}]
  %s12 = inlined_call_operand.vmem [shape: f32[1,32], index: 12, kind: input, shape index: {}]
  %s13 = inlined_call_operand.vmem [shape: bf16[32,8], index: 13, kind: input, shape index: {}]
  %s14 = inlined_call_operand.vmem [shape: f32[384,8], index: 14, kind: output, shape index: {}]
  %s15 = sld [smem:[#allocation0]]
  $region89: #{tpu_custom_call.1} parent=0
    _
  %s17 = ssub.s32 1, %s15
  %s18 = scalar_select 0, %s17, %s15
  loop: start=0, step=1, limit=4
  $region2: #{tpu_custom_call.1} parent=0 // loop_pre_header
    _
  $region3: #{tpu_custom_call.1} parent=0 // loop_header
    %s20 = sphi 0, %s24
    %p21 = scmp.ge.s32.totalorder %s20, 4
    %s30 = sphi 0, %s32
    %s33 = sphi 0, %s30
    %s34 = sphi 0, %s33
    %s50 = sphi 0, %s34
    %s54 = sphi 0, %s54
    %s56 = sphi 0, %s54
    %s57 = sphi 0, %s56
    %s71 = sphi 0, %s57
    %s75 = sphi 0, %s75
    %s77 = sphi 0, %s75
    %s78 = sphi 0, %s77
    %s92 = sphi 0, %s78
    %s96 = sphi 0, %s96
    %s98 = sphi 0, %s96
    %s99 = sphi 0, %s98
    %s113 = sphi 0, %s99
    %s117 = sphi 0, %s117
    %s119 = sphi 0, %s117
    %s120 = sphi 0, %s119
    %s134 = sphi 0, %s120
    %s138 = sphi 0, %s138
    %s140 = sphi 0, %s138
    %s141 = sphi 0, %s140
    %s155 = sphi 0, %s141
    %s159 = sphi 0, %s159
    %s161 = sphi 0, %s159
    %s162 = sphi 0, %s161
    %s176 = sphi 0, %s162
    %s180 = sphi 0, %s180
    %s182 = sphi 0, %s180
    %s183 = sphi 0, %s182
    %s197 = sphi 0, %s183
    %s201 = sphi 0, %s201
    %s203 = sphi 0, %s201
    %s204 = sphi 0, %s203
    %s218 = sphi 0, %s204
    %s222 = sphi 0, %s222
    %s224 = sphi 0, %s222
    %s225 = sphi 0, %s224
    %s239 = sphi 0, %s225
    %s243 = sphi 0, %s243
    %s245 = sphi 0, %s243
    %s246 = sphi 0, %s245
    %s260 = sphi 0, %s246
    %s264 = sphi 0, %s264
    %s266 = sphi 0, %s264
    %s267 = sphi 0, %s266
    %s281 = sphi 0, %s267
    %s285 = sphi 0, %s285
    %s287 = sphi 0, %s285
    %s288 = sphi 0, %s287
    %s302 = sphi 0, %s288
    %s306 = sphi 0, %s306
    %s308 = sphi 0, %s306
    %s309 = sphi 0, %s308
    %s323 = sphi 0, %s309
    %s329 = sphi 0, %s331
    %s332 = sphi 0, %s329
    %s333 = sphi 0, %s332
    %s349 = sphi 0, %s333
  $region4: #{tpu_custom_call.1} parent=0 // loop_header_branch
    %23 = sbr.rel (%p21) target = $region8
  $region5: #{tpu_custom_call.1} parent=0 // loop_body
    %s25 = ssub.s32 %s20, 1
    %s26 = ssub.s32 %s20, 2
    %s27 = sadd.s32 %s20, 1
    %s28 = ssub.s32 %s20, %s27
    %p29 = scmp.eq.s32.totalorder %s28, 0
    %s31 = sadd.s32 %s30, 1
    %s32 = scalar_select %p29, %s30, %s31
    %p35 = pneg %p29
    %p36 = scmp.eq.s32.totalorder %s20, 1
    %p37 = por %p35, %p36
    %p38 = scmp.ne.s32.totalorder %s30, %s33
    %p39 = scmp.eq.s32.totalorder %s20, 0
    %p40 = por %p38, %p39
    %p41 = scmp.ne.s32.totalorder %s30, %s33
    %p42 = scmp.eq.s32.totalorder %s25, 1
    %p43 = por %p41, %p42
    %p44 = scmp.ne.s32.totalorder %s33, %s34
    %p45 = scmp.eq.s32.totalorder %s25, 0
    %p46 = por %p44, %p45
    %p47 = scmp.ne.s32.totalorder %s33, %s34
    %p48 = scmp.eq.s32.totalorder %s26, 1
    %p49 = por %p47, %p48
    %p51 = scmp.ne.s32.totalorder %s34, %s50
    %p52 = scmp.eq.s32.totalorder %s26, 0
    %p53 = por %p51, %p52
    %s55 = sadd.s32 %s54, 1
    %p58 = scmp.eq.s32.totalorder %s20, 1
    %p59 = scmp.ne.s32.totalorder %s54, %s56
    %p60 = scmp.eq.s32.totalorder %s20, 0
    %p61 = por %p59, %p60
    %p62 = scmp.ne.s32.totalorder %s54, %s56
    %p63 = scmp.eq.s32.totalorder %s25, 1
    %p64 = por %p62, %p63
    %p65 = scmp.ne.s32.totalorder %s56, %s57
    %p66 = scmp.eq.s32.totalorder %s25, 0
    %p67 = por %p65, %p66
    %p68 = scmp.ne.s32.totalorder %s56, %s57
    %p69 = scmp.eq.s32.totalorder %s26, 1
    %p70 = por %p68, %p69
    %p72 = scmp.ne.s32.totalorder %s57, %s71
    %p73 = scmp.eq.s32.totalorder %s26, 0
    %p74 = por %p72, %p73
    %s76 = sadd.s32 %s75, 1
    %p79 = scmp.eq.s32.totalorder %s20, 1
    %p80 = scmp.ne.s32.totalorder %s75, %s77
    %p81 = scmp.eq.s32.totalorder %s20, 0
    %p82 = por %p80, %p81
    %p83 = scmp.ne.s32.totalorder %s75, %s77
    %p84 = scmp.eq.s32.totalorder %s25, 1
    %p85 = por %p83, %p84
    %p86 = scmp.ne.s32.totalorder %s77, %s78
    %p87 = scmp.eq.s32.totalorder %s25, 0
    %p88 = por %p86, %p87
    %p89 = scmp.ne.s32.totalorder %s77, %s78
    %p90 = scmp.eq.s32.totalorder %s26, 1
    %p91 = por %p89, %p90
    %p93 = scmp.ne.s32.totalorder %s78, %s92
    %p94 = scmp.eq.s32.totalorder %s26, 0
    %p95 = por %p93, %p94
    %s97 = sadd.s32 %s96, 1
    %p100 = scmp.eq.s32.totalorder %s20, 1
    %p101 = scmp.ne.s32.totalorder %s96, %s98
    %p102 = scmp.eq.s32.totalorder %s20, 0
    %p103 = por %p101, %p102
    %p104 = scmp.ne.s32.totalorder %s96, %s98
    %p105 = scmp.eq.s32.totalorder %s25, 1
    %p106 = por %p104, %p105
    %p107 = scmp.ne.s32.totalorder %s98, %s99
    %p108 = scmp.eq.s32.totalorder %s25, 0
    %p109 = por %p107, %p108
    %p110 = scmp.ne.s32.totalorder %s98, %s99
    %p111 = scmp.eq.s32.totalorder %s26, 1
    %p112 = por %p110, %p111
    %p114 = scmp.ne.s32.totalorder %s99, %s113
    %p115 = scmp.eq.s32.totalorder %s26, 0
    %p116 = por %p114, %p115
    %s118 = sadd.s32 %s117, 1
    %p121 = scmp.eq.s32.totalorder %s20, 1
    %p122 = scmp.ne.s32.totalorder %s117, %s119
    %p123 = scmp.eq.s32.totalorder %s20, 0
    %p124 = por %p122, %p123
    %p125 = scmp.ne.s32.totalorder %s117, %s119
    %p126 = scmp.eq.s32.totalorder %s25, 1
    %p127 = por %p125, %p126
    %p128 = scmp.ne.s32.totalorder %s119, %s120
    %p129 = scmp.eq.s32.totalorder %s25, 0
    %p130 = por %p128, %p129
    %p131 = scmp.ne.s32.totalorder %s119, %s120
    %p132 = scmp.eq.s32.totalorder %s26, 1
    %p133 = por %p131, %p132
    %p135 = scmp.ne.s32.totalorder %s120, %s134
    %p136 = scmp.eq.s32.totalorder %s26, 0
    %p137 = por %p135, %p136
    %s139 = sadd.s32 %s138, 1
    %p142 = scmp.eq.s32.totalorder %s20, 1
    %p143 = scmp.ne.s32.totalorder %s138, %s140
    %p144 = scmp.eq.s32.totalorder %s20, 0
    %p145 = por %p143, %p144
    %p146 = scmp.ne.s32.totalorder %s138, %s140
    %p147 = scmp.eq.s32.totalorder %s25, 1
    %p148 = por %p146, %p147
    %p149 = scmp.ne.s32.totalorder %s140, %s141
    %p150 = scmp.eq.s32.totalorder %s25, 0
    %p151 = por %p149, %p150
    %p152 = scmp.ne.s32.totalorder %s140, %s141
    %p153 = scmp.eq.s32.totalorder %s26, 1
    %p154 = por %p152, %p153
    %p156 = scmp.ne.s32.totalorder %s141, %s155
    %p157 = scmp.eq.s32.totalorder %s26, 0
    %p158 = por %p156, %p157
    %s160 = sadd.s32 %s159, 1
    %p163 = scmp.eq.s32.totalorder %s20, 1
    %p164 = scmp.ne.s32.totalorder %s159, %s161
    %p165 = scmp.eq.s32.totalorder %s20, 0
    %p166 = por %p164, %p165
    %p167 = scmp.ne.s32.totalorder %s159, %s161
    %p168 = scmp.eq.s32.totalorder %s25, 1
    %p169 = por %p167, %p168
    %p170 = scmp.ne.s32.totalorder %s161, %s162
    %p171 = scmp.eq.s32.totalorder %s25, 0
    %p172 = por %p170, %p171
    %p173 = scmp.ne.s32.totalorder %s161, %s162
    %p174 = scmp.eq.s32.totalorder %s26, 1
    %p175 = por %p173, %p174
    %p177 = scmp.ne.s32.totalorder %s162, %s176
    %p178 = scmp.eq.s32.totalorder %s26, 0
    %p179 = por %p177, %p178
    %s181 = sadd.s32 %s180, 1
    %p184 = scmp.eq.s32.totalorder %s20, 1
    %p185 = scmp.ne.s32.totalorder %s180, %s182
    %p186 = scmp.eq.s32.totalorder %s20, 0
    %p187 = por %p185, %p186
    %p188 = scmp.ne.s32.totalorder %s180, %s182
    %p189 = scmp.eq.s32.totalorder %s25, 1
    %p190 = por %p188, %p189
    %p191 = scmp.ne.s32.totalorder %s182, %s183
    %p192 = scmp.eq.s32.totalorder %s25, 0
    %p193 = por %p191, %p192
    %p194 = scmp.ne.s32.totalorder %s182, %s183
    %p195 = scmp.eq.s32.totalorder %s26, 1
    %p196 = por %p194, %p195
    %p198 = scmp.ne.s32.totalorder %s183, %s197
    %p199 = scmp.eq.s32.totalorder %s26, 0
    %p200 = por %p198, %p199
    %s202 = sadd.s32 %s201, 1
    %p205 = scmp.eq.s32.totalorder %s20, 1
    %p206 = scmp.ne.s32.totalorder %s201, %s203
    %p207 = scmp.eq.s32.totalorder %s20, 0
    %p208 = por %p206, %p207
    %p209 = scmp.ne.s32.totalorder %s201, %s203
    %p210 = scmp.eq.s32.totalorder %s25, 1
    %p211 = por %p209, %p210
    %p212 = scmp.ne.s32.totalorder %s203, %s204
    %p213 = scmp.eq.s32.totalorder %s25, 0
    %p214 = por %p212, %p213
    %p215 = scmp.ne.s32.totalorder %s203, %s204
    %p216 = scmp.eq.s32.totalorder %s26, 1
    %p217 = por %p215, %p216
    %p219 = scmp.ne.s32.totalorder %s204, %s218
    %p220 = scmp.eq.s32.totalorder %s26, 0
    %p221 = por %p219, %p220
    %s223 = sadd.s32 %s222, 1
    %p226 = scmp.eq.s32.totalorder %s20, 1
    %p227 = scmp.ne.s32.totalorder %s222, %s224
    %p228 = scmp.eq.s32.totalorder %s20, 0
    %p229 = por %p227, %p228
    %p230 = scmp.ne.s32.totalorder %s222, %s224
    %p231 = scmp.eq.s32.totalorder %s25, 1
    %p232 = por %p230, %p231
    %p233 = scmp.ne.s32.totalorder %s224, %s225
    %p234 = scmp.eq.s32.totalorder %s25, 0
    %p235 = por %p233, %p234
    %p236 = scmp.ne.s32.totalorder %s224, %s225
    %p237 = scmp.eq.s32.totalorder %s26, 1
    %p238 = por %p236, %p237
    %p240 = scmp.ne.s32.totalorder %s225, %s239
    %p241 = scmp.eq.s32.totalorder %s26, 0
    %p242 = por %p240, %p241
    %s244 = sadd.s32 %s243, 1
    %p247 = scmp.eq.s32.totalorder %s20, 1
    %p248 = scmp.ne.s32.totalorder %s243, %s245
    %p249 = scmp.eq.s32.totalorder %s20, 0
    %p250 = por %p248, %p249
    %p251 = scmp.ne.s32.totalorder %s243, %s245
    %p252 = scmp.eq.s32.totalorder %s25, 1
    %p253 = por %p251, %p252
    %p254 = scmp.ne.s32.totalorder %s245, %s246
    %p255 = scmp.eq.s32.totalorder %s25, 0
    %p256 = por %p254, %p255
    %p257 = scmp.ne.s32.totalorder %s245, %s246
    %p258 = scmp.eq.s32.totalorder %s26, 1
    %p259 = por %p257, %p258
    %p261 = scmp.ne.s32.totalorder %s246, %s260
    %p262 = scmp.eq.s32.totalorder %s26, 0
    %p263 = por %p261, %p262
    %s265 = sadd.s32 %s264, 1
    %p268 = scmp.eq.s32.totalorder %s20, 1
    %p269 = scmp.ne.s32.totalorder %s264, %s266
    %p270 = scmp.eq.s32.totalorder %s20, 0
    %p271 = por %p269, %p270
    %p272 = scmp.ne.s32.totalorder %s264, %s266
    %p273 = scmp.eq.s32.totalorder %s25, 1
    %p274 = por %p272, %p273
    %p275 = scmp.ne.s32.totalorder %s266, %s267
    %p276 = scmp.eq.s32.totalorder %s25, 0
    %p277 = por %p275, %p276
    %p278 = scmp.ne.s32.totalorder %s266, %s267
    %p279 = scmp.eq.s32.totalorder %s26, 1
    %p280 = por %p278, %p279
    %p282 = scmp.ne.s32.totalorder %s267, %s281
    %p283 = scmp.eq.s32.totalorder %s26, 0
    %p284 = por %p282, %p283
    %s286 = sadd.s32 %s285, 1
    %p289 = scmp.eq.s32.totalorder %s20, 1
    %p290 = scmp.ne.s32.totalorder %s285, %s287
    %p291 = scmp.eq.s32.totalorder %s20, 0
    %p292 = por %p290, %p291
    %p293 = scmp.ne.s32.totalorder %s285, %s287
    %p294 = scmp.eq.s32.totalorder %s25, 1
    %p295 = por %p293, %p294
    %p296 = scmp.ne.s32.totalorder %s287, %s288
    %p297 = scmp.eq.s32.totalorder %s25, 0
    %p298 = por %p296, %p297
    %p299 = scmp.ne.s32.totalorder %s287, %s288
    %p300 = scmp.eq.s32.totalorder %s26, 1
    %p301 = por %p299, %p300
    %p303 = scmp.ne.s32.totalorder %s288, %s302
    %p304 = scmp.eq.s32.totalorder %s26, 0
    %p305 = por %p303, %p304
    %s307 = sadd.s32 %s306, 1
    %p310 = scmp.eq.s32.totalorder %s20, 1
    %p311 = scmp.ne.s32.totalorder %s306, %s308
    %p312 = scmp.eq.s32.totalorder %s20, 0
    %p313 = por %p311, %p312
    %p314 = scmp.ne.s32.totalorder %s306, %s308
    %p315 = scmp.eq.s32.totalorder %s25, 1
    %p316 = por %p314, %p315
    %p317 = scmp.ne.s32.totalorder %s308, %s309
    %p318 = scmp.eq.s32.totalorder %s25, 0
    %p319 = por %p317, %p318
    %p320 = scmp.ne.s32.totalorder %s308, %s309
    %p321 = scmp.eq.s32.totalorder %s26, 1
    %p322 = por %p320, %p321
    %p324 = scmp.ne.s32.totalorder %s309, %s323
    %p325 = scmp.eq.s32.totalorder %s26, 0
    %p326 = por %p324, %p325
    %s327 = ssub.s32 %s20, %s27
    %p328 = scmp.eq.s32.totalorder %s327, 0
    %s330 = sadd.s32 %s329, 1
    %s331 = scalar_select %p328, %s329, %s330
    %p334 = pneg %p328
    %p335 = scmp.eq.s32.totalorder %s20, 1
    %p336 = por %p334, %p335
    %p337 = scmp.ne.s32.totalorder %s329, %s332
    %p338 = scmp.eq.s32.totalorder %s20, 0
    %p339 = por %p337, %p338
    %p340 = scmp.ne.s32.totalorder %s329, %s332
    %p341 = scmp.eq.s32.totalorder %s25, 1
    %p342 = por %p340, %p341
    %p343 = scmp.ne.s32.totalorder %s332, %s333
    %p344 = scmp.eq.s32.totalorder %s25, 0
    %p345 = por %p343, %p344
    %p346 = scmp.ne.s32.totalorder %s332, %s333
    %p347 = scmp.eq.s32.totalorder %s26, 1
    %p348 = por %p346, %p347
    %p350 = scmp.ne.s32.totalorder %s333, %s349
    %p351 = scmp.eq.s32.totalorder %s26, 0
    %p352 = por %p350, %p351
    %p353 = scmp.le.s32.totalorder 1, %s20
    %p354 = scmp.lt.s32.totalorder %s20, 3
    %p355 = pnand %p353, %p354
    %p356 = pneg %p355
    // Predicated region
    $region9: #{tpu_custom_call.1} parent=5 // pred_check
      _
    $region10: #{tpu_custom_call.1} parent=5 // pred_check_branch
      %358 = sbr.rel (%p355) target = $region12
    $region11: #{tpu_custom_call.1} parent=5 // pred_region
      %s359 = ssub.s32 %s20, 1
      // Predicated region
      $region13: #{tpu_custom_call.1} parent=11 // pred_check
        %p360 = pneg %p67
      $region14: #{tpu_custom_call.1} parent=11 // pred_check_branch
        %362 = sbr.rel (%p360) target = $region16
      $region15: #{tpu_custom_call.1} parent=11 // pred_region
        _
      $region16: #{tpu_custom_call.1} parent=11 // pred_fallthru
        _
      // Predicated region
      $region17: #{tpu_custom_call.1} parent=11 // pred_check
        %p363 = pneg %p88
      $region18: #{tpu_custom_call.1} parent=11 // pred_check_branch
        %365 = sbr.rel (%p363) target = $region20
      $region19: #{tpu_custom_call.1} parent=11 // pred_region
        _
      $region20: #{tpu_custom_call.1} parent=11 // pred_fallthru
        _
      // Predicated region
      $region21: #{tpu_custom_call.1} parent=11 // pred_check
        %p366 = pneg %p109
      $region22: #{tpu_custom_call.1} parent=11 // pred_check_branch
        %368 = sbr.rel (%p366) target = $region24
      $region23: #{tpu_custom_call.1} parent=11 // pred_region
        _
      $region24: #{tpu_custom_call.1} parent=11 // pred_fallthru
        _
      // Predicated region
      $region25: #{tpu_custom_call.1} parent=11 // pred_check
        %p369 = pneg %p130
      $region26: #{tpu_custom_call.1} parent=11 // pred_check_branch
        %371 = sbr.rel (%p369) target = $region28
      $region27: #{tpu_custom_call.1} parent=11 // pred_region
        _
      $region28: #{tpu_custom_call.1} parent=11 // pred_fallthru
        _
      // Predicated region
      $region29: #{tpu_custom_call.1} parent=11 // pred_check
        %p372 = pneg %p151
      $region30: #{tpu_custom_call.1} parent=11 // pred_check_branch
        %374 = sbr.rel (%p372) target = $region32
      $region31: #{tpu_custom_call.1} parent=11 // pred_region
        _
      $region32: #{tpu_custom_call.1} parent=11 // pred_fallthru
        _
      // Predicated region
      $region33: #{tpu_custom_call.1} parent=11 // pred_check
        %p375 = pneg %p172
      $region34: #{tpu_custom_call.1} parent=11 // pred_check_branch
        %377 = sbr.rel (%p375) target = $region36
      $region35: #{tpu_custom_call.1} parent=11 // pred_region
        _
      $region36: #{tpu_custom_call.1} parent=11 // pred_fallthru
        _
      // Predicated region
      $region37: #{tpu_custom_call.1} parent=11 // pred_check
        %p378 = pneg %p193
      $region38: #{tpu_custom_call.1} parent=11 // pred_check_branch
        %380 = sbr.rel (%p378) target = $region40
      $region39: #{tpu_custom_call.1} parent=11 // pred_region
        _
      $region40: #{tpu_custom_call.1} parent=11 // pred_fallthru
        _
      // Predicated region
      $region41: #{tpu_custom_call.1} parent=11 // pred_check
        %p381 = pneg %p214
      $region42: #{tpu_custom_call.1} parent=11 // pred_check_branch
        %383 = sbr.rel (%p381) target = $region44
      $region43: #{tpu_custom_call.1} parent=11 // pred_region
        _
      $region44: #{tpu_custom_call.1} parent=11 // pred_fallthru
        _
      // Predicated region
      $region45: #{tpu_custom_call.1} parent=11 // pred_check
        %p384 = pneg %p235
      $region46: #{tpu_custom_call.1} parent=11 // pred_check_branch
        %386 = sbr.rel (%p384) target = $region48
      $region47: #{tpu_custom_call.1} parent=11 // pred_region
        _
      $region48: #{tpu_custom_call.1} parent=11 // pred_fallthru
        _
      // Predicated region
      $region49: #{tpu_custom_call.1} parent=11 // pred_check
        %p387 = pneg %p256
      $region50: #{tpu_custom_call.1} parent=11 // pred_check_branch
        %389 = sbr.rel (%p387) target = $region52
      $region51: #{tpu_custom_call.1} parent=11 // pred_region
        _
      $region52: #{tpu_custom_call.1} parent=11 // pred_fallthru
        _
      // Predicated region
      $region53: #{tpu_custom_call.1} parent=11 // pred_check
        %p390 = pneg %p277
      $region54: #{tpu_custom_call.1} parent=11 // pred_check_branch
        %392 = sbr.rel (%p390) target = $region56
      $region55: #{tpu_custom_call.1} parent=11 // pred_region
        _
      $region56: #{tpu_custom_call.1} parent=11 // pred_fallthru
        _
      // Predicated region
      $region57: #{tpu_custom_call.1} parent=11 // pred_check
        %p393 = pneg %p298
      $region58: #{tpu_custom_call.1} parent=11 // pred_check_branch
        %395 = sbr.rel (%p393) target = $region60
      $region59: #{tpu_custom_call.1} parent=11 // pred_region
        _
      $region60: #{tpu_custom_call.1} parent=11 // pred_fallthru
        _
      // Predicated region
      $region61: #{tpu_custom_call.1} parent=11 // pred_check
        %p396 = pneg %p319
      $region62: #{tpu_custom_call.1} parent=11 // pred_check_branch
        %398 = sbr.rel (%p396) target = $region64
      $region63: #{tpu_custom_call.1} parent=11 // pred_region
        _
      $region64: #{tpu_custom_call.1} parent=11 // pred_fallthru
        _
    $region12: #{tpu_custom_call.1} parent=5 // pred_fallthru
      _
    %p399 = scmp.lt.s32.totalorder %s20, 2
    // Predicated region
    $region65: #{tpu_custom_call.1} parent=5 // pred_check
      %p400 = pneg %p399
    $region66: #{tpu_custom_call.1} parent=5 // pred_check_branch
      %402 = sbr.rel (%p400) target = $region68
    $region67: #{tpu_custom_call.1} parent=5 // pred_region
      // Predicated region
      $region69: #{tpu_custom_call.1} parent=67 // pred_check
        %p403 = pneg %p40
      $region70: #{tpu_custom_call.1} parent=67 // pred_check_branch
        %405 = sbr.rel (%p403) target = $region72
      $region71: #{tpu_custom_call.1} parent=67 // pred_region
        %s406 = smul.u32 24, %s20
        %p407 = scmp.lt.s32.totalorder %s406, 47
        %s408 = scalar_select %p407, %s406, 47
        %s409 = smul.addr %s408, 8
        %s410 = scalar_lea.vmem %s0, %s409
        %s411 = smul.u32 24, %s20
      $region72: #{tpu_custom_call.1} parent=67 // pred_fallthru
        _
    $region68: #{tpu_custom_call.1} parent=5 // pred_fallthru
      _
    %p412 = scmp.le.s32.totalorder 1, %s20
    %p413 = scmp.lt.s32.totalorder %s20, 3
    %p414 = pnand %p412, %p413
    %p415 = pneg %p414
    // Predicated region
    $region73: #{tpu_custom_call.1} parent=5 // pred_check
      _
    $region74: #{tpu_custom_call.1} parent=5 // pred_check_branch
      %417 = sbr.rel (%p414) target = $region76
    $region75: #{tpu_custom_call.1} parent=5 // pred_region
      %s418 = ssub.s32 %s20, 1
      %s419 = smul.u32 24, %s25
      %p420 = scmp.lt.s32.totalorder %s419, 47
      %s421 = scalar_select %p420, %s419, 47
      %s422 = smul.addr %s421, 8
      %s423 = scalar_lea.vmem %s0, %s422
      %p424 = pneg %p46
      %p425 = pneg %p43
      %p426 = pneg %p67
      %p427 = pneg %p64
      %p428 = pneg %p88
      %p429 = pneg %p85
      %p430 = pneg %p109
      %p431 = pneg %p106
      %p432 = pneg %p130
      %p433 = pneg %p127
      %p434 = pneg %p151
      %p435 = pneg %p148
      %p436 = pneg %p172
      %p437 = pneg %p169
      %p438 = pneg %p193
      %p439 = pneg %p190
      %p440 = pneg %p214
      %p441 = pneg %p211
      %p442 = pneg %p235
      %p443 = pneg %p232
      %p444 = pneg %p256
      %p445 = pneg %p253
      %p446 = pneg %p277
      %p447 = pneg %p274
      %p448 = pneg %p298
      %p449 = pneg %p295
      %p450 = pneg %p319
      %p451 = pneg %p316
      %p452 = pneg %p345
      %p453 = pneg %p342
      %s454 = smul.u32 24, %s25
      %p455 = scmp.lt.s32.totalorder %s454, 47
      %s456 = scalar_select %p455, %s454, 47
      %s457 = smul.addr %s456, 8
      %s458 = scalar_lea.vmem %s14, %s457
      %s459 = smul.u32 24, %s25
      %p460 = scmp.lt.s32.totalorder %s459, 47
      %s461 = scalar_select %p460, %s459, 47
      %s462 = smul.addr %s461, 8
      %s463 = scalar_lea.vmem %s0, %s462
      %s464 = smul.u32 24, %s25
      %s465 = smul.u32 24, %s25
      %p466 = scmp.lt.s32.totalorder %s465, 47
      %s467 = scalar_select %p466, %s465, 47
      %s468 = smul.addr %s467, 8
      %s469 = scalar_lea.vmem %s14, %s468
      %s470 = smul.u32 24, %s25
      %v472 = vld [vmem:[%s3] sm:$0xff]
      %v473 = vld [vmem:[%s3 + $0x8] sm:$0x1]
      %v474 = vld [vmem:[%s463] sm:$0xff]
      %v475 = vld [vmem:[%s463 + $0x8] sm:$0xff]
      %v476 = vld [vmem:[%s463 + $0x10] sm:$0xff]
      %v477 = vld [vmem:[%s463 + $0x18] sm:$0xff]
      %v478 = vld [vmem:[%s463 + $0x20] sm:$0xff]
      %v479 = vld [vmem:[%s463 + $0x28] sm:$0xff]
      %v480 = vld [vmem:[%s463 + $0x30] sm:$0xff]
      %v481 = vld [vmem:[%s463 + $0x38] sm:$0xff]
      %v482 = vld [vmem:[%s463 + $0x40] sm:$0xff]
      %v483 = vld [vmem:[%s463 + $0x48] sm:$0xff]
      %v484 = vld [vmem:[%s463 + $0x50] sm:$0xff]
      %v485 = vld [vmem:[%s463 + $0x58] sm:$0xff]
      %v486 = vld [vmem:[%s463 + $0x60] sm:$0xff]
      %v487 = vld [vmem:[%s463 + $0x68] sm:$0xff]
      %v488 = vld [vmem:[%s463 + $0x70] sm:$0xff]
      %v489 = vld [vmem:[%s463 + $0x78] sm:$0xff]
      %v490 = vld [vmem:[%s463 + $0x80] sm:$0xff]
      %v491 = vld [vmem:[%s463 + $0x88] sm:$0xff]
      %v492 = vld [vmem:[%s463 + $0x90] sm:$0xff]
      %v493 = vld [vmem:[%s463 + $0x98] sm:$0xff]
      %v494 = vld [vmem:[%s463 + $0xa0] sm:$0xff]
      %v495 = vld [vmem:[%s463 + $0xa8] sm:$0xff]
      %v496 = vld [vmem:[%s463 + $0xb0] sm:$0xff]
      %v497 = vld [vmem:[%s463 + $0xb8] sm:$0xff]
      %v498 = vld [vmem:[%s1] sm:$0xff]
      %v499 = vld [vmem:[%s1 + $0x8] sm:$0xff]
      %v500 = vld [vmem:[%s1 + $0x10] sm:$0xff]
      %v501 = vld [vmem:[%s1 + $0x18] sm:$0xff]
      %v502 = vld [vmem:[%s1 + $0x20] sm:$0xff]
      %v503 = vld [vmem:[%s1 + $0x28] sm:$0xff]
      %v504 = vld [vmem:[%s1 + $0x30] sm:$0xff]
      %v505 = vld [vmem:[%s1 + $0x38] sm:$0xff]
      %v506 = vld [vmem:[%s1 + $0x40] sm:$0xff]
      %v507 = vld [vmem:[%s1 + $0x48] sm:$0xff]
      %v508 = vld [vmem:[%s1 + $0x50] sm:$0xff]
      %v509 = vld [vmem:[%s1 + $0x58] sm:$0xff]
      %v510 = vld [vmem:[%s1 + $0x60] sm:$0xff]
      %v511 = vld [vmem:[%s1 + $0x68] sm:$0xff]
      %v512 = vld [vmem:[%s1 + $0x70] sm:$0xff]
      %v513 = vld [vmem:[%s1 + $0x78] sm:$0xff]
      %v514 = vld [vmem:[%s1 + $0x80] sm:$0xff]
      %v515 = vld [vmem:[%s1 + $0x88] sm:$0xff]
      %v516 = vld [vmem:[%s1 + $0x90] sm:$0xff]
      %v517 = vld [vmem:[%s1 + $0x98] sm:$0xff]
      %v518 = vld [vmem:[%s1 + $0xa0] sm:$0xff]
      %v519 = vld [vmem:[%s1 + $0xa8] sm:$0xff]
      %v520 = vld [vmem:[%s1 + $0xb0] sm:$0xff]
      %v521 = vld [vmem:[%s1 + $0xb8] sm:$0xff]
      %v522 = vadd.f32 %v474, %v498
      %v523 = vadd.f32 %v475, %v499
      %v524 = vadd.f32 %v476, %v500
      %v525 = vadd.f32 %v477, %v501
      %v526 = vadd.f32 %v478, %v502
      %v527 = vadd.f32 %v479, %v503
      %v528 = vadd.f32 %v480, %v504
      %v529 = vadd.f32 %v481, %v505
      %v530 = vadd.f32 %v482, %v506
      %v531 = vadd.f32 %v483, %v507
      %v532 = vadd.f32 %v484, %v508
      %v533 = vadd.f32 %v485, %v509
      %v534 = vadd.f32 %v486, %v510
      %v535 = vadd.f32 %v487, %v511
      %v536 = vadd.f32 %v488, %v512
      %v537 = vadd.f32 %v489, %v513
      %v538 = vadd.f32 %v490, %v514
      %v539 = vadd.f32 %v491, %v515
      %v540 = vadd.f32 %v492, %v516
      %v541 = vadd.f32 %v493, %v517
      %v542 = vadd.f32 %v494, %v518
      %v543 = vadd.f32 %v495, %v519
      %v544 = vadd.f32 %v496, %v520
      %v545 = vadd.f32 %v497, %v521
      %vm546 = vcmask 64512
      %v547 = vsel %vm546, %v522, 0.0
      %548 = vadd.xlane.f32.xlu0 %v547
      %v549 = vpop.xlane.xlu0 %548
      %v550 = vsel %vm546, %v523, 0.0
      %551 = vadd.xlane.f32.xlu0 %v550
      %v552 = vpop.xlane.xlu0 %551
      %v553 = vsel %vm546, %v524, 0.0
      %554 = vadd.xlane.f32.xlu0 %v553
      %v555 = vpop.xlane.xlu0 %554
      %v556 = vsel %vm546, %v525, 0.0
      %557 = vadd.xlane.f32.xlu0 %v556
      %v558 = vpop.xlane.xlu0 %557
      %v559 = vsel %vm546, %v526, 0.0
      %560 = vadd.xlane.f32.xlu0 %v559
      %v561 = vpop.xlane.xlu0 %560
      %v562 = vsel %vm546, %v527, 0.0
      %563 = vadd.xlane.f32.xlu0 %v562
      %v564 = vpop.xlane.xlu0 %563
      %v565 = vsel %vm546, %v528, 0.0
      %566 = vadd.xlane.f32.xlu0 %v565
      %v567 = vpop.xlane.xlu0 %566
      %v568 = vsel %vm546, %v529, 0.0
      %569 = vadd.xlane.f32.xlu0 %v568
      %v570 = vpop.xlane.xlu0 %569
      %v571 = vsel %vm546, %v530, 0.0
      %572 = vadd.xlane.f32.xlu0 %v571
      %v573 = vpop.xlane.xlu0 %572
      %v574 = vsel %vm546, %v531, 0.0
      %575 = vadd.xlane.f32.xlu0 %v574
      %v576 = vpop.xlane.xlu0 %575
      %v577 = vsel %vm546, %v532, 0.0
      %578 = vadd.xlane.f32.xlu0 %v577
      %v579 = vpop.xlane.xlu0 %578
      %v580 = vsel %vm546, %v533, 0.0
      %581 = vadd.xlane.f32.xlu0 %v580
      %v582 = vpop.xlane.xlu0 %581
      %v583 = vsel %vm546, %v534, 0.0
      %584 = vadd.xlane.f32.xlu0 %v583
      %v585 = vpop.xlane.xlu0 %584
      %v586 = vsel %vm546, %v535, 0.0
      %587 = vadd.xlane.f32.xlu0 %v586
      %v588 = vpop.xlane.xlu0 %587
      %v589 = vsel %vm546, %v536, 0.0
      %590 = vadd.xlane.f32.xlu0 %v589
      %v591 = vpop.xlane.xlu0 %590
      %v592 = vsel %vm546, %v537, 0.0
      %593 = vadd.xlane.f32.xlu0 %v592
      %v594 = vpop.xlane.xlu0 %593
      %v595 = vsel %vm546, %v538, 0.0
      %596 = vadd.xlane.f32.xlu0 %v595
      %v597 = vpop.xlane.xlu0 %596
      %v598 = vsel %vm546, %v539, 0.0
      %599 = vadd.xlane.f32.xlu0 %v598
      %v600 = vpop.xlane.xlu0 %599
      %v601 = vsel %vm546, %v540, 0.0
      %602 = vadd.xlane.f32.xlu0 %v601
      %v603 = vpop.xlane.xlu0 %602
      %v604 = vsel %vm546, %v541, 0.0
      %605 = vadd.xlane.f32.xlu0 %v604
      %v606 = vpop.xlane.xlu0 %605
      %v607 = vsel %vm546, %v542, 0.0
      %608 = vadd.xlane.f32.xlu0 %v607
      %v609 = vpop.xlane.xlu0 %608
      %v610 = vsel %vm546, %v543, 0.0
      %611 = vadd.xlane.f32.xlu0 %v610
      %v612 = vpop.xlane.xlu0 %611
      %v613 = vsel %vm546, %v544, 0.0
      %614 = vadd.xlane.f32.xlu0 %v613
      %v615 = vpop.xlane.xlu0 %614
      %v616 = vsel %vm546, %v545, 0.0
      %617 = vadd.xlane.f32.xlu0 %v616
      %v618 = vpop.xlane.xlu0 %617
      %v619 = vrcp.pop 8.0
      %v620 = vmul.f32 %v549, %v619
      %v621 = vmul.f32 %v552, %v619
      %v622 = vmul.f32 %v555, %v619
      %v623 = vmul.f32 %v558, %v619
      %v624 = vmul.f32 %v561, %v619
      %v625 = vmul.f32 %v564, %v619
      %v626 = vmul.f32 %v567, %v619
      %v627 = vmul.f32 %v570, %v619
      %v628 = vmul.f32 %v573, %v619
      %v629 = vmul.f32 %v576, %v619
      %v630 = vmul.f32 %v579, %v619
      %v631 = vmul.f32 %v582, %v619
      %v632 = vmul.f32 %v585, %v619
      %v633 = vmul.f32 %v588, %v619
      %v634 = vmul.f32 %v591, %v619
      %v635 = vmul.f32 %v594, %v619
      %v636 = vmul.f32 %v597, %v619
      %v637 = vmul.f32 %v600, %v619
      %v638 = vmul.f32 %v603, %v619
      %v639 = vmul.f32 %v606, %v619
      %v640 = vmul.f32 %v609, %v619
      %v641 = vmul.f32 %v612, %v619
      %v642 = vmul.f32 %v615, %v619
      %v643 = vmul.f32 %v618, %v619
      %v644 = vmul.f32 %v522, %v522
      %v645 = vmul.f32 %v523, %v523
      %v646 = vmul.f32 %v524, %v524
      %v647 = vmul.f32 %v525, %v525
      %v648 = vmul.f32 %v526, %v526
      %v649 = vmul.f32 %v527, %v527
      %v650 = vmul.f32 %v528, %v528
      %v651 = vmul.f32 %v529, %v529
      %v652 = vmul.f32 %v530, %v530
      %v653 = vmul.f32 %v531, %v531
      %v654 = vmul.f32 %v532, %v532
      %v655 = vmul.f32 %v533, %v533
      %v656 = vmul.f32 %v534, %v534
      %v657 = vmul.f32 %v535, %v535
      %v658 = vmul.f32 %v536, %v536
      %v659 = vmul.f32 %v537, %v537
      %v660 = vmul.f32 %v538, %v538
      %v661 = vmul.f32 %v539, %v539
      %v662 = vmul.f32 %v540, %v540
      %v663 = vmul.f32 %v541, %v541
      %v664 = vmul.f32 %v542, %v542
      %v665 = vmul.f32 %v543, %v543
      %v666 = vmul.f32 %v544, %v544
      %v667 = vmul.f32 %v545, %v545
      %v668 = vsel %vm546, %v644, 0.0
      %669 = vadd.xlane.f32.xlu0 %v668
      %v670 = vpop.xlane.xlu0 %669
      %v671 = vsel %vm546, %v645, 0.0
      %672 = vadd.xlane.f32.xlu0 %v671
      %v673 = vpop.xlane.xlu0 %672
      %v674 = vsel %vm546, %v646, 0.0
      %675 = vadd.xlane.f32.xlu0 %v674
      %v676 = vpop.xlane.xlu0 %675
      %v677 = vsel %vm546, %v647, 0.0
      %678 = vadd.xlane.f32.xlu0 %v677
      %v679 = vpop.xlane.xlu0 %678
      %v680 = vsel %vm546, %v648, 0.0
      %681 = vadd.xlane.f32.xlu0 %v680
      %v682 = vpop.xlane.xlu0 %681
      %v683 = vsel %vm546, %v649, 0.0
      %684 = vadd.xlane.f32.xlu0 %v683
      %v685 = vpop.xlane.xlu0 %684
      %v686 = vsel %vm546, %v650, 0.0
      %687 = vadd.xlane.f32.xlu0 %v686
      %v688 = vpop.xlane.xlu0 %687
      %v689 = vsel %vm546, %v651, 0.0
      %690 = vadd.xlane.f32.xlu0 %v689
      %v691 = vpop.xlane.xlu0 %690
      %v692 = vsel %vm546, %v652, 0.0
      %693 = vadd.xlane.f32.xlu0 %v692
      %v694 = vpop.xlane.xlu0 %693
      %v695 = vsel %vm546, %v653, 0.0
      %696 = vadd.xlane.f32.xlu0 %v695
      %v697 = vpop.xlane.xlu0 %696
      %v698 = vsel %vm546, %v654, 0.0
      %699 = vadd.xlane.f32.xlu0 %v698
      %v700 = vpop.xlane.xlu0 %699
      %v701 = vsel %vm546, %v655, 0.0
      %702 = vadd.xlane.f32.xlu0 %v701
      %v703 = vpop.xlane.xlu0 %702
      %v704 = vsel %vm546, %v656, 0.0
      %705 = vadd.xlane.f32.xlu0 %v704
      %v706 = vpop.xlane.xlu0 %705
      %v707 = vsel %vm546, %v657, 0.0
      %708 = vadd.xlane.f32.xlu0 %v707
      %v709 = vpop.xlane.xlu0 %708
      %v710 = vsel %vm546, %v658, 0.0
      %711 = vadd.xlane.f32.xlu0 %v710
      %v712 = vpop.xlane.xlu0 %711
      %v713 = vsel %vm546, %v659, 0.0
      %714 = vadd.xlane.f32.xlu0 %v713
      %v715 = vpop.xlane.xlu0 %714
      %v716 = vsel %vm546, %v660, 0.0
      %717 = vadd.xlane.f32.xlu0 %v716
      %v718 = vpop.xlane.xlu0 %717
      %v719 = vsel %vm546, %v661, 0.0
      %720 = vadd.xlane.f32.xlu0 %v719
      %v721 = vpop.xlane.xlu0 %720
      %v722 = vsel %vm546, %v662, 0.0
      %723 = vadd.xlane.f32.xlu0 %v722
      %v724 = vpop.xlane.xlu0 %723
      %v725 = vsel %vm546, %v663, 0.0
      %726 = vadd.xlane.f32.xlu0 %v725
      %v727 = vpop.xlane.xlu0 %726
      %v728 = vsel %vm546, %v664, 0.0
      %729 = vadd.xlane.f32.xlu0 %v728
      %v730 = vpop.xlane.xlu0 %729
      %v731 = vsel %vm546, %v665, 0.0
      %732 = vadd.xlane.f32.xlu0 %v731
      %v733 = vpop.xlane.xlu0 %732
      %v734 = vsel %vm546, %v666, 0.0
      %735 = vadd.xlane.f32.xlu0 %v734
      %v736 = vpop.xlane.xlu0 %735
      %v737 = vsel %vm546, %v667, 0.0
      %738 = vadd.xlane.f32.xlu0 %v737
      %v739 = vpop.xlane.xlu0 %738
      %v740 = vmul.f32 %v670, %v619
      %v741 = vmul.f32 %v673, %v619
      %v742 = vmul.f32 %v676, %v619
      %v743 = vmul.f32 %v679, %v619
      %v744 = vmul.f32 %v682, %v619
      %v745 = vmul.f32 %v685, %v619
      %v746 = vmul.f32 %v688, %v619
      %v747 = vmul.f32 %v691, %v619
      %v748 = vmul.f32 %v694, %v619
      %v749 = vmul.f32 %v697, %v619
      %v750 = vmul.f32 %v700, %v619
      %v751 = vmul.f32 %v703, %v619
      %v752 = vmul.f32 %v706, %v619
      %v753 = vmul.f32 %v709, %v619
      %v754 = vmul.f32 %v712, %v619
      %v755 = vmul.f32 %v715, %v619
      %v756 = vmul.f32 %v718, %v619
      %v757 = vmul.f32 %v721, %v619
      %v758 = vmul.f32 %v724, %v619
      %v759 = vmul.f32 %v727, %v619
      %v760 = vmul.f32 %v730, %v619
      %v761 = vmul.f32 %v733, %v619
      %v762 = vmul.f32 %v736, %v619
      %v763 = vmul.f32 %v739, %v619
      %v764 = vmul.f32 %v620, %v620
      %v765 = vmul.f32 %v621, %v621
      %v766 = vmul.f32 %v622, %v622
      %v767 = vmul.f32 %v623, %v623
      %v768 = vmul.f32 %v624, %v624
      %v769 = vmul.f32 %v625, %v625
      %v770 = vmul.f32 %v626, %v626
      %v771 = vmul.f32 %v627, %v627
      %v772 = vmul.f32 %v628, %v628
      %v773 = vmul.f32 %v629, %v629
      %v774 = vmul.f32 %v630, %v630
      %v775 = vmul.f32 %v631, %v631
      %v776 = vmul.f32 %v632, %v632
      %v777 = vmul.f32 %v633, %v633
      %v778 = vmul.f32 %v634, %v634
      %v779 = vmul.f32 %v635, %v635
      %v780 = vmul.f32 %v636, %v636
      %v781 = vmul.f32 %v637, %v637
      %v782 = vmul.f32 %v638, %v638
      %v783 = vmul.f32 %v639, %v639
      %v784 = vmul.f32 %v640, %v640
      %v785 = vmul.f32 %v641, %v641
      %v786 = vmul.f32 %v642, %v642
      %v787 = vmul.f32 %v643, %v643
      %v788 = vsub.f32 %v740, %v764
      %v789 = vsub.f32 %v741, %v765
      %v790 = vsub.f32 %v742, %v766
      %v791 = vsub.f32 %v743, %v767
      %v792 = vsub.f32 %v744, %v768
      %v793 = vsub.f32 %v745, %v769
      %v794 = vsub.f32 %v746, %v770
      %v795 = vsub.f32 %v747, %v771
      %v796 = vsub.f32 %v748, %v772
      %v797 = vsub.f32 %v749, %v773
      %v798 = vsub.f32 %v750, %v774
      %v799 = vsub.f32 %v751, %v775
      %v800 = vsub.f32 %v752, %v776
      %v801 = vsub.f32 %v753, %v777
      %v802 = vsub.f32 %v754, %v778
      %v803 = vsub.f32 %v755, %v779
      %v804 = vsub.f32 %v756, %v780
      %v805 = vsub.f32 %v757, %v781
      %v806 = vsub.f32 %v758, %v782
      %v807 = vsub.f32 %v759, %v783
      %v808 = vsub.f32 %v760, %v784
      %v809 = vsub.f32 %v761, %v785
      %v810 = vsub.f32 %v762, %v786
      %v811 = vsub.f32 %v763, %v787
      %v812 = vmax.f32 %v788, 0.0
      %v813 = vmax.f32 %v789, 0.0
      %v814 = vmax.f32 %v790, 0.0
      %v815 = vmax.f32 %v791, 0.0
      %v816 = vmax.f32 %v792, 0.0
      %v817 = vmax.f32 %v793, 0.0
      %v818 = vmax.f32 %v794, 0.0
      %v819 = vmax.f32 %v795, 0.0
      %v820 = vmax.f32 %v796, 0.0
      %v821 = vmax.f32 %v797, 0.0
      %v822 = vmax.f32 %v798, 0.0
      %v823 = vmax.f32 %v799, 0.0
      %v824 = vmax.f32 %v800, 0.0
      %v825 = vmax.f32 %v801, 0.0
      %v826 = vmax.f32 %v802, 0.0
      %v827 = vmax.f32 %v803, 0.0
      %v828 = vmax.f32 %v804, 0.0
      %v829 = vmax.f32 %v805, 0.0
      %v830 = vmax.f32 %v806, 0.0
      %v831 = vmax.f32 %v807, 0.0
      %v832 = vmax.f32 %v808, 0.0
      %v833 = vmax.f32 %v809, 0.0
      %v834 = vmax.f32 %v810, 0.0
      %v835 = vmax.f32 %v811, 0.0
      %v836 = vsub.f32 %v522, %v620
      %v837 = vsub.f32 %v523, %v621
      %v838 = vsub.f32 %v524, %v622
      %v839 = vsub.f32 %v525, %v623
      %v840 = vsub.f32 %v526, %v624
      %v841 = vsub.f32 %v527, %v625
      %v842 = vsub.f32 %v528, %v626
      %v843 = vsub.f32 %v529, %v627
      %v844 = vsub.f32 %v530, %v628
      %v845 = vsub.f32 %v531, %v629
      %v846 = vsub.f32 %v532, %v630
      %v847 = vsub.f32 %v533, %v631
      %v848 = vsub.f32 %v534, %v632
      %v849 = vsub.f32 %v535, %v633
      %v850 = vsub.f32 %v536, %v634
      %v851 = vsub.f32 %v537, %v635
      %v852 = vsub.f32 %v538, %v636
      %v853 = vsub.f32 %v539, %v637
      %v854 = vsub.f32 %v540, %v638
      %v855 = vsub.f32 %v541, %v639
      %v856 = vsub.f32 %v542, %v640
      %v857 = vsub.f32 %v543, %v641
      %v858 = vsub.f32 %v544, %v642
      %v859 = vsub.f32 %v545, %v643
      %v860 = vadd.f32 %v812, 1e-06
      %v861 = vadd.f32 %v813, 1e-06
      %v862 = vadd.f32 %v814, 1e-06
      %v863 = vadd.f32 %v815, 1e-06
      %v864 = vadd.f32 %v816, 1e-06
      %v865 = vadd.f32 %v817, 1e-06
      %v866 = vadd.f32 %v818, 1e-06
      %v867 = vadd.f32 %v819, 1e-06
      %v868 = vadd.f32 %v820, 1e-06
      %v869 = vadd.f32 %v821, 1e-06
      %v870 = vadd.f32 %v822, 1e-06
      %v871 = vadd.f32 %v823, 1e-06
      %v872 = vadd.f32 %v824, 1e-06
      %v873 = vadd.f32 %v825, 1e-06
      %v874 = vadd.f32 %v826, 1e-06
      %v875 = vadd.f32 %v827, 1e-06
      %v876 = vadd.f32 %v828, 1e-06
      %v877 = vadd.f32 %v829, 1e-06
      %v878 = vadd.f32 %v830, 1e-06
      %v879 = vadd.f32 %v831, 1e-06
      %v880 = vadd.f32 %v832, 1e-06
      %v881 = vadd.f32 %v833, 1e-06
      %v882 = vadd.f32 %v834, 1e-06
      %v883 = vadd.f32 %v835, 1e-06
      %v884 = vrsqrt.pop %v860
      %v885 = vrsqrt.pop %v861
      %v886 = vrsqrt.pop %v862
      %v887 = vrsqrt.pop %v863
      %v888 = vrsqrt.pop %v864
      %v889 = vrsqrt.pop %v865
      %v890 = vrsqrt.pop %v866
      %v891 = vrsqrt.pop %v867
      %v892 = vrsqrt.pop %v868
      %v893 = vrsqrt.pop %v869
      %v894 = vrsqrt.pop %v870
      %v895 = vrsqrt.pop %v871
      %v896 = vrsqrt.pop %v872
      %v897 = vrsqrt.pop %v873
      %v898 = vrsqrt.pop %v874
      %v899 = vrsqrt.pop %v875
      %v900 = vrsqrt.pop %v876
      %v901 = vrsqrt.pop %v877
      %v902 = vrsqrt.pop %v878
      %v903 = vrsqrt.pop %v879
      %v904 = vrsqrt.pop %v880
      %v905 = vrsqrt.pop %v881
      %v906 = vrsqrt.pop %v882
      %v907 = vrsqrt.pop %v883
      %v908 = vmul.f32 %v836, %v884
      %v909 = vmul.f32 %v837, %v885
      %v910 = vmul.f32 %v838, %v886
      %v911 = vmul.f32 %v839, %v887
      %v912 = vmul.f32 %v840, %v888
      %v913 = vmul.f32 %v841, %v889
      %v914 = vmul.f32 %v842, %v890
      %v915 = vmul.f32 %v843, %v891
      %v916 = vmul.f32 %v844, %v892
      %v917 = vmul.f32 %v845, %v893
      %v918 = vmul.f32 %v846, %v894
      %v919 = vmul.f32 %v847, %v895
      %v920 = vmul.f32 %v848, %v896
      %v921 = vmul.f32 %v849, %v897
      %v922 = vmul.f32 %v850, %v898
      %v923 = vmul.f32 %v851, %v899
      %v924 = vmul.f32 %v852, %v900
      %v925 = vmul.f32 %v853, %v901
      %v926 = vmul.f32 %v854, %v902
      %v927 = vmul.f32 %v855, %v903
      %v928 = vmul.f32 %v856, %v904
      %v929 = vmul.f32 %v857, %v905
      %v930 = vmul.f32 %v858, %v906
      %v931 = vmul.f32 %v859, %v907
      %v932 = vlaneseq
      %v933 = vshrl.u32 %v932, 7
      %v934 = vsub.s32 0, %v933
      %v935 = vrot.slane %v472, %v934
      %v936 = vmul.f32 %v935, %v908
      %v937 = vmul.f32 %v935, %v909
      %v938 = vmul.f32 %v935, %v910
      %v939 = vmul.f32 %v935, %v911
      %v940 = vmul.f32 %v935, %v912
      %v941 = vmul.f32 %v935, %v913
      %v942 = vmul.f32 %v935, %v914
      %v943 = vmul.f32 %v935, %v915
      %v944 = vmul.f32 %v935, %v916
      %v945 = vmul.f32 %v935, %v917
      %v946 = vmul.f32 %v935, %v918
      %v947 = vmul.f32 %v935, %v919
      %v948 = vmul.f32 %v935, %v920
      %v949 = vmul.f32 %v935, %v921
      %v950 = vmul.f32 %v935, %v922
      %v951 = vmul.f32 %v935, %v923
      %v952 = vmul.f32 %v935, %v924
      %v953 = vmul.f32 %v935, %v925
      %v954 = vmul.f32 %v935, %v926
      %v955 = vmul.f32 %v935, %v927
      %v956 = vmul.f32 %v935, %v928
      %v957 = vmul.f32 %v935, %v929
      %v958 = vmul.f32 %v935, %v930
      %v959 = vmul.f32 %v935, %v931
      %v960 = vlaneseq
      %v961 = vshrl.u32 %v960, 7
      %v962 = vsub.s32 1, %v961
      %v963 = vrot.slane %v472, %v962
      %v964 = vadd.f32 %v936, %v963
      %v965 = vadd.f32 %v937, %v963
      %v966 = vadd.f32 %v938, %v963
      %v967 = vadd.f32 %v939, %v963
      %v968 = vadd.f32 %v940, %v963
      %v969 = vadd.f32 %v941, %v963
      %v970 = vadd.f32 %v942, %v963
      %v971 = vadd.f32 %v943, %v963
      %v972 = vadd.f32 %v944, %v963
      %v973 = vadd.f32 %v945, %v963
      %v974 = vadd.f32 %v946, %v963
      %v975 = vadd.f32 %v947, %v963
      %v976 = vadd.f32 %v948, %v963
      %v977 = vadd.f32 %v949, %v963
      %v978 = vadd.f32 %v950, %v963
      %v979 = vadd.f32 %v951, %v963
      %v980 = vadd.f32 %v952, %v963
      %v981 = vadd.f32 %v953, %v963
      %v982 = vadd.f32 %v954, %v963
      %v983 = vadd.f32 %v955, %v963
      %v984 = vadd.f32 %v956, %v963
      %v985 = vadd.f32 %v957, %v963
      %v986 = vadd.f32 %v958, %v963
      %v987 = vadd.f32 %v959, %v963
      %v988 = vpack.c.bf16 %v965, %v964
      %v989 = vpack.c.bf16 %v967, %v966
      %v990 = vpack.c.bf16 %v969, %v968
      %v991 = vpack.c.bf16 %v971, %v970
      %v992 = vpack.c.bf16 %v973, %v972
      %v993 = vpack.c.bf16 %v975, %v974
      %v994 = vpack.c.bf16 %v977, %v976
      %v995 = vpack.c.bf16 %v979, %v978
      %v996 = vpack.c.bf16 %v981, %v980
      %v997 = vpack.c.bf16 %v983, %v982
      %v998 = vpack.c.bf16 %v985, %v984
      %v999 = vpack.c.bf16 %v987, %v986
      %v1000 = vld [vmem:[%s4] sm:$0xf]
      %v1001 = vld [vmem:[%s5] sm:$0x1]
      %v1003 = vlaneseq
      %v1004 = vshrl.u32 %v1003, 7
      %v1005 = vsub.s32 0, %v1004
      %v1006 = vrot.slane %v1001, %v1005
      %v1009 = vsel %vm546, %v988, 0
      %v1012 = vsel %vm546, %v989, 0
      %v1015 = vsel %vm546, %v990, 0
      %v1018 = vsel %vm546, %v991, 0
      %v1021 = vsel %vm546, %v992, 0
      %v1024 = vsel %vm546, %v993, 0
      %v1027 = vsel %vm546, %v994, 0
      %v1030 = vsel %vm546, %v995, 0
      %v1033 = vsel %vm546, %v996, 0
      %v1036 = vsel %vm546, %v997, 0
      %v1039 = vsel %vm546, %v998, 0
      %v1042 = vsel %vm546, %v999, 0
      %vm1044 = vcmask 1043456
      %v1046 = vsel %vm1044, %v1000, 0
      %1048 = vmatprep.subr.bf16.mxu0 0
      %1049 = vmatpush1.bf16.msra.mxu0 %v1046
      %1050 = vmatprep.subr.bf16.mxu0 0
      %1051 = vmatpush1.bf16.msra.mxu0 0
      %1052 = vmatprep.subr.bf16.mxu0 0
      %1053 = vmatpush1.bf16.msra.mxu0 0
      %1054 = vmatprep.subr.bf16.mxu0 0
      %1055 = vmatpush1.bf16.msra.mxu0 0
      %1056 = vmatprep.subr.bf16.mxu0 0
      %1057 = vmatpush1.bf16.msra.mxu0 0
      %1058 = vmatprep.subr.bf16.mxu0 0
      %1059 = vmatpush1.bf16.msra.mxu0 0
      %1060 = vmatprep.subr.bf16.mxu0 0
      %1061 = vmatpush1.bf16.msra.mxu0 0
      %1062 = vmatprep.subr.bf16.mxu0 0
      %1063 = vmatpush1.bf16.msra.mxu0 0
      %1064 = vmatprep.subr.bf16.mxu0 0
      %1065 = vmatpush1.bf16.msra.mxu0 0
      %1066 = vmatprep.subr.bf16.mxu0 0
      %1067 = vmatpush1.bf16.msra.mxu0 0
      %1068 = vmatprep.subr.bf16.mxu0 0
      %1069 = vmatpush1.bf16.msra.mxu0 0
      %1070 = vmatprep.subr.bf16.mxu0 0
      %1071 = vmatpush1.bf16.msra.mxu0 0
      %1072 = vmatprep.subr.bf16.mxu0 0
      %1073 = vmatpush1.bf16.msra.mxu0 0
      %1074 = vmatprep.subr.bf16.mxu0 0
      %1075 = vmatpush1.bf16.msra.mxu0 0
      %1076 = vmatprep.subr.bf16.mxu0 0
      %1077 = vmatpush1.bf16.msra.mxu0 0
      %1078 = vmatprep.subr.bf16.mxu0 0
      %1079 = vmatpush1.bf16.msra.mxu0 0
      %1080 = vmatprep.mubr.bf16.mxu0 0
      %1081 = vmatmul.mubr.bf16.gmra.mrb[0].mxu0 %v1009
      %v1082 = vpop.f32.mrb[0].mxu0
      %v1083 = vadd.f32 %v1006, %v1082
      %v1084 = vpop.f32.mrb[0].mxu0
      %v1085 = vpop.f32.mrb[0].mxu0
      %v1086 = vadd.f32 %v1006, %v1085
      %v1087 = vpop.f32.mrb[0].mxu0
      %1088 = vmatprep.mubr.bf16.mxu0 0
      %1089 = vmatmul.mubr.bf16.gmra.mrb[0].mxu0 %v1012
      %v1090 = vpop.f32.mrb[0].mxu0
      %v1091 = vadd.f32 %v1006, %v1090
      %v1092 = vpop.f32.mrb[0].mxu0
      %v1093 = vpop.f32.mrb[0].mxu0
      %v1094 = vadd.f32 %v1006, %v1093
      %v1095 = vpop.f32.mrb[0].mxu0
      %1096 = vmatprep.mubr.bf16.mxu0 0
      %1097 = vmatmul.mubr.bf16.gmra.mrb[0].mxu0 %v1015
      %v1098 = vpop.f32.mrb[0].mxu0
      %v1099 = vadd.f32 %v1006, %v1098
      %v1100 = vpop.f32.mrb[0].mxu0
      %v1101 = vpop.f32.mrb[0].mxu0
      %v1102 = vadd.f32 %v1006, %v1101
      %v1103 = vpop.f32.mrb[0].mxu0
      %1104 = vmatprep.mubr.bf16.mxu0 0
      %1105 = vmatmul.mubr.bf16.gmra.mrb[0].mxu0 %v1018
      %v1106 = vpop.f32.mrb[0].mxu0
      %v1107 = vadd.f32 %v1006, %v1106
      %v1108 = vpop.f32.mrb[0].mxu0
      %v1109 = vpop.f32.mrb[0].mxu0
      %v1110 = vadd.f32 %v1006, %v1109
      %v1111 = vpop.f32.mrb[0].mxu0
      %1112 = vmatprep.mubr.bf16.mxu0 0
      %1113 = vmatmul.mubr.bf16.gmra.mrb[0].mxu0 %v1021
      %v1114 = vpop.f32.mrb[0].mxu0
      %v1115 = vadd.f32 %v1006, %v1114
      %v1116 = vpop.f32.mrb[0].mxu0
      %v1117 = vpop.f32.mrb[0].mxu0
      %v1118 = vadd.f32 %v1006, %v1117
      %v1119 = vpop.f32.mrb[0].mxu0
      %1120 = vmatprep.mubr.bf16.mxu0 0
      %1121 = vmatmul.mubr.bf16.gmra.mrb[0].mxu0 %v1024
      %v1122 = vpop.f32.mrb[0].mxu0
      %v1123 = vadd.f32 %v1006, %v1122
      %v1124 = vpop.f32.mrb[0].mxu0
      %v1125 = vpop.f32.mrb[0].mxu0
      %v1126 = vadd.f32 %v1006, %v1125
      %v1127 = vpop.f32.mrb[0].mxu0
      %1128 = vmatprep.mubr.bf16.mxu0 0
      %1129 = vmatmul.mubr.bf16.gmra.mrb[0].mxu0 %v1027
      %v1130 = vpop.f32.mrb[0].mxu0
      %v1131 = vadd.f32 %v1006, %v1130
      %v1132 = vpop.f32.mrb[0].mxu0
      %v1133 = vpop.f32.mrb[0].mxu0
      %v1134 = vadd.f32 %v1006, %v1133
      %v1135 = vpop.f32.mrb[0].mxu0
      %1136 = vmatprep.mubr.bf16.mxu0 0
      %1137 = vmatmul.mubr.bf16.gmra.mrb[0].mxu0 %v1030
      %v1138 = vpop.f32.mrb[0].mxu0
      %v1139 = vadd.f32 %v1006, %v1138
      %v1140 = vpop.f32.mrb[0].mxu0
      %v1141 = vpop.f32.mrb[0].mxu0
      %v1142 = vadd.f32 %v1006, %v1141
      %v1143 = vpop.f32.mrb[0].mxu0
      %1144 = vmatprep.mubr.bf16.mxu0 0
      %1145 = vmatmul.mubr.bf16.gmra.mrb[0].mxu0 %v1033
      %v1146 = vpop.f32.mrb[0].mxu0
      %v1147 = vadd.f32 %v1006, %v1146
      %v1148 = vpop.f32.mrb[0].mxu0
      %v1149 = vpop.f32.mrb[0].mxu0
      %v1150 = vadd.f32 %v1006, %v1149
      %v1151 = vpop.f32.mrb[0].mxu0
      %1152 = vmatprep.mubr.bf16.mxu0 0
      %1153 = vmatmul.mubr.bf16.gmra.mrb[0].mxu0 %v1036
      %v1154 = vpop.f32.mrb[0].mxu0
      %v1155 = vadd.f32 %v1006, %v1154
      %v1156 = vpop.f32.mrb[0].mxu0
      %v1157 = vpop.f32.mrb[0].mxu0
      %v1158 = vadd.f32 %v1006, %v1157
      %v1159 = vpop.f32.mrb[0].mxu0
      %1160 = vmatprep.mubr.bf16.mxu0 0
      %1161 = vmatmul.mubr.bf16.gmra.mrb[0].mxu0 %v1039
      %v1162 = vpop.f32.mrb[0].mxu0
      %v1163 = vadd.f32 %v1006, %v1162
      %v1164 = vpop.f32.mrb[0].mxu0
      %v1165 = vpop.f32.mrb[0].mxu0
      %v1166 = vadd.f32 %v1006, %v1165
      %v1167 = vpop.f32.mrb[0].mxu0
      %1168 = vmatprep.mubr.bf16.mxu0 0
      %1169 = vmatmul.mubr.bf16.gmra.mrb[0].mxu0 %v1042
      %v1170 = vpop.f32.mrb[0].mxu0
      %v1171 = vadd.f32 %v1006, %v1170
      %v1172 = vpop.f32.mrb[0].mxu0
      %v1173 = vpop.f32.mrb[0].mxu0
      %v1174 = vadd.f32 %v1006, %v1173
      %v1175 = vpop.f32.mrb[0].mxu0
      %1176 = vdwg.mxu0
      %v1177 = vld [vmem:[%s2] sm:$0xff]
      %v1178 = vld [vmem:[%s2 + $0x8] sm:$0xff]
      %v1179 = vld [vmem:[%s2 + $0x10] sm:$0xff]
      %v1180 = vld [vmem:[%s2 + $0x18] sm:$0xff]
      %v1181 = vld [vmem:[%s2 + $0x20] sm:$0xff]
      %v1182 = vld [vmem:[%s2 + $0x28] sm:$0xff]
      %v1183 = vld [vmem:[%s2 + $0x30] sm:$0xff]
      %v1184 = vld [vmem:[%s2 + $0x38] sm:$0xff]
      %v1185 = vld [vmem:[%s2 + $0x40] sm:$0xff]
      %v1186 = vld [vmem:[%s2 + $0x48] sm:$0xff]
      %v1187 = vld [vmem:[%s2 + $0x50] sm:$0xff]
      %v1188 = vld [vmem:[%s2 + $0x58] sm:$0xff]
      %v1189 = vld [vmem:[%s2 + $0x60] sm:$0xff]
      %v1190 = vld [vmem:[%s2 + $0x68] sm:$0xff]
      %v1191 = vld [vmem:[%s2 + $0x70] sm:$0xff]
      %v1192 = vld [vmem:[%s2 + $0x78] sm:$0xff]
      %v1193 = vld [vmem:[%s2 + $0x80] sm:$0xff]
      %v1194 = vld [vmem:[%s2 + $0x88] sm:$0xff]
      %v1195 = vld [vmem:[%s2 + $0x90] sm:$0xff]
      %v1196 = vld [vmem:[%s2 + $0x98] sm:$0xff]
      %v1197 = vld [vmem:[%s2 + $0xa0] sm:$0xff]
      %v1198 = vld [vmem:[%s2 + $0xa8] sm:$0xff]
      %v1199 = vld [vmem:[%s2 + $0xb0] sm:$0xff]
      %v1200 = vld [vmem:[%s2 + $0xb8] sm:$0xff]
      %1202 = vset.pattern.permute.xlu0 0
      %1203 = vperm.xlu0 %1202, %v1177
      %v1204 = vpop.permute.xlu0 %1203
      %1207 = vset.pattern.permute.xlu0 0
      %1208 = vperm.xlu0 %1207, %v1178
      %v1209 = vpop.permute.xlu0 %1208
      %1212 = vset.pattern.permute.xlu0 0
      %1213 = vperm.xlu0 %1212, %v1179
      %v1214 = vpop.permute.xlu0 %1213
      %1217 = vset.pattern.permute.xlu0 0
      %1218 = vperm.xlu0 %1217, %v1180
      %v1219 = vpop.permute.xlu0 %1218
      %1222 = vset.pattern.permute.xlu0 0
      %1223 = vperm.xlu0 %1222, %v1181
      %v1224 = vpop.permute.xlu0 %1223
      %1227 = vset.pattern.permute.xlu0 0
      %1228 = vperm.xlu0 %1227, %v1182
      %v1229 = vpop.permute.xlu0 %1228
      %1232 = vset.pattern.permute.xlu0 0
      %1233 = vperm.xlu0 %1232, %v1183
      %v1234 = vpop.permute.xlu0 %1233
      %1237 = vset.pattern.permute.xlu0 0
      %1238 = vperm.xlu0 %1237, %v1184
      %v1239 = vpop.permute.xlu0 %1238
      %1242 = vset.pattern.permute.xlu0 0
      %1243 = vperm.xlu0 %1242, %v1185
      %v1244 = vpop.permute.xlu0 %1243
      %1247 = vset.pattern.permute.xlu0 0
      %1248 = vperm.xlu0 %1247, %v1186
      %v1249 = vpop.permute.xlu0 %1248
      %1252 = vset.pattern.permute.xlu0 0
      %1253 = vperm.xlu0 %1252, %v1187
      %v1254 = vpop.permute.xlu0 %1253
      %1257 = vset.pattern.permute.xlu0 0
      %1258 = vperm.xlu0 %1257, %v1188
      %v1259 = vpop.permute.xlu0 %1258
      %1262 = vset.pattern.permute.xlu0 0
      %1263 = vperm.xlu0 %1262, %v1189
      %v1264 = vpop.permute.xlu0 %1263
      %1267 = vset.pattern.permute.xlu0 0
      %1268 = vperm.xlu0 %1267, %v1190
      %v1269 = vpop.permute.xlu0 %1268
      %1272 = vset.pattern.permute.xlu0 0
      %1273 = vperm.xlu0 %1272, %v1191
      %v1274 = vpop.permute.xlu0 %1273
      %1277 = vset.pattern.permute.xlu0 0
      %1278 = vperm.xlu0 %1277, %v1192
      %v1279 = vpop.permute.xlu0 %1278
      %1282 = vset.pattern.permute.xlu0 0
      %1283 = vperm.xlu0 %1282, %v1193
      %v1284 = vpop.permute.xlu0 %1283
      %1287 = vset.pattern.permute.xlu0 0
      %1288 = vperm.xlu0 %1287, %v1194
      %v1289 = vpop.permute.xlu0 %1288
      %1292 = vset.pattern.permute.xlu0 0
      %1293 = vperm.xlu0 %1292, %v1195
      %v1294 = vpop.permute.xlu0 %1293
      %1297 = vset.pattern.permute.xlu0 0
      %1298 = vperm.xlu0 %1297, %v1196
      %v1299 = vpop.permute.xlu0 %1298
      %1302 = vset.pattern.permute.xlu0 0
      %1303 = vperm.xlu0 %1302, %v1197
      %v1304 = vpop.permute.xlu0 %1303
      %1307 = vset.pattern.permute.xlu0 0
      %1308 = vperm.xlu0 %1307, %v1198
      %v1309 = vpop.permute.xlu0 %1308
      %1312 = vset.pattern.permute.xlu0 0
      %1313 = vperm.xlu0 %1312, %v1199
      %v1314 = vpop.permute.xlu0 %1313
      %1317 = vset.pattern.permute.xlu0 0
      %1318 = vperm.xlu0 %1317, %v1200
      %v1319 = vpop.permute.xlu0 %1318
      %v1321 = vmul.f32 %v1083, %v1204
      %v1322 = vmul.f32 %v1086, %v1209
      %v1323 = vmul.f32 %v1091, %v1214
      %v1324 = vmul.f32 %v1094, %v1219
      %v1325 = vmul.f32 %v1099, %v1224
      %v1326 = vmul.f32 %v1102, %v1229
      %v1327 = vmul.f32 %v1107, %v1234
      %v1328 = vmul.f32 %v1110, %v1239
      %v1329 = vmul.f32 %v1115, %v1244
      %v1330 = vmul.f32 %v1118, %v1249
      %v1331 = vmul.f32 %v1123, %v1254
      %v1332 = vmul.f32 %v1126, %v1259
      %v1333 = vmul.f32 %v1131, %v1264
      %v1334 = vmul.f32 %v1134, %v1269
      %v1335 = vmul.f32 %v1139, %v1274
      %v1336 = vmul.f32 %v1142, %v1279
      %v1337 = vmul.f32 %v1147, %v1284
      %v1338 = vmul.f32 %v1150, %v1289
      %v1339 = vmul.f32 %v1155, %v1294
      %v1340 = vmul.f32 %v1158, %v1299
      %v1341 = vmul.f32 %v1163, %v1304
      %v1342 = vmul.f32 %v1166, %v1309
      %v1343 = vmul.f32 %v1171, %v1314
      %v1344 = vmul.f32 %v1174, %v1319
      %1345 = vset.pattern.permute.xlu0 1
      %1346 = vperm.xlu0 %1345, %v1177
      %v1347 = vpop.permute.xlu0 %1346
      %1349 = vset.pattern.permute.xlu0 1
      %1350 = vperm.xlu0 %1349, %v1178
      %v1351 = vpop.permute.xlu0 %1350
      %1353 = vset.pattern.permute.xlu0 1
      %1354 = vperm.xlu0 %1353, %v1179
      %v1355 = vpop.permute.xlu0 %1354
      %1357 = vset.pattern.permute.xlu0 1
      %1358 = vperm.xlu0 %1357, %v1180
      %v1359 = vpop.permute.xlu0 %1358
      %1361 = vset.pattern.permute.xlu0 1
      %1362 = vperm.xlu0 %1361, %v1181
      %v1363 = vpop.permute.xlu0 %1362
      %1365 = vset.pattern.permute.xlu0 1
      %1366 = vperm.xlu0 %1365, %v1182
      %v1367 = vpop.permute.xlu0 %1366
      %1369 = vset.pattern.permute.xlu0 1
      %1370 = vperm.xlu0 %1369, %v1183
      %v1371 = vpop.permute.xlu0 %1370
      %1373 = vset.pattern.permute.xlu0 1
      %1374 = vperm.xlu0 %1373, %v1184
      %v1375 = vpop.permute.xlu0 %1374
      %1377 = vset.pattern.permute.xlu0 1
      %1378 = vperm.xlu0 %1377, %v1185
      %v1379 = vpop.permute.xlu0 %1378
      %1381 = vset.pattern.permute.xlu0 1
      %1382 = vperm.xlu0 %1381, %v1186
      %v1383 = vpop.permute.xlu0 %1382
      %1385 = vset.pattern.permute.xlu0 1
      %1386 = vperm.xlu0 %1385, %v1187
      %v1387 = vpop.permute.xlu0 %1386
      %1389 = vset.pattern.permute.xlu0 1
      %1390 = vperm.xlu0 %1389, %v1188
      %v1391 = vpop.permute.xlu0 %1390
      %1393 = vset.pattern.permute.xlu0 1
      %1394 = vperm.xlu0 %1393, %v1189
      %v1395 = vpop.permute.xlu0 %1394
      %1397 = vset.pattern.permute.xlu0 1
      %1398 = vperm.xlu0 %1397, %v1190
      %v1399 = vpop.permute.xlu0 %1398
      %1401 = vset.pattern.permute.xlu0 1
      %1402 = vperm.xlu0 %1401, %v1191
      %v1403 = vpop.permute.xlu0 %1402
      %1405 = vset.pattern.permute.xlu0 1
      %1406 = vperm.xlu0 %1405, %v1192
      %v1407 = vpop.permute.xlu0 %1406
      %1409 = vset.pattern.permute.xlu0 1
      %1410 = vperm.xlu0 %1409, %v1193
      %v1411 = vpop.permute.xlu0 %1410
      %1413 = vset.pattern.permute.xlu0 1
      %1414 = vperm.xlu0 %1413, %v1194
      %v1415 = vpop.permute.xlu0 %1414
      %1417 = vset.pattern.permute.xlu0 1
      %1418 = vperm.xlu0 %1417, %v1195
      %v1419 = vpop.permute.xlu0 %1418
      %1421 = vset.pattern.permute.xlu0 1
      %1422 = vperm.xlu0 %1421, %v1196
      %v1423 = vpop.permute.xlu0 %1422
      %1425 = vset.pattern.permute.xlu0 1
      %1426 = vperm.xlu0 %1425, %v1197
      %v1427 = vpop.permute.xlu0 %1426
      %1429 = vset.pattern.permute.xlu0 1
      %1430 = vperm.xlu0 %1429, %v1198
      %v1431 = vpop.permute.xlu0 %1430
      %1433 = vset.pattern.permute.xlu0 1
      %1434 = vperm.xlu0 %1433, %v1199
      %v1435 = vpop.permute.xlu0 %1434
      %1437 = vset.pattern.permute.xlu0 1
      %1438 = vperm.xlu0 %1437, %v1200
      %v1439 = vpop.permute.xlu0 %1438
      %v1441 = vmul.f32 %v1083, %v1347
      %v1442 = vmul.f32 %v1086, %v1351
      %v1443 = vmul.f32 %v1091, %v1355
      %v1444 = vmul.f32 %v1094, %v1359
      %v1445 = vmul.f32 %v1099, %v1363
      %v1446 = vmul.f32 %v1102, %v1367
      %v1447 = vmul.f32 %v1107, %v1371
      %v1448 = vmul.f32 %v1110, %v1375
      %v1449 = vmul.f32 %v1115, %v1379
      %v1450 = vmul.f32 %v1118, %v1383
      %v1451 = vmul.f32 %v1123, %v1387
      %v1452 = vmul.f32 %v1126, %v1391
      %v1453 = vmul.f32 %v1131, %v1395
      %v1454 = vmul.f32 %v1134, %v1399
      %v1455 = vmul.f32 %v1139, %v1403
      %v1456 = vmul.f32 %v1142, %v1407
      %v1457 = vmul.f32 %v1147, %v1411
      %v1458 = vmul.f32 %v1150, %v1415
      %v1459 = vmul.f32 %v1155, %v1419
      %v1460 = vmul.f32 %v1158, %v1423
      %v1461 = vmul.f32 %v1163, %v1427
      %v1462 = vmul.f32 %v1166, %v1431
      %v1463 = vmul.f32 %v1171, %v1435
      %v1464 = vmul.f32 %v1174, %v1439
      %1465 = vset.pattern.permute.xlu0 2
      %1466 = vperm.xlu0 %1465, %v1177
      %v1467 = vpop.permute.xlu0 %1466
      %1469 = vset.pattern.permute.xlu0 2
      %1470 = vperm.xlu0 %1469, %v1178
      %v1471 = vpop.permute.xlu0 %1470
      %1473 = vset.pattern.permute.xlu0 2
      %1474 = vperm.xlu0 %1473, %v1179
      %v1475 = vpop.permute.xlu0 %1474
      %1477 = vset.pattern.permute.xlu0 2
      %1478 = vperm.xlu0 %1477, %v1180
      %v1479 = vpop.permute.xlu0 %1478
      %1481 = vset.pattern.permute.xlu0 2
      %1482 = vperm.xlu0 %1481, %v1181
      %v1483 = vpop.permute.xlu0 %1482
      %1485 = vset.pattern.permute.xlu0 2
      %1486 = vperm.xlu0 %1485, %v1182
      %v1487 = vpop.permute.xlu0 %1486
      %1489 = vset.pattern.permute.xlu0 2
      %1490 = vperm.xlu0 %1489, %v1183
      %v1491 = vpop.permute.xlu0 %1490
      %1493 = vset.pattern.permute.xlu0 2
      %1494 = vperm.xlu0 %1493, %v1184
      %v1495 = vpop.permute.xlu0 %1494
      %1497 = vset.pattern.permute.xlu0 2
      %1498 = vperm.xlu0 %1497, %v1185
      %v1499 = vpop.permute.xlu0 %1498
      %1501 = vset.pattern.permute.xlu0 2
      %1502 = vperm.xlu0 %1501, %v1186
      %v1503 = vpop.permute.xlu0 %1502
      %1505 = vset.pattern.permute.xlu0 2
      %1506 = vperm.xlu0 %1505, %v1187
      %v1507 = vpop.permute.xlu0 %1506
      %1509 = vset.pattern.permute.xlu0 2
      %1510 = vperm.xlu0 %1509, %v1188
      %v1511 = vpop.permute.xlu0 %1510
      %1513 = vset.pattern.permute.xlu0 2
      %1514 = vperm.xlu0 %1513, %v1189
      %v1515 = vpop.permute.xlu0 %1514
      %1517 = vset.pattern.permute.xlu0 2
      %1518 = vperm.xlu0 %1517, %v1190
      %v1519 = vpop.permute.xlu0 %1518
      %1521 = vset.pattern.permute.xlu0 2
      %1522 = vperm.xlu0 %1521, %v1191
      %v1523 = vpop.permute.xlu0 %1522
      %1525 = vset.pattern.permute.xlu0 2
      %1526 = vperm.xlu0 %1525, %v1192
      %v1527 = vpop.permute.xlu0 %1526
      %1529 = vset.pattern.permute.xlu0 2
      %1530 = vperm.xlu0 %1529, %v1193
      %v1531 = vpop.permute.xlu0 %1530
      %1533 = vset.pattern.permute.xlu0 2
      %1534 = vperm.xlu0 %1533, %v1194
      %v1535 = vpop.permute.xlu0 %1534
      %1537 = vset.pattern.permute.xlu0 2
      %1538 = vperm.xlu0 %1537, %v1195
      %v1539 = vpop.permute.xlu0 %1538
      %1541 = vset.pattern.permute.xlu0 2
      %1542 = vperm.xlu0 %1541, %v1196
      %v1543 = vpop.permute.xlu0 %1542
      %1545 = vset.pattern.permute.xlu0 2
      %1546 = vperm.xlu0 %1545, %v1197
      %v1547 = vpop.permute.xlu0 %1546
      %1549 = vset.pattern.permute.xlu0 2
      %1550 = vperm.xlu0 %1549, %v1198
      %v1551 = vpop.permute.xlu0 %1550
      %1553 = vset.pattern.permute.xlu0 2
      %1554 = vperm.xlu0 %1553, %v1199
      %v1555 = vpop.permute.xlu0 %1554
      %1557 = vset.pattern.permute.xlu0 2
      %1558 = vperm.xlu0 %1557, %v1200
      %v1559 = vpop.permute.xlu0 %1558
      %v1561 = vmul.f32 %v1083, %v1467
      %v1562 = vmul.f32 %v1086, %v1471
      %v1563 = vmul.f32 %v1091, %v1475
      %v1564 = vmul.f32 %v1094, %v1479
      %v1565 = vmul.f32 %v1099, %v1483
      %v1566 = vmul.f32 %v1102, %v1487
      %v1567 = vmul.f32 %v1107, %v1491
      %v1568 = vmul.f32 %v1110, %v1495
      %v1569 = vmul.f32 %v1115, %v1499
      %v1570 = vmul.f32 %v1118, %v1503
      %v1571 = vmul.f32 %v1123, %v1507
      %v1572 = vmul.f32 %v1126, %v1511
      %v1573 = vmul.f32 %v1131, %v1515
      %v1574 = vmul.f32 %v1134, %v1519
      %v1575 = vmul.f32 %v1139, %v1523
      %v1576 = vmul.f32 %v1142, %v1527
      %v1577 = vmul.f32 %v1147, %v1531
      %v1578 = vmul.f32 %v1150, %v1535
      %v1579 = vmul.f32 %v1155, %v1539
      %v1580 = vmul.f32 %v1158, %v1543
      %v1581 = vmul.f32 %v1163, %v1547
      %v1582 = vmul.f32 %v1166, %v1551
      %v1583 = vmul.f32 %v1171, %v1555
      %v1584 = vmul.f32 %v1174, %v1559
      %vm1585 = vcmask 113664
      %1586 = vst.msk [vmem:[#allocation2] sm:$0xff] %vm1585, 0.0
      %1587 = vst.msk [vmem:[#allocation2 + $0x8] sm:$0xff] %vm1585, 0.0
      %1588 = vst.msk [vmem:[#allocation2 + $0xe0] sm:$0xff] %vm1585, 0.0
      %1589 = vst.msk [vmem:[#allocation2 + $0xe8] sm:$0xff] %vm1585, 0.0
      %1590 = vst.msk [vmem:[#allocation2 + $0x1c0] sm:$0xff] %vm1585, 0.0
      %1591 = vst.msk [vmem:[#allocation2 + $0x1c8] sm:$0xff] %vm1585, 0.0
      %1592 = vst.msk [vmem:[#allocation2 + $0xd0] sm:$0xff] %vm1585, 0.0
      %1593 = vst.msk [vmem:[#allocation2 + $0xd8] sm:$0xff] %vm1585, 0.0
      %1594 = vst.msk [vmem:[#allocation2 + $0x1b0] sm:$0xff] %vm1585, 0.0
      %1595 = vst.msk [vmem:[#allocation2 + $0x1b8] sm:$0xff] %vm1585, 0.0
      %1596 = vst.msk [vmem:[#allocation2 + $0x290] sm:$0xff] %vm1585, 0.0
      %1597 = vst.msk [vmem:[#allocation2 + $0x298] sm:$0xff] %vm1585, 0.0
      %1622 = vrot.lane.b32.xlu0 %v1321, 126
      %v1623 = vpop.permute.xlu0 %1622
      %1624 = vrot.lane.b32.xlu0 %v1322, 126
      %v1625 = vpop.permute.xlu0 %1624
      %1626 = vrot.lane.b32.xlu0 %v1323, 126
      %v1627 = vpop.permute.xlu0 %1626
      %1628 = vrot.lane.b32.xlu0 %v1324, 126
      %v1629 = vpop.permute.xlu0 %1628
      %1630 = vrot.lane.b32.xlu0 %v1325, 126
      %v1631 = vpop.permute.xlu0 %1630
      %1632 = vrot.lane.b32.xlu0 %v1326, 126
      %v1633 = vpop.permute.xlu0 %1632
      %1634 = vrot.lane.b32.xlu0 %v1327, 126
      %v1635 = vpop.permute.xlu0 %1634
      %1636 = vrot.lane.b32.xlu0 %v1328, 126
      %v1637 = vpop.permute.xlu0 %1636
      %1638 = vrot.lane.b32.xlu0 %v1329, 126
      %v1639 = vpop.permute.xlu0 %1638
      %1640 = vrot.lane.b32.xlu0 %v1330, 126
      %v1641 = vpop.permute.xlu0 %1640
      %1642 = vrot.lane.b32.xlu0 %v1331, 126
      %v1643 = vpop.permute.xlu0 %1642
      %1644 = vrot.lane.b32.xlu0 %v1332, 126
      %v1645 = vpop.permute.xlu0 %1644
      %1646 = vrot.lane.b32.xlu0 %v1333, 126
      %v1647 = vpop.permute.xlu0 %1646
      %1648 = vrot.lane.b32.xlu0 %v1334, 126
      %v1649 = vpop.permute.xlu0 %1648
      %1650 = vrot.lane.b32.xlu0 %v1335, 126
      %v1651 = vpop.permute.xlu0 %1650
      %1652 = vrot.lane.b32.xlu0 %v1336, 126
      %v1653 = vpop.permute.xlu0 %1652
      %1654 = vrot.lane.b32.xlu0 %v1337, 126
      %v1655 = vpop.permute.xlu0 %1654
      %1656 = vrot.lane.b32.xlu0 %v1338, 126
      %v1657 = vpop.permute.xlu0 %1656
      %1658 = vrot.lane.b32.xlu0 %v1339, 126
      %v1659 = vpop.permute.xlu0 %1658
      %1660 = vrot.lane.b32.xlu0 %v1340, 126
      %v1661 = vpop.permute.xlu0 %1660
      %1662 = vrot.lane.b32.xlu0 %v1341, 126
      %v1663 = vpop.permute.xlu0 %1662
      %1664 = vrot.lane.b32.xlu0 %v1342, 126
      %v1665 = vpop.permute.xlu0 %1664
      %1666 = vrot.lane.b32.xlu0 %v1343, 126
      %v1667 = vpop.permute.xlu0 %1666
      %1668 = vrot.lane.b32.xlu0 %v1344, 126
      %v1669 = vpop.permute.xlu0 %1668
      %1694 = vst.msk [vmem:[#allocation2 + $0x10] sm:$0xff] %vm1585, %v1623
      %1695 = vst.msk [vmem:[#allocation2 + $0x18] sm:$0xff] %vm1585, %v1625
      %1696 = vst.msk [vmem:[#allocation2 + $0x20] sm:$0xff] %vm1585, %v1627
      %1697 = vst.msk [vmem:[#allocation2 + $0x28] sm:$0xff] %vm1585, %v1629
      %1698 = vst.msk [vmem:[#allocation2 + $0x30] sm:$0xff] %vm1585, %v1631
      %1699 = vst.msk [vmem:[#allocation2 + $0x38] sm:$0xff] %vm1585, %v1633
      %1700 = vst.msk [vmem:[#allocation2 + $0x40] sm:$0xff] %vm1585, %v1635
      %1701 = vst.msk [vmem:[#allocation2 + $0x48] sm:$0xff] %vm1585, %v1637
      %1702 = vst.msk [vmem:[#allocation2 + $0x50] sm:$0xff] %vm1585, %v1639
      %1703 = vst.msk [vmem:[#allocation2 + $0x58] sm:$0xff] %vm1585, %v1641
      %1704 = vst.msk [vmem:[#allocation2 + $0x60] sm:$0xff] %vm1585, %v1643
      %1705 = vst.msk [vmem:[#allocation2 + $0x68] sm:$0xff] %vm1585, %v1645
      %1706 = vst.msk [vmem:[#allocation2 + $0x70] sm:$0xff] %vm1585, %v1647
      %1707 = vst.msk [vmem:[#allocation2 + $0x78] sm:$0xff] %vm1585, %v1649
      %1708 = vst.msk [vmem:[#allocation2 + $0x80] sm:$0xff] %vm1585, %v1651
      %1709 = vst.msk [vmem:[#allocation2 + $0x88] sm:$0xff] %vm1585, %v1653
      %1710 = vst.msk [vmem:[#allocation2 + $0x90] sm:$0xff] %vm1585, %v1655
      %1711 = vst.msk [vmem:[#allocation2 + $0x98] sm:$0xff] %vm1585, %v1657
      %1712 = vst.msk [vmem:[#allocation2 + $0xa0] sm:$0xff] %vm1585, %v1659
      %1713 = vst.msk [vmem:[#allocation2 + $0xa8] sm:$0xff] %vm1585, %v1661
      %1714 = vst.msk [vmem:[#allocation2 + $0xb0] sm:$0xff] %vm1585, %v1663
      %1715 = vst.msk [vmem:[#allocation2 + $0xb8] sm:$0xff] %vm1585, %v1665
      %1716 = vst.msk [vmem:[#allocation2 + $0xc0] sm:$0xff] %vm1585, %v1667
      %1717 = vst.msk [vmem:[#allocation2 + $0xc8] sm:$0xff] %vm1585, %v1669
      %1742 = vrot.lane.b32.xlu0 %v1441, 126
      %v1743 = vpop.permute.xlu0 %1742
      %1744 = vrot.lane.b32.xlu0 %v1442, 126
      %v1745 = vpop.permute.xlu0 %1744
      %1746 = vrot.lane.b32.xlu0 %v1443, 126
      %v1747 = vpop.permute.xlu0 %1746
      %1748 = vrot.lane.b32.xlu0 %v1444, 126
      %v1749 = vpop.permute.xlu0 %1748
      %1750 = vrot.lane.b32.xlu0 %v1445, 126
      %v1751 = vpop.permute.xlu0 %1750
      %1752 = vrot.lane.b32.xlu0 %v1446, 126
      %v1753 = vpop.permute.xlu0 %1752
      %1754 = vrot.lane.b32.xlu0 %v1447, 126
      %v1755 = vpop.permute.xlu0 %1754
      %1756 = vrot.lane.b32.xlu0 %v1448, 126
      %v1757 = vpop.permute.xlu0 %1756
      %1758 = vrot.lane.b32.xlu0 %v1449, 126
      %v1759 = vpop.permute.xlu0 %1758
      %1760 = vrot.lane.b32.xlu0 %v1450, 126
      %v1761 = vpop.permute.xlu0 %1760
      %1762 = vrot.lane.b32.xlu0 %v1451, 126
      %v1763 = vpop.permute.xlu0 %1762
      %1764 = vrot.lane.b32.xlu0 %v1452, 126
      %v1765 = vpop.permute.xlu0 %1764
      %1766 = vrot.lane.b32.xlu0 %v1453, 126
      %v1767 = vpop.permute.xlu0 %1766
      %1768 = vrot.lane.b32.xlu0 %v1454, 126
      %v1769 = vpop.permute.xlu0 %1768
      %1770 = vrot.lane.b32.xlu0 %v1455, 126
      %v1771 = vpop.permute.xlu0 %1770
      %1772 = vrot.lane.b32.xlu0 %v1456, 126
      %v1773 = vpop.permute.xlu0 %1772
      %1774 = vrot.lane.b32.xlu0 %v1457, 126
      %v1775 = vpop.permute.xlu0 %1774
      %1776 = vrot.lane.b32.xlu0 %v1458, 126
      %v1777 = vpop.permute.xlu0 %1776
      %1778 = vrot.lane.b32.xlu0 %v1459, 126
      %v1779 = vpop.permute.xlu0 %1778
      %1780 = vrot.lane.b32.xlu0 %v1460, 126
      %v1781 = vpop.permute.xlu0 %1780
      %1782 = vrot.lane.b32.xlu0 %v1461, 126
      %v1783 = vpop.permute.xlu0 %1782
      %1784 = vrot.lane.b32.xlu0 %v1462, 126
      %v1785 = vpop.permute.xlu0 %1784
      %1786 = vrot.lane.b32.xlu0 %v1463, 126
      %v1787 = vpop.permute.xlu0 %1786
      %1788 = vrot.lane.b32.xlu0 %v1464, 126
      %v1789 = vpop.permute.xlu0 %1788
      %s1814 = scalar_lea.vmem [#allocation2], 224
      %1815 = vst.msk [vmem:[%s1814 + $0x10] sm:$0xff] %vm1585, %v1743
      %1816 = vst.msk [vmem:[%s1814 + $0x18] sm:$0xff] %vm1585, %v1745
      %1817 = vst.msk [vmem:[%s1814 + $0x20] sm:$0xff] %vm1585, %v1747
      %1818 = vst.msk [vmem:[%s1814 + $0x28] sm:$0xff] %vm1585, %v1749
      %1819 = vst.msk [vmem:[%s1814 + $0x30] sm:$0xff] %vm1585, %v1751
      %1820 = vst.msk [vmem:[%s1814 + $0x38] sm:$0xff] %vm1585, %v1753
      %1821 = vst.msk [vmem:[%s1814 + $0x40] sm:$0xff] %vm1585, %v1755
      %1822 = vst.msk [vmem:[%s1814 + $0x48] sm:$0xff] %vm1585, %v1757
      %1823 = vst.msk [vmem:[%s1814 + $0x50] sm:$0xff] %vm1585, %v1759
      %1824 = vst.msk [vmem:[%s1814 + $0x58] sm:$0xff] %vm1585, %v1761
      %1825 = vst.msk [vmem:[%s1814 + $0x60] sm:$0xff] %vm1585, %v1763
      %1826 = vst.msk [vmem:[%s1814 + $0x68] sm:$0xff] %vm1585, %v1765
      %1827 = vst.msk [vmem:[%s1814 + $0x70] sm:$0xff] %vm1585, %v1767
      %1828 = vst.msk [vmem:[%s1814 + $0x78] sm:$0xff] %vm1585, %v1769
      %1829 = vst.msk [vmem:[%s1814 + $0x80] sm:$0xff] %vm1585, %v1771
      %1830 = vst.msk [vmem:[%s1814 + $0x88] sm:$0xff] %vm1585, %v1773
      %1831 = vst.msk [vmem:[%s1814 + $0x90] sm:$0xff] %vm1585, %v1775
      %1832 = vst.msk [vmem:[%s1814 + $0x98] sm:$0xff] %vm1585, %v1777
      %1833 = vst.msk [vmem:[%s1814 + $0xa0] sm:$0xff] %vm1585, %v1779
      %1834 = vst.msk [vmem:[%s1814 + $0xa8] sm:$0xff] %vm1585, %v1781
      %1835 = vst.msk [vmem:[%s1814 + $0xb0] sm:$0xff] %vm1585, %v1783
      %1836 = vst.msk [vmem:[%s1814 + $0xb8] sm:$0xff] %vm1585, %v1785
      %1837 = vst.msk [vmem:[%s1814 + $0xc0] sm:$0xff] %vm1585, %v1787
      %1838 = vst.msk [vmem:[%s1814 + $0xc8] sm:$0xff] %vm1585, %v1789
      %1863 = vrot.lane.b32.xlu0 %v1561, 126
      %v1864 = vpop.permute.xlu0 %1863
      %1865 = vrot.lane.b32.xlu0 %v1562, 126
      %v1866 = vpop.permute.xlu0 %1865
      %1867 = vrot.lane.b32.xlu0 %v1563, 126
      %v1868 = vpop.permute.xlu0 %1867
      %1869 = vrot.lane.b32.xlu0 %v1564, 126
      %v1870 = vpop.permute.xlu0 %1869
      %1871 = vrot.lane.b32.xlu0 %v1565, 126
      %v1872 = vpop.permute.xlu0 %1871
      %1873 = vrot.lane.b32.xlu0 %v1566, 126
      %v1874 = vpop.permute.xlu0 %1873
      %1875 = vrot.lane.b32.xlu0 %v1567, 126
      %v1876 = vpop.permute.xlu0 %1875
      %1877 = vrot.lane.b32.xlu0 %v1568, 126
      %v1878 = vpop.permute.xlu0 %1877
      %1879 = vrot.lane.b32.xlu0 %v1569, 126
      %v1880 = vpop.permute.xlu0 %1879
      %1881 = vrot.lane.b32.xlu0 %v1570, 126
      %v1882 = vpop.permute.xlu0 %1881
      %1883 = vrot.lane.b32.xlu0 %v1571, 126
      %v1884 = vpop.permute.xlu0 %1883
      %1885 = vrot.lane.b32.xlu0 %v1572, 126
      %v1886 = vpop.permute.xlu0 %1885
      %1887 = vrot.lane.b32.xlu0 %v1573, 126
      %v1888 = vpop.permute.xlu0 %1887
      %1889 = vrot.lane.b32.xlu0 %v1574, 126
      %v1890 = vpop.permute.xlu0 %1889
      %1891 = vrot.lane.b32.xlu0 %v1575, 126
      %v1892 = vpop.permute.xlu0 %1891
      %1893 = vrot.lane.b32.xlu0 %v1576, 126
      %v1894 = vpop.permute.xlu0 %1893
      %1895 = vrot.lane.b32.xlu0 %v1577, 126
      %v1896 = vpop.permute.xlu0 %1895
      %1897 = vrot.lane.b32.xlu0 %v1578, 126
      %v1898 = vpop.permute.xlu0 %1897
      %1899 = vrot.lane.b32.xlu0 %v1579, 126
      %v1900 = vpop.permute.xlu0 %1899
      %1901 = vrot.lane.b32.xlu0 %v1580, 126
      %v1902 = vpop.permute.xlu0 %1901
      %1903 = vrot.lane.b32.xlu0 %v1581, 126
      %v1904 = vpop.permute.xlu0 %1903
      %1905 = vrot.lane.b32.xlu0 %v1582, 126
      %v1906 = vpop.permute.xlu0 %1905
      %1907 = vrot.lane.b32.xlu0 %v1583, 126
      %v1908 = vpop.permute.xlu0 %1907
      %1909 = vrot.lane.b32.xlu0 %v1584, 126
      %v1910 = vpop.permute.xlu0 %1909
      %s1935 = scalar_lea.vmem [#allocation2], 448
      %1936 = vst.msk [vmem:[%s1935 + $0x10] sm:$0xff] %vm1585, %v1864
      %1937 = vst.msk [vmem:[%s1935 + $0x18] sm:$0xff] %vm1585, %v1866
      %1938 = vst.msk [vmem:[%s1935 + $0x20] sm:$0xff] %vm1585, %v1868
      %1939 = vst.msk [vmem:[%s1935 + $0x28] sm:$0xff] %vm1585, %v1870
      %1940 = vst.msk [vmem:[%s1935 + $0x30] sm:$0xff] %vm1585, %v1872
      %1941 = vst.msk [vmem:[%s1935 + $0x38] sm:$0xff] %vm1585, %v1874
      %1942 = vst.msk [vmem:[%s1935 + $0x40] sm:$0xff] %vm1585, %v1876
      %1943 = vst.msk [vmem:[%s1935 + $0x48] sm:$0xff] %vm1585, %v1878
      %1944 = vst.msk [vmem:[%s1935 + $0x50] sm:$0xff] %vm1585, %v1880
      %1945 = vst.msk [vmem:[%s1935 + $0x58] sm:$0xff] %vm1585, %v1882
      %1946 = vst.msk [vmem:[%s1935 + $0x60] sm:$0xff] %vm1585, %v1884
      %1947 = vst.msk [vmem:[%s1935 + $0x68] sm:$0xff] %vm1585, %v1886
      %1948 = vst.msk [vmem:[%s1935 + $0x70] sm:$0xff] %vm1585, %v1888
      %1949 = vst.msk [vmem:[%s1935 + $0x78] sm:$0xff] %vm1585, %v1890
      %1950 = vst.msk [vmem:[%s1935 + $0x80] sm:$0xff] %vm1585, %v1892
      %1951 = vst.msk [vmem:[%s1935 + $0x88] sm:$0xff] %vm1585, %v1894
      %1952 = vst.msk [vmem:[%s1935 + $0x90] sm:$0xff] %vm1585, %v1896
      %1953 = vst.msk [vmem:[%s1935 + $0x98] sm:$0xff] %vm1585, %v1898
      %1954 = vst.msk [vmem:[%s1935 + $0xa0] sm:$0xff] %vm1585, %v1900
      %1955 = vst.msk [vmem:[%s1935 + $0xa8] sm:$0xff] %vm1585, %v1902
      %1956 = vst.msk [vmem:[%s1935 + $0xb0] sm:$0xff] %vm1585, %v1904
      %1957 = vst.msk [vmem:[%s1935 + $0xb8] sm:$0xff] %vm1585, %v1906
      %1958 = vst.msk [vmem:[%s1935 + $0xc0] sm:$0xff] %vm1585, %v1908
      %1959 = vst.msk [vmem:[%s1935 + $0xc8] sm:$0xff] %vm1585, %v1910
      %v1960 = vld [vmem:[%s6] sm:$0xff]
      %v1961 = vld [vmem:[%s6 + $0x8] sm:$0x3]
      %v1962 = vlaneseq
      %v1963 = vshrl.u32 %v1962, 7
      %v1964 = vsub.s32 4, %v1963
      %v1965 = vrot.slane %v1960, %v1964
      %1967 = vrot.lane.b32.xlu0 %v1965, 2
      %v1968 = vpop.permute.xlu0 %1967
      %v1970 = vmul.f32 %v1321, %v1968
      %v1971 = vmul.f32 %v1322, %v1968
      %v1972 = vmul.f32 %v1323, %v1968
      %v1973 = vmul.f32 %v1324, %v1968
      %v1974 = vmul.f32 %v1325, %v1968
      %v1975 = vmul.f32 %v1326, %v1968
      %v1976 = vmul.f32 %v1327, %v1968
      %v1977 = vmul.f32 %v1328, %v1968
      %v1978 = vmul.f32 %v1329, %v1968
      %v1979 = vmul.f32 %v1330, %v1968
      %v1980 = vmul.f32 %v1331, %v1968
      %v1981 = vmul.f32 %v1332, %v1968
      %v1982 = vmul.f32 %v1333, %v1968
      %v1983 = vmul.f32 %v1334, %v1968
      %v1984 = vmul.f32 %v1335, %v1968
      %v1985 = vmul.f32 %v1336, %v1968
      %v1986 = vmul.f32 %v1337, %v1968
      %v1987 = vmul.f32 %v1338, %v1968
      %v1988 = vmul.f32 %v1339, %v1968
      %v1989 = vmul.f32 %v1340, %v1968
      %v1990 = vmul.f32 %v1341, %v1968
      %v1991 = vmul.f32 %v1342, %v1968
      %v1992 = vmul.f32 %v1343, %v1968
      %v1993 = vmul.f32 %v1344, %v1968
      %v1994 = vld [vmem:[%s1814 + $0x6] sm:$0xff]
      %v1995 = vld [vmem:[%s1814 + $0xe] sm:$0xff]
      %v1996 = vld [vmem:[%s1814 + $0x16] sm:$0xff]
      %v1997 = vld [vmem:[%s1814 + $0x1e] sm:$0xff]
      %v1998 = vld [vmem:[%s1814 + $0x26] sm:$0xff]
      %v1999 = vld [vmem:[%s1814 + $0x2e] sm:$0xff]
      %v2000 = vld [vmem:[%s1814 + $0x36] sm:$0xff]
      %v2001 = vld [vmem:[%s1814 + $0x3e] sm:$0xff]
      %v2002 = vld [vmem:[%s1814 + $0x46] sm:$0xff]
      %v2003 = vld [vmem:[%s1814 + $0x4e] sm:$0xff]
      %v2004 = vld [vmem:[%s1814 + $0x56] sm:$0xff]
      %v2005 = vld [vmem:[%s1814 + $0x5e] sm:$0xff]
      %v2006 = vld [vmem:[%s1814 + $0x66] sm:$0xff]
      %v2007 = vld [vmem:[%s1814 + $0x6e] sm:$0xff]
      %v2008 = vld [vmem:[%s1814 + $0x76] sm:$0xff]
      %v2009 = vld [vmem:[%s1814 + $0x7e] sm:$0xff]
      %v2010 = vld [vmem:[%s1814 + $0x86] sm:$0xff]
      %v2011 = vld [vmem:[%s1814 + $0x8e] sm:$0xff]
      %v2012 = vld [vmem:[%s1814 + $0x96] sm:$0xff]
      %v2013 = vld [vmem:[%s1814 + $0x9e] sm:$0xff]
      %v2014 = vld [vmem:[%s1814 + $0xa6] sm:$0xff]
      %v2015 = vld [vmem:[%s1814 + $0xae] sm:$0xff]
      %v2016 = vld [vmem:[%s1814 + $0xb6] sm:$0xff]
      %v2017 = vld [vmem:[%s1814 + $0xbe] sm:$0xff]
      %v2018 = vlaneseq
      %v2019 = vshrl.u32 %v2018, 7
      %v2020 = vsub.s32 0, %v2019
      %v2021 = vrot.slane %v1960, %v2020
      %v2022 = vmul.f32 %v1994, %v2021
      %v2023 = vmul.f32 %v1995, %v2021
      %v2024 = vmul.f32 %v1996, %v2021
      %v2025 = vmul.f32 %v1997, %v2021
      %v2026 = vmul.f32 %v1998, %v2021
      %v2027 = vmul.f32 %v1999, %v2021
      %v2028 = vmul.f32 %v2000, %v2021
      %v2029 = vmul.f32 %v2001, %v2021
      %v2030 = vmul.f32 %v2002, %v2021
      %v2031 = vmul.f32 %v2003, %v2021
      %v2032 = vmul.f32 %v2004, %v2021
      %v2033 = vmul.f32 %v2005, %v2021
      %v2034 = vmul.f32 %v2006, %v2021
      %v2035 = vmul.f32 %v2007, %v2021
      %v2036 = vmul.f32 %v2008, %v2021
      %v2037 = vmul.f32 %v2009, %v2021
      %v2038 = vmul.f32 %v2010, %v2021
      %v2039 = vmul.f32 %v2011, %v2021
      %v2040 = vmul.f32 %v2012, %v2021
      %v2041 = vmul.f32 %v2013, %v2021
      %v2042 = vmul.f32 %v2014, %v2021
      %v2043 = vmul.f32 %v2015, %v2021
      %v2044 = vmul.f32 %v2016, %v2021
      %v2045 = vmul.f32 %v2017, %v2021
      %2070 = vrot.lane.b32.xlu0 %v2022, 2
      %v2071 = vpop.permute.xlu0 %2070
      %2072 = vrot.lane.b32.xlu0 %v2023, 2
      %v2073 = vpop.permute.xlu0 %2072
      %2074 = vrot.lane.b32.xlu0 %v2024, 2
      %v2075 = vpop.permute.xlu0 %2074
      %2076 = vrot.lane.b32.xlu0 %v2025, 2
      %v2077 = vpop.permute.xlu0 %2076
      %2078 = vrot.lane.b32.xlu0 %v2026, 2
      %v2079 = vpop.permute.xlu0 %2078
      %2080 = vrot.lane.b32.xlu0 %v2027, 2
      %v2081 = vpop.permute.xlu0 %2080
      %2082 = vrot.lane.b32.xlu0 %v2028, 2
      %v2083 = vpop.permute.xlu0 %2082
      %2084 = vrot.lane.b32.xlu0 %v2029, 2
      %v2085 = vpop.permute.xlu0 %2084
      %2086 = vrot.lane.b32.xlu0 %v2030, 2
      %v2087 = vpop.permute.xlu0 %2086
      %2088 = vrot.lane.b32.xlu0 %v2031, 2
      %v2089 = vpop.permute.xlu0 %2088
      %2090 = vrot.lane.b32.xlu0 %v2032, 2
      %v2091 = vpop.permute.xlu0 %2090
      %2092 = vrot.lane.b32.xlu0 %v2033, 2
      %v2093 = vpop.permute.xlu0 %2092
      %2094 = vrot.lane.b32.xlu0 %v2034, 2
      %v2095 = vpop.permute.xlu0 %2094
      %2096 = vrot.lane.b32.xlu0 %v2035, 2
      %v2097 = vpop.permute.xlu0 %2096
      %2098 = vrot.lane.b32.xlu0 %v2036, 2
      %v2099 = vpop.permute.xlu0 %2098
      %2100 = vrot.lane.b32.xlu0 %v2037, 2
      %v2101 = vpop.permute.xlu0 %2100
      %2102 = vrot.lane.b32.xlu0 %v2038, 2
      %v2103 = vpop.permute.xlu0 %2102
      %2104 = vrot.lane.b32.xlu0 %v2039, 2
      %v2105 = vpop.permute.xlu0 %2104
      %2106 = vrot.lane.b32.xlu0 %v2040, 2
      %v2107 = vpop.permute.xlu0 %2106
      %2108 = vrot.lane.b32.xlu0 %v2041, 2
      %v2109 = vpop.permute.xlu0 %2108
      %2110 = vrot.lane.b32.xlu0 %v2042, 2
      %v2111 = vpop.permute.xlu0 %2110
      %2112 = vrot.lane.b32.xlu0 %v2043, 2
      %v2113 = vpop.permute.xlu0 %2112
      %2114 = vrot.lane.b32.xlu0 %v2044, 2
      %v2115 = vpop.permute.xlu0 %2114
      %2116 = vrot.lane.b32.xlu0 %v2045, 2
      %v2117 = vpop.permute.xlu0 %2116
      %v2142 = vadd.f32 %v1970, %v2071
      %v2143 = vadd.f32 %v1971, %v2073
      %v2144 = vadd.f32 %v1972, %v2075
      %v2145 = vadd.f32 %v1973, %v2077
      %v2146 = vadd.f32 %v1974, %v2079
      %v2147 = vadd.f32 %v1975, %v2081
      %v2148 = vadd.f32 %v1976, %v2083
      %v2149 = vadd.f32 %v1977, %v2085
      %v2150 = vadd.f32 %v1978, %v2087
      %v2151 = vadd.f32 %v1979, %v2089
      %v2152 = vadd.f32 %v1980, %v2091
      %v2153 = vadd.f32 %v1981, %v2093
      %v2154 = vadd.f32 %v1982, %v2095
      %v2155 = vadd.f32 %v1983, %v2097
      %v2156 = vadd.f32 %v1984, %v2099
      %v2157 = vadd.f32 %v1985, %v2101
      %v2158 = vadd.f32 %v1986, %v2103
      %v2159 = vadd.f32 %v1987, %v2105
      %v2160 = vadd.f32 %v1988, %v2107
      %v2161 = vadd.f32 %v1989, %v2109
      %v2162 = vadd.f32 %v1990, %v2111
      %v2163 = vadd.f32 %v1991, %v2113
      %v2164 = vadd.f32 %v1992, %v2115
      %v2165 = vadd.f32 %v1993, %v2117
      %v2166 = vld [vmem:[#allocation2 + $0x7] sm:$0xff]
      %v2167 = vld [vmem:[#allocation2 + $0xf] sm:$0xff]
      %v2168 = vld [vmem:[#allocation2 + $0x17] sm:$0xff]
      %v2169 = vld [vmem:[#allocation2 + $0x1f] sm:$0xff]
      %v2170 = vld [vmem:[#allocation2 + $0x27] sm:$0xff]
      %v2171 = vld [vmem:[#allocation2 + $0x2f] sm:$0xff]
      %v2172 = vld [vmem:[#allocation2 + $0x37] sm:$0xff]
      %v2173 = vld [vmem:[#allocation2 + $0x3f] sm:$0xff]
      %v2174 = vld [vmem:[#allocation2 + $0x47] sm:$0xff]
      %v2175 = vld [vmem:[#allocation2 + $0x4f] sm:$0xff]
      %v2176 = vld [vmem:[#allocation2 + $0x57] sm:$0xff]
      %v2177 = vld [vmem:[#allocation2 + $0x5f] sm:$0xff]
      %v2178 = vld [vmem:[#allocation2 + $0x67] sm:$0xff]
      %v2179 = vld [vmem:[#allocation2 + $0x6f] sm:$0xff]
      %v2180 = vld [vmem:[#allocation2 + $0x77] sm:$0xff]
      %v2181 = vld [vmem:[#allocation2 + $0x7f] sm:$0xff]
      %v2182 = vld [vmem:[#allocation2 + $0x87] sm:$0xff]
      %v2183 = vld [vmem:[#allocation2 + $0x8f] sm:$0xff]
      %v2184 = vld [vmem:[#allocation2 + $0x97] sm:$0xff]
      %v2185 = vld [vmem:[#allocation2 + $0x9f] sm:$0xff]
      %v2186 = vld [vmem:[#allocation2 + $0xa7] sm:$0xff]
      %v2187 = vld [vmem:[#allocation2 + $0xaf] sm:$0xff]
      %v2188 = vld [vmem:[#allocation2 + $0xb7] sm:$0xff]
      %v2189 = vld [vmem:[#allocation2 + $0xbf] sm:$0xff]
      %v2190 = vlaneseq
      %v2191 = vshrl.u32 %v2190, 7
      %v2192 = vsub.s32 1, %v2191
      %v2193 = vrot.slane %v1960, %v2192
      %v2194 = vmul.f32 %v2166, %v2193
      %v2195 = vmul.f32 %v2167, %v2193
      %v2196 = vmul.f32 %v2168, %v2193
      %v2197 = vmul.f32 %v2169, %v2193
      %v2198 = vmul.f32 %v2170, %v2193
      %v2199 = vmul.f32 %v2171, %v2193
      %v2200 = vmul.f32 %v2172, %v2193
      %v2201 = vmul.f32 %v2173, %v2193
      %v2202 = vmul.f32 %v2174, %v2193
      %v2203 = vmul.f32 %v2175, %v2193
      %v2204 = vmul.f32 %v2176, %v2193
      %v2205 = vmul.f32 %v2177, %v2193
      %v2206 = vmul.f32 %v2178, %v2193
      %v2207 = vmul.f32 %v2179, %v2193
      %v2208 = vmul.f32 %v2180, %v2193
      %v2209 = vmul.f32 %v2181, %v2193
      %v2210 = vmul.f32 %v2182, %v2193
      %v2211 = vmul.f32 %v2183, %v2193
      %v2212 = vmul.f32 %v2184, %v2193
      %v2213 = vmul.f32 %v2185, %v2193
      %v2214 = vmul.f32 %v2186, %v2193
      %v2215 = vmul.f32 %v2187, %v2193
      %v2216 = vmul.f32 %v2188, %v2193
      %v2217 = vmul.f32 %v2189, %v2193
      %v2218 = vadd.f32 %v2194, 0.0
      %v2219 = vadd.f32 %v2195, 0.0
      %v2220 = vadd.f32 %v2196, 0.0
      %v2221 = vadd.f32 %v2197, 0.0
      %v2222 = vadd.f32 %v2198, 0.0
      %v2223 = vadd.f32 %v2199, 0.0
      %v2224 = vadd.f32 %v2200, 0.0
      %v2225 = vadd.f32 %v2201, 0.0
      %v2226 = vadd.f32 %v2202, 0.0
      %v2227 = vadd.f32 %v2203, 0.0
      %v2228 = vadd.f32 %v2204, 0.0
      %v2229 = vadd.f32 %v2205, 0.0
      %v2230 = vadd.f32 %v2206, 0.0
      %v2231 = vadd.f32 %v2207, 0.0
      %v2232 = vadd.f32 %v2208, 0.0
      %v2233 = vadd.f32 %v2209, 0.0
      %v2234 = vadd.f32 %v2210, 0.0
      %v2235 = vadd.f32 %v2211, 0.0
      %v2236 = vadd.f32 %v2212, 0.0
      %v2237 = vadd.f32 %v2213, 0.0
      %v2238 = vadd.f32 %v2214, 0.0
      %v2239 = vadd.f32 %v2215, 0.0
      %v2240 = vadd.f32 %v2216, 0.0
      %v2241 = vadd.f32 %v2217, 0.0
      %v2242 = vld [vmem:[%s1935 + $0x8] sm:$0xff]
      %v2243 = vld [vmem:[%s1935 + $0x10] sm:$0xff]
      %v2244 = vld [vmem:[%s1935 + $0x18] sm:$0xff]
      %v2245 = vld [vmem:[%s1935 + $0x20] sm:$0xff]
      %v2246 = vld [vmem:[%s1935 + $0x28] sm:$0xff]
      %v2247 = vld [vmem:[%s1935 + $0x30] sm:$0xff]
      %v2248 = vld [vmem:[%s1935 + $0x38] sm:$0xff]
      %v2249 = vld [vmem:[%s1935 + $0x40] sm:$0xff]
      %v2250 = vld [vmem:[%s1935 + $0x48] sm:$0xff]
      %v2251 = vld [vmem:[%s1935 + $0x50] sm:$0xff]
      %v2252 = vld [vmem:[%s1935 + $0x58] sm:$0xff]
      %v2253 = vld [vmem:[%s1935 + $0x60] sm:$0xff]
      %v2254 = vld [vmem:[%s1935 + $0x68] sm:$0xff]
      %v2255 = vld [vmem:[%s1935 + $0x70] sm:$0xff]
      %v2256 = vld [vmem:[%s1935 + $0x78] sm:$0xff]
      %v2257 = vld [vmem:[%s1935 + $0x80] sm:$0xff]
      %v2258 = vld [vmem:[%s1935 + $0x88] sm:$0xff]
      %v2259 = vld [vmem:[%s1935 + $0x90] sm:$0xff]
      %v2260 = vld [vmem:[%s1935 + $0x98] sm:$0xff]
      %v2261 = vld [vmem:[%s1935 + $0xa0] sm:$0xff]
      %v2262 = vld [vmem:[%s1935 + $0xa8] sm:$0xff]
      %v2263 = vld [vmem:[%s1935 + $0xb0] sm:$0xff]
      %v2264 = vld [vmem:[%s1935 + $0xb8] sm:$0xff]
      %v2265 = vld [vmem:[%s1935 + $0xc0] sm:$0xff]
      %v2266 = vlaneseq
      %v2267 = vshrl.u32 %v2266, 7
      %v2268 = vsub.s32 2, %v2267
      %v2269 = vrot.slane %v1960, %v2268
      %v2270 = vmul.f32 %v2242, %v2269
      %v2271 = vmul.f32 %v2243, %v2269
      %v2272 = vmul.f32 %v2244, %v2269
      %v2273 = vmul.f32 %v2245, %v2269
      %v2274 = vmul.f32 %v2246, %v2269
      %v2275 = vmul.f32 %v2247, %v2269
      %v2276 = vmul.f32 %v2248, %v2269
      %v2277 = vmul.f32 %v2249, %v2269
      %v2278 = vmul.f32 %v2250, %v2269
      %v2279 = vmul.f32 %v2251, %v2269
      %v2280 = vmul.f32 %v2252, %v2269
      %v2281 = vmul.f32 %v2253, %v2269
      %v2282 = vmul.f32 %v2254, %v2269
      %v2283 = vmul.f32 %v2255, %v2269
      %v2284 = vmul.f32 %v2256, %v2269
      %v2285 = vmul.f32 %v2257, %v2269
      %v2286 = vmul.f32 %v2258, %v2269
      %v2287 = vmul.f32 %v2259, %v2269
      %v2288 = vmul.f32 %v2260, %v2269
      %v2289 = vmul.f32 %v2261, %v2269
      %v2290 = vmul.f32 %v2262, %v2269
      %v2291 = vmul.f32 %v2263, %v2269
      %v2292 = vmul.f32 %v2264, %v2269
      %v2293 = vmul.f32 %v2265, %v2269
      %v2294 = vadd.f32 %v2270, 0.0
      %v2295 = vadd.f32 %v2271, 0.0
      %v2296 = vadd.f32 %v2272, 0.0
      %v2297 = vadd.f32 %v2273, 0.0
      %v2298 = vadd.f32 %v2274, 0.0
      %v2299 = vadd.f32 %v2275, 0.0
      %v2300 = vadd.f32 %v2276, 0.0
      %v2301 = vadd.f32 %v2277, 0.0
      %v2302 = vadd.f32 %v2278, 0.0
      %v2303 = vadd.f32 %v2279, 0.0
      %v2304 = vadd.f32 %v2280, 0.0
      %v2305 = vadd.f32 %v2281, 0.0
      %v2306 = vadd.f32 %v2282, 0.0
      %v2307 = vadd.f32 %v2283, 0.0
      %v2308 = vadd.f32 %v2284, 0.0
      %v2309 = vadd.f32 %v2285, 0.0
      %v2310 = vadd.f32 %v2286, 0.0
      %v2311 = vadd.f32 %v2287, 0.0
      %v2312 = vadd.f32 %v2288, 0.0
      %v2313 = vadd.f32 %v2289, 0.0
      %v2314 = vadd.f32 %v2290, 0.0
      %v2315 = vadd.f32 %v2291, 0.0
      %v2316 = vadd.f32 %v2292, 0.0
      %v2317 = vadd.f32 %v2293, 0.0
      %v2318 = vld [vmem:[%s1814 + $0xf] sm:$0xff]
      %v2319 = vld [vmem:[%s1814 + $0x17] sm:$0xff]
      %v2320 = vld [vmem:[%s1814 + $0x1f] sm:$0xff]
      %v2321 = vld [vmem:[%s1814 + $0x27] sm:$0xff]
      %v2322 = vld [vmem:[%s1814 + $0x2f] sm:$0xff]
      %v2323 = vld [vmem:[%s1814 + $0x37] sm:$0xff]
      %v2324 = vld [vmem:[%s1814 + $0x3f] sm:$0xff]
      %v2325 = vld [vmem:[%s1814 + $0x47] sm:$0xff]
      %v2326 = vld [vmem:[%s1814 + $0x4f] sm:$0xff]
      %v2327 = vld [vmem:[%s1814 + $0x57] sm:$0xff]
      %v2328 = vld [vmem:[%s1814 + $0x5f] sm:$0xff]
      %v2329 = vld [vmem:[%s1814 + $0x67] sm:$0xff]
      %v2330 = vld [vmem:[%s1814 + $0x6f] sm:$0xff]
      %v2331 = vld [vmem:[%s1814 + $0x77] sm:$0xff]
      %v2332 = vld [vmem:[%s1814 + $0x7f] sm:$0xff]
      %v2333 = vld [vmem:[%s1814 + $0x87] sm:$0xff]
      %v2334 = vld [vmem:[%s1814 + $0x8f] sm:$0xff]
      %v2335 = vld [vmem:[%s1814 + $0x97] sm:$0xff]
      %v2336 = vld [vmem:[%s1814 + $0x9f] sm:$0xff]
      %v2337 = vld [vmem:[%s1814 + $0xa7] sm:$0xff]
      %v2338 = vld [vmem:[%s1814 + $0xaf] sm:$0xff]
      %v2339 = vld [vmem:[%s1814 + $0xb7] sm:$0xff]
      %v2340 = vld [vmem:[%s1814 + $0xbf] sm:$0xff]
      %v2341 = vld [vmem:[%s1814 + $0xc7] sm:$0xff]
      %v2342 = vlaneseq
      %v2343 = vshrl.u32 %v2342, 7
      %v2344 = vsub.s32 3, %v2343
      %v2345 = vrot.slane %v1960, %v2344
      %v2346 = vmul.f32 %v2318, %v2345
      %v2347 = vmul.f32 %v2319, %v2345
      %v2348 = vmul.f32 %v2320, %v2345
      %v2349 = vmul.f32 %v2321, %v2345
      %v2350 = vmul.f32 %v2322, %v2345
      %v2351 = vmul.f32 %v2323, %v2345
      %v2352 = vmul.f32 %v2324, %v2345
      %v2353 = vmul.f32 %v2325, %v2345
      %v2354 = vmul.f32 %v2326, %v2345
      %v2355 = vmul.f32 %v2327, %v2345
      %v2356 = vmul.f32 %v2328, %v2345
      %v2357 = vmul.f32 %v2329, %v2345
      %v2358 = vmul.f32 %v2330, %v2345
      %v2359 = vmul.f32 %v2331, %v2345
      %v2360 = vmul.f32 %v2332, %v2345
      %v2361 = vmul.f32 %v2333, %v2345
      %v2362 = vmul.f32 %v2334, %v2345
      %v2363 = vmul.f32 %v2335, %v2345
      %v2364 = vmul.f32 %v2336, %v2345
      %v2365 = vmul.f32 %v2337, %v2345
      %v2366 = vmul.f32 %v2338, %v2345
      %v2367 = vmul.f32 %v2339, %v2345
      %v2368 = vmul.f32 %v2340, %v2345
      %v2369 = vmul.f32 %v2341, %v2345
      %2394 = vrot.lane.b32.xlu0 %v2346, 2
      %v2395 = vpop.permute.xlu0 %2394
      %2396 = vrot.lane.b32.xlu0 %v2347, 2
      %v2397 = vpop.permute.xlu0 %2396
      %2398 = vrot.lane.b32.xlu0 %v2348, 2
      %v2399 = vpop.permute.xlu0 %2398
      %2400 = vrot.lane.b32.xlu0 %v2349, 2
      %v2401 = vpop.permute.xlu0 %2400
      %2402 = vrot.lane.b32.xlu0 %v2350, 2
      %v2403 = vpop.permute.xlu0 %2402
      %2404 = vrot.lane.b32.xlu0 %v2351, 2
      %v2405 = vpop.permute.xlu0 %2404
      %2406 = vrot.lane.b32.xlu0 %v2352, 2
      %v2407 = vpop.permute.xlu0 %2406
      %2408 = vrot.lane.b32.xlu0 %v2353, 2
      %v2409 = vpop.permute.xlu0 %2408
      %2410 = vrot.lane.b32.xlu0 %v2354, 2
      %v2411 = vpop.permute.xlu0 %2410
      %2412 = vrot.lane.b32.xlu0 %v2355, 2
      %v2413 = vpop.permute.xlu0 %2412
      %2414 = vrot.lane.b32.xlu0 %v2356, 2
      %v2415 = vpop.permute.xlu0 %2414
      %2416 = vrot.lane.b32.xlu0 %v2357, 2
      %v2417 = vpop.permute.xlu0 %2416
      %2418 = vrot.lane.b32.xlu0 %v2358, 2
      %v2419 = vpop.permute.xlu0 %2418
      %2420 = vrot.lane.b32.xlu0 %v2359, 2
      %v2421 = vpop.permute.xlu0 %2420
      %2422 = vrot.lane.b32.xlu0 %v2360, 2
      %v2423 = vpop.permute.xlu0 %2422
      %2424 = vrot.lane.b32.xlu0 %v2361, 2
      %v2425 = vpop.permute.xlu0 %2424
      %2426 = vrot.lane.b32.xlu0 %v2362, 2
      %v2427 = vpop.permute.xlu0 %2426
      %2428 = vrot.lane.b32.xlu0 %v2363, 2
      %v2429 = vpop.permute.xlu0 %2428
      %2430 = vrot.lane.b32.xlu0 %v2364, 2
      %v2431 = vpop.permute.xlu0 %2430
      %2432 = vrot.lane.b32.xlu0 %v2365, 2
      %v2433 = vpop.permute.xlu0 %2432
      %2434 = vrot.lane.b32.xlu0 %v2366, 2
      %v2435 = vpop.permute.xlu0 %2434
      %2436 = vrot.lane.b32.xlu0 %v2367, 2
      %v2437 = vpop.permute.xlu0 %2436
      %2438 = vrot.lane.b32.xlu0 %v2368, 2
      %v2439 = vpop.permute.xlu0 %2438
      %2440 = vrot.lane.b32.xlu0 %v2369, 2
      %v2441 = vpop.permute.xlu0 %2440
      %v2466 = vadd.f32 %v2142, %v2395
      %v2467 = vadd.f32 %v2143, %v2397
      %v2468 = vadd.f32 %v2144, %v2399
      %v2469 = vadd.f32 %v2145, %v2401
      %v2470 = vadd.f32 %v2146, %v2403
      %v2471 = vadd.f32 %v2147, %v2405
      %v2472 = vadd.f32 %v2148, %v2407
      %v2473 = vadd.f32 %v2149, %v2409
      %v2474 = vadd.f32 %v2150, %v2411
      %v2475 = vadd.f32 %v2151, %v2413
      %v2476 = vadd.f32 %v2152, %v2415
      %v2477 = vadd.f32 %v2153, %v2417
      %v2478 = vadd.f32 %v2154, %v2419
      %v2479 = vadd.f32 %v2155, %v2421
      %v2480 = vadd.f32 %v2156, %v2423
      %v2481 = vadd.f32 %v2157, %v2425
      %v2482 = vadd.f32 %v2158, %v2427
      %v2483 = vadd.f32 %v2159, %v2429
      %v2484 = vadd.f32 %v2160, %v2431
      %v2485 = vadd.f32 %v2161, %v2433
      %v2486 = vadd.f32 %v2162, %v2435
      %v2487 = vadd.f32 %v2163, %v2437
      %v2488 = vadd.f32 %v2164, %v2439
      %v2489 = vadd.f32 %v2165, %v2441
      %v2490 = vld [vmem:[%s1935 + $0x11] sm:$0xff]
      %v2491 = vld [vmem:[%s1935 + $0x19] sm:$0xff]
      %v2492 = vld [vmem:[%s1935 + $0x21] sm:$0xff]
      %v2493 = vld [vmem:[%s1935 + $0x29] sm:$0xff]
      %v2494 = vld [vmem:[%s1935 + $0x31] sm:$0xff]
      %v2495 = vld [vmem:[%s1935 + $0x39] sm:$0xff]
      %v2496 = vld [vmem:[%s1935 + $0x41] sm:$0xff]
      %v2497 = vld [vmem:[%s1935 + $0x49] sm:$0xff]
      %v2498 = vld [vmem:[%s1935 + $0x51] sm:$0xff]
      %v2499 = vld [vmem:[%s1935 + $0x59] sm:$0xff]
      %v2500 = vld [vmem:[%s1935 + $0x61] sm:$0xff]
      %v2501 = vld [vmem:[%s1935 + $0x69] sm:$0xff]
      %v2502 = vld [vmem:[%s1935 + $0x71] sm:$0xff]
      %v2503 = vld [vmem:[%s1935 + $0x79] sm:$0xff]
      %v2504 = vld [vmem:[%s1935 + $0x81] sm:$0xff]
      %v2505 = vld [vmem:[%s1935 + $0x89] sm:$0xff]
      %v2506 = vld [vmem:[%s1935 + $0x91] sm:$0xff]
      %v2507 = vld [vmem:[%s1935 + $0x99] sm:$0xff]
      %v2508 = vld [vmem:[%s1935 + $0xa1] sm:$0xff]
      %v2509 = vld [vmem:[%s1935 + $0xa9] sm:$0xff]
      %v2510 = vld [vmem:[%s1935 + $0xb1] sm:$0xff]
      %v2511 = vld [vmem:[%s1935 + $0xb9] sm:$0xff]
      %v2512 = vld [vmem:[%s1935 + $0xc1] sm:$0xff]
      %v2513 = vld [vmem:[%s1935 + $0xc9] sm:$0xff]
      %v2514 = vlaneseq
      %v2515 = vshrl.u32 %v2514, 7
      %v2516 = vsub.s32 5, %v2515
      %v2517 = vrot.slane %v1960, %v2516
      %v2518 = vmul.f32 %v2490, %v2517
      %v2519 = vmul.f32 %v2491, %v2517
      %v2520 = vmul.f32 %v2492, %v2517
      %v2521 = vmul.f32 %v2493, %v2517
      %v2522 = vmul.f32 %v2494, %v2517
      %v2523 = vmul.f32 %v2495, %v2517
      %v2524 = vmul.f32 %v2496, %v2517
      %v2525 = vmul.f32 %v2497, %v2517
      %v2526 = vmul.f32 %v2498, %v2517
      %v2527 = vmul.f32 %v2499, %v2517
      %v2528 = vmul.f32 %v2500, %v2517
      %v2529 = vmul.f32 %v2501, %v2517
      %v2530 = vmul.f32 %v2502, %v2517
      %v2531 = vmul.f32 %v2503, %v2517
      %v2532 = vmul.f32 %v2504, %v2517
      %v2533 = vmul.f32 %v2505, %v2517
      %v2534 = vmul.f32 %v2506, %v2517
      %v2535 = vmul.f32 %v2507, %v2517
      %v2536 = vmul.f32 %v2508, %v2517
      %v2537 = vmul.f32 %v2509, %v2517
      %v2538 = vmul.f32 %v2510, %v2517
      %v2539 = vmul.f32 %v2511, %v2517
      %v2540 = vmul.f32 %v2512, %v2517
      %v2541 = vmul.f32 %v2513, %v2517
      %v2542 = vadd.f32 %v2294, %v2518
      %v2543 = vadd.f32 %v2295, %v2519
      %v2544 = vadd.f32 %v2296, %v2520
      %v2545 = vadd.f32 %v2297, %v2521
      %v2546 = vadd.f32 %v2298, %v2522
      %v2547 = vadd.f32 %v2299, %v2523
      %v2548 = vadd.f32 %v2300, %v2524
      %v2549 = vadd.f32 %v2301, %v2525
      %v2550 = vadd.f32 %v2302, %v2526
      %v2551 = vadd.f32 %v2303, %v2527
      %v2552 = vadd.f32 %v2304, %v2528
      %v2553 = vadd.f32 %v2305, %v2529
      %v2554 = vadd.f32 %v2306, %v2530
      %v2555 = vadd.f32 %v2307, %v2531
      %v2556 = vadd.f32 %v2308, %v2532
      %v2557 = vadd.f32 %v2309, %v2533
      %v2558 = vadd.f32 %v2310, %v2534
      %v2559 = vadd.f32 %v2311, %v2535
      %v2560 = vadd.f32 %v2312, %v2536
      %v2561 = vadd.f32 %v2313, %v2537
      %v2562 = vadd.f32 %v2314, %v2538
      %v2563 = vadd.f32 %v2315, %v2539
      %v2564 = vadd.f32 %v2316, %v2540
      %v2565 = vadd.f32 %v2317, %v2541
      %v2566 = vld [vmem:[%s1814 + $0x18] sm:$0xff]
      %v2567 = vld [vmem:[%s1814 + $0x20] sm:$0xff]
      %v2568 = vld [vmem:[%s1814 + $0x28] sm:$0xff]
      %v2569 = vld [vmem:[%s1814 + $0x30] sm:$0xff]
      %v2570 = vld [vmem:[%s1814 + $0x38] sm:$0xff]
      %v2571 = vld [vmem:[%s1814 + $0x40] sm:$0xff]
      %v2572 = vld [vmem:[%s1814 + $0x48] sm:$0xff]
      %v2573 = vld [vmem:[%s1814 + $0x50] sm:$0xff]
      %v2574 = vld [vmem:[%s1814 + $0x58] sm:$0xff]
      %v2575 = vld [vmem:[%s1814 + $0x60] sm:$0xff]
      %v2576 = vld [vmem:[%s1814 + $0x68] sm:$0xff]
      %v2577 = vld [vmem:[%s1814 + $0x70] sm:$0xff]
      %v2578 = vld [vmem:[%s1814 + $0x78] sm:$0xff]
      %v2579 = vld [vmem:[%s1814 + $0x80] sm:$0xff]
      %v2580 = vld [vmem:[%s1814 + $0x88] sm:$0xff]
      %v2581 = vld [vmem:[%s1814 + $0x90] sm:$0xff]
      %v2582 = vld [vmem:[%s1814 + $0x98] sm:$0xff]
      %v2583 = vld [vmem:[%s1814 + $0xa0] sm:$0xff]
      %v2584 = vld [vmem:[%s1814 + $0xa8] sm:$0xff]
      %v2585 = vld [vmem:[%s1814 + $0xb0] sm:$0xff]
      %v2586 = vld [vmem:[%s1814 + $0xb8] sm:$0xff]
      %v2587 = vld [vmem:[%s1814 + $0xc0] sm:$0xff]
      %v2588 = vld [vmem:[%s1814 + $0xc8] sm:$0xff]
      %v2589 = vld [vmem:[%s1814 + $0xd0] sm:$0xff]
      %v2590 = vlaneseq
      %v2591 = vshrl.u32 %v2590, 7
      %v2592 = vsub.s32 6, %v2591
      %v2593 = vrot.slane %v1960, %v2592
      %v2594 = vmul.f32 %v2566, %v2593
      %v2595 = vmul.f32 %v2567, %v2593
      %v2596 = vmul.f32 %v2568, %v2593
      %v2597 = vmul.f32 %v2569, %v2593
      %v2598 = vmul.f32 %v2570, %v2593
      %v2599 = vmul.f32 %v2571, %v2593
      %v2600 = vmul.f32 %v2572, %v2593
      %v2601 = vmul.f32 %v2573, %v2593
      %v2602 = vmul.f32 %v2574, %v2593
      %v2603 = vmul.f32 %v2575, %v2593
      %v2604 = vmul.f32 %v2576, %v2593
      %v2605 = vmul.f32 %v2577, %v2593
      %v2606 = vmul.f32 %v2578, %v2593
      %v2607 = vmul.f32 %v2579, %v2593
      %v2608 = vmul.f32 %v2580, %v2593
      %v2609 = vmul.f32 %v2581, %v2593
      %v2610 = vmul.f32 %v2582, %v2593
      %v2611 = vmul.f32 %v2583, %v2593
      %v2612 = vmul.f32 %v2584, %v2593
      %v2613 = vmul.f32 %v2585, %v2593
      %v2614 = vmul.f32 %v2586, %v2593
      %v2615 = vmul.f32 %v2587, %v2593
      %v2616 = vmul.f32 %v2588, %v2593
      %v2617 = vmul.f32 %v2589, %v2593
      %2642 = vrot.lane.b32.xlu0 %v2594, 2
      %v2643 = vpop.permute.xlu0 %2642
      %2644 = vrot.lane.b32.xlu0 %v2595, 2
      %v2645 = vpop.permute.xlu0 %2644
      %2646 = vrot.lane.b32.xlu0 %v2596, 2
      %v2647 = vpop.permute.xlu0 %2646
      %2648 = vrot.lane.b32.xlu0 %v2597, 2
      %v2649 = vpop.permute.xlu0 %2648
      %2650 = vrot.lane.b32.xlu0 %v2598, 2
      %v2651 = vpop.permute.xlu0 %2650
      %2652 = vrot.lane.b32.xlu0 %v2599, 2
      %v2653 = vpop.permute.xlu0 %2652
      %2654 = vrot.lane.b32.xlu0 %v2600, 2
      %v2655 = vpop.permute.xlu0 %2654
      %2656 = vrot.lane.b32.xlu0 %v2601, 2
      %v2657 = vpop.permute.xlu0 %2656
      %2658 = vrot.lane.b32.xlu0 %v2602, 2
      %v2659 = vpop.permute.xlu0 %2658
      %2660 = vrot.lane.b32.xlu0 %v2603, 2
      %v2661 = vpop.permute.xlu0 %2660
      %2662 = vrot.lane.b32.xlu0 %v2604, 2
      %v2663 = vpop.permute.xlu0 %2662
      %2664 = vrot.lane.b32.xlu0 %v2605, 2
      %v2665 = vpop.permute.xlu0 %2664
      %2666 = vrot.lane.b32.xlu0 %v2606, 2
      %v2667 = vpop.permute.xlu0 %2666
      %2668 = vrot.lane.b32.xlu0 %v2607, 2
      %v2669 = vpop.permute.xlu0 %2668
      %2670 = vrot.lane.b32.xlu0 %v2608, 2
      %v2671 = vpop.permute.xlu0 %2670
      %2672 = vrot.lane.b32.xlu0 %v2609, 2
      %v2673 = vpop.permute.xlu0 %2672
      %2674 = vrot.lane.b32.xlu0 %v2610, 2
      %v2675 = vpop.permute.xlu0 %2674
      %2676 = vrot.lane.b32.xlu0 %v2611, 2
      %v2677 = vpop.permute.xlu0 %2676
      %2678 = vrot.lane.b32.xlu0 %v2612, 2
      %v2679 = vpop.permute.xlu0 %2678
      %2680 = vrot.lane.b32.xlu0 %v2613, 2
      %v2681 = vpop.permute.xlu0 %2680
      %2682 = vrot.lane.b32.xlu0 %v2614, 2
      %v2683 = vpop.permute.xlu0 %2682
      %2684 = vrot.lane.b32.xlu0 %v2615, 2
      %v2685 = vpop.permute.xlu0 %2684
      %2686 = vrot.lane.b32.xlu0 %v2616, 2
      %v2687 = vpop.permute.xlu0 %2686
      %2688 = vrot.lane.b32.xlu0 %v2617, 2
      %v2689 = vpop.permute.xlu0 %2688
      %v2714 = vadd.f32 %v2466, %v2643
      %v2715 = vadd.f32 %v2467, %v2645
      %v2716 = vadd.f32 %v2468, %v2647
      %v2717 = vadd.f32 %v2469, %v2649
      %v2718 = vadd.f32 %v2470, %v2651
      %v2719 = vadd.f32 %v2471, %v2653
      %v2720 = vadd.f32 %v2472, %v2655
      %v2721 = vadd.f32 %v2473, %v2657
      %v2722 = vadd.f32 %v2474, %v2659
      %v2723 = vadd.f32 %v2475, %v2661
      %v2724 = vadd.f32 %v2476, %v2663
      %v2725 = vadd.f32 %v2477, %v2665
      %v2726 = vadd.f32 %v2478, %v2667
      %v2727 = vadd.f32 %v2479, %v2669
      %v2728 = vadd.f32 %v2480, %v2671
      %v2729 = vadd.f32 %v2481, %v2673
      %v2730 = vadd.f32 %v2482, %v2675
      %v2731 = vadd.f32 %v2483, %v2677
      %v2732 = vadd.f32 %v2484, %v2679
      %v2733 = vadd.f32 %v2485, %v2681
      %v2734 = vadd.f32 %v2486, %v2683
      %v2735 = vadd.f32 %v2487, %v2685
      %v2736 = vadd.f32 %v2488, %v2687
      %v2737 = vadd.f32 %v2489, %v2689
      %v2738 = vld [vmem:[#allocation2 + $0x19] sm:$0xff]
      %v2739 = vld [vmem:[#allocation2 + $0x21] sm:$0xff]
      %v2740 = vld [vmem:[#allocation2 + $0x29] sm:$0xff]
      %v2741 = vld [vmem:[#allocation2 + $0x31] sm:$0xff]
      %v2742 = vld [vmem:[#allocation2 + $0x39] sm:$0xff]
      %v2743 = vld [vmem:[#allocation2 + $0x41] sm:$0xff]
      %v2744 = vld [vmem:[#allocation2 + $0x49] sm:$0xff]
      %v2745 = vld [vmem:[#allocation2 + $0x51] sm:$0xff]
      %v2746 = vld [vmem:[#allocation2 + $0x59] sm:$0xff]
      %v2747 = vld [vmem:[#allocation2 + $0x61] sm:$0xff]
      %v2748 = vld [vmem:[#allocation2 + $0x69] sm:$0xff]
      %v2749 = vld [vmem:[#allocation2 + $0x71] sm:$0xff]
      %v2750 = vld [vmem:[#allocation2 + $0x79] sm:$0xff]
      %v2751 = vld [vmem:[#allocation2 + $0x81] sm:$0xff]
      %v2752 = vld [vmem:[#allocation2 + $0x89] sm:$0xff]
      %v2753 = vld [vmem:[#allocation2 + $0x91] sm:$0xff]
      %v2754 = vld [vmem:[#allocation2 + $0x99] sm:$0xff]
      %v2755 = vld [vmem:[#allocation2 + $0xa1] sm:$0xff]
      %v2756 = vld [vmem:[#allocation2 + $0xa9] sm:$0xff]
      %v2757 = vld [vmem:[#allocation2 + $0xb1] sm:$0xff]
      %v2758 = vld [vmem:[#allocation2 + $0xb9] sm:$0xff]
      %v2759 = vld [vmem:[#allocation2 + $0xc1] sm:$0xff]
      %v2760 = vld [vmem:[#allocation2 + $0xc9] sm:$0xff]
      %v2761 = vld [vmem:[#allocation2 + $0xd1] sm:$0xff]
      %v2762 = vlaneseq
      %v2763 = vshrl.u32 %v2762, 7
      %v2764 = vsub.s32 7, %v2763
      %v2765 = vrot.slane %v1960, %v2764
      %v2766 = vmul.f32 %v2738, %v2765
      %v2767 = vmul.f32 %v2739, %v2765
      %v2768 = vmul.f32 %v2740, %v2765
      %v2769 = vmul.f32 %v2741, %v2765
      %v2770 = vmul.f32 %v2742, %v2765
      %v2771 = vmul.f32 %v2743, %v2765
      %v2772 = vmul.f32 %v2744, %v2765
      %v2773 = vmul.f32 %v2745, %v2765
      %v2774 = vmul.f32 %v2746, %v2765
      %v2775 = vmul.f32 %v2747, %v2765
      %v2776 = vmul.f32 %v2748, %v2765
      %v2777 = vmul.f32 %v2749, %v2765
      %v2778 = vmul.f32 %v2750, %v2765
      %v2779 = vmul.f32 %v2751, %v2765
      %v2780 = vmul.f32 %v2752, %v2765
      %v2781 = vmul.f32 %v2753, %v2765
      %v2782 = vmul.f32 %v2754, %v2765
      %v2783 = vmul.f32 %v2755, %v2765
      %v2784 = vmul.f32 %v2756, %v2765
      %v2785 = vmul.f32 %v2757, %v2765
      %v2786 = vmul.f32 %v2758, %v2765
      %v2787 = vmul.f32 %v2759, %v2765
      %v2788 = vmul.f32 %v2760, %v2765
      %v2789 = vmul.f32 %v2761, %v2765
      %v2790 = vadd.f32 %v2218, %v2766
      %v2791 = vadd.f32 %v2219, %v2767
      %v2792 = vadd.f32 %v2220, %v2768
      %v2793 = vadd.f32 %v2221, %v2769
      %v2794 = vadd.f32 %v2222, %v2770
      %v2795 = vadd.f32 %v2223, %v2771
      %v2796 = vadd.f32 %v2224, %v2772
      %v2797 = vadd.f32 %v2225, %v2773
      %v2798 = vadd.f32 %v2226, %v2774
      %v2799 = vadd.f32 %v2227, %v2775
      %v2800 = vadd.f32 %v2228, %v2776
      %v2801 = vadd.f32 %v2229, %v2777
      %v2802 = vadd.f32 %v2230, %v2778
      %v2803 = vadd.f32 %v2231, %v2779
      %v2804 = vadd.f32 %v2232, %v2780
      %v2805 = vadd.f32 %v2233, %v2781
      %v2806 = vadd.f32 %v2234, %v2782
      %v2807 = vadd.f32 %v2235, %v2783
      %v2808 = vadd.f32 %v2236, %v2784
      %v2809 = vadd.f32 %v2237, %v2785
      %v2810 = vadd.f32 %v2238, %v2786
      %v2811 = vadd.f32 %v2239, %v2787
      %v2812 = vadd.f32 %v2240, %v2788
      %v2813 = vadd.f32 %v2241, %v2789
      %v2814 = vld [vmem:[%s1935 + $0x1a] sm:$0xff]
      %v2815 = vld [vmem:[%s1935 + $0x22] sm:$0xff]
      %v2816 = vld [vmem:[%s1935 + $0x2a] sm:$0xff]
      %v2817 = vld [vmem:[%s1935 + $0x32] sm:$0xff]
      %v2818 = vld [vmem:[%s1935 + $0x3a] sm:$0xff]
      %v2819 = vld [vmem:[%s1935 + $0x42] sm:$0xff]
      %v2820 = vld [vmem:[%s1935 + $0x4a] sm:$0xff]
      %v2821 = vld [vmem:[%s1935 + $0x52] sm:$0xff]
      %v2822 = vld [vmem:[%s1935 + $0x5a] sm:$0xff]
      %v2823 = vld [vmem:[%s1935 + $0x62] sm:$0xff]
      %v2824 = vld [vmem:[%s1935 + $0x6a] sm:$0xff]
      %v2825 = vld [vmem:[%s1935 + $0x72] sm:$0xff]
      %v2826 = vld [vmem:[%s1935 + $0x7a] sm:$0xff]
      %v2827 = vld [vmem:[%s1935 + $0x82] sm:$0xff]
      %v2828 = vld [vmem:[%s1935 + $0x8a] sm:$0xff]
      %v2829 = vld [vmem:[%s1935 + $0x92] sm:$0xff]
      %v2830 = vld [vmem:[%s1935 + $0x9a] sm:$0xff]
      %v2831 = vld [vmem:[%s1935 + $0xa2] sm:$0xff]
      %v2832 = vld [vmem:[%s1935 + $0xaa] sm:$0xff]
      %v2833 = vld [vmem:[%s1935 + $0xb2] sm:$0xff]
      %v2834 = vld [vmem:[%s1935 + $0xba] sm:$0xff]
      %v2835 = vld [vmem:[%s1935 + $0xc2] sm:$0xff]
      %v2836 = vld [vmem:[%s1935 + $0xca] sm:$0xff]
      %v2837 = vld [vmem:[%s1935 + $0xd2] sm:$0xff]
      %v2838 = vlaneseq
      %v2839 = vshrl.u32 %v2838, 7
      %v2840 = vsub.s32 0, %v2839
      %v2841 = vrot.slane %v1961, %v2840
      %v2842 = vmul.f32 %v2814, %v2841
      %v2843 = vmul.f32 %v2815, %v2841
      %v2844 = vmul.f32 %v2816, %v2841
      %v2845 = vmul.f32 %v2817, %v2841
      %v2846 = vmul.f32 %v2818, %v2841
      %v2847 = vmul.f32 %v2819, %v2841
      %v2848 = vmul.f32 %v2820, %v2841
      %v2849 = vmul.f32 %v2821, %v2841
      %v2850 = vmul.f32 %v2822, %v2841
      %v2851 = vmul.f32 %v2823, %v2841
      %v2852 = vmul.f32 %v2824, %v2841
      %v2853 = vmul.f32 %v2825, %v2841
      %v2854 = vmul.f32 %v2826, %v2841
      %v2855 = vmul.f32 %v2827, %v2841
      %v2856 = vmul.f32 %v2828, %v2841
      %v2857 = vmul.f32 %v2829, %v2841
      %v2858 = vmul.f32 %v2830, %v2841
      %v2859 = vmul.f32 %v2831, %v2841
      %v2860 = vmul.f32 %v2832, %v2841
      %v2861 = vmul.f32 %v2833, %v2841
      %v2862 = vmul.f32 %v2834, %v2841
      %v2863 = vmul.f32 %v2835, %v2841
      %v2864 = vmul.f32 %v2836, %v2841
      %v2865 = vmul.f32 %v2837, %v2841
      %v2866 = vadd.f32 %v2542, %v2842
      %v2867 = vadd.f32 %v2543, %v2843
      %v2868 = vadd.f32 %v2544, %v2844
      %v2869 = vadd.f32 %v2545, %v2845
      %v2870 = vadd.f32 %v2546, %v2846
      %v2871 = vadd.f32 %v2547, %v2847
      %v2872 = vadd.f32 %v2548, %v2848
      %v2873 = vadd.f32 %v2549, %v2849
      %v2874 = vadd.f32 %v2550, %v2850
      %v2875 = vadd.f32 %v2551, %v2851
      %v2876 = vadd.f32 %v2552, %v2852
      %v2877 = vadd.f32 %v2553, %v2853
      %v2878 = vadd.f32 %v2554, %v2854
      %v2879 = vadd.f32 %v2555, %v2855
      %v2880 = vadd.f32 %v2556, %v2856
      %v2881 = vadd.f32 %v2557, %v2857
      %v2882 = vadd.f32 %v2558, %v2858
      %v2883 = vadd.f32 %v2559, %v2859
      %v2884 = vadd.f32 %v2560, %v2860
      %v2885 = vadd.f32 %v2561, %v2861
      %v2886 = vadd.f32 %v2562, %v2862
      %v2887 = vadd.f32 %v2563, %v2863
      %v2888 = vadd.f32 %v2564, %v2864
      %v2889 = vadd.f32 %v2565, %v2865
      %2914 = vrot.lane.b32.xlu0 %v2790, 2
      %v2915 = vpop.permute.xlu0 %2914
      %2916 = vrot.lane.b32.xlu0 %v2791, 2
      %v2917 = vpop.permute.xlu0 %2916
      %2918 = vrot.lane.b32.xlu0 %v2792, 2
      %v2919 = vpop.permute.xlu0 %2918
      %2920 = vrot.lane.b32.xlu0 %v2793, 2
      %v2921 = vpop.permute.xlu0 %2920
      %2922 = vrot.lane.b32.xlu0 %v2794, 2
      %v2923 = vpop.permute.xlu0 %2922
      %2924 = vrot.lane.b32.xlu0 %v2795, 2
      %v2925 = vpop.permute.xlu0 %2924
      %2926 = vrot.lane.b32.xlu0 %v2796, 2
      %v2927 = vpop.permute.xlu0 %2926
      %2928 = vrot.lane.b32.xlu0 %v2797, 2
      %v2929 = vpop.permute.xlu0 %2928
      %2930 = vrot.lane.b32.xlu0 %v2798, 2
      %v2931 = vpop.permute.xlu0 %2930
      %2932 = vrot.lane.b32.xlu0 %v2799, 2
      %v2933 = vpop.permute.xlu0 %2932
      %2934 = vrot.lane.b32.xlu0 %v2800, 2
      %v2935 = vpop.permute.xlu0 %2934
      %2936 = vrot.lane.b32.xlu0 %v2801, 2
      %v2937 = vpop.permute.xlu0 %2936
      %2938 = vrot.lane.b32.xlu0 %v2802, 2
      %v2939 = vpop.permute.xlu0 %2938
      %2940 = vrot.lane.b32.xlu0 %v2803, 2
      %v2941 = vpop.permute.xlu0 %2940
      %2942 = vrot.lane.b32.xlu0 %v2804, 2
      %v2943 = vpop.permute.xlu0 %2942
      %2944 = vrot.lane.b32.xlu0 %v2805, 2
      %v2945 = vpop.permute.xlu0 %2944
      %2946 = vrot.lane.b32.xlu0 %v2806, 2
      %v2947 = vpop.permute.xlu0 %2946
      %2948 = vrot.lane.b32.xlu0 %v2807, 2
      %v2949 = vpop.permute.xlu0 %2948
      %2950 = vrot.lane.b32.xlu0 %v2808, 2
      %v2951 = vpop.permute.xlu0 %2950
      %2952 = vrot.lane.b32.xlu0 %v2809, 2
      %v2953 = vpop.permute.xlu0 %2952
      %2954 = vrot.lane.b32.xlu0 %v2810, 2
      %v2955 = vpop.permute.xlu0 %2954
      %2956 = vrot.lane.b32.xlu0 %v2811, 2
      %v2957 = vpop.permute.xlu0 %2956
      %2958 = vrot.lane.b32.xlu0 %v2812, 2
      %v2959 = vpop.permute.xlu0 %2958
      %2960 = vrot.lane.b32.xlu0 %v2813, 2
      %v2961 = vpop.permute.xlu0 %2960
      %v2986 = vadd.f32 %v2714, %v2915
      %v2987 = vadd.f32 %v2715, %v2917
      %v2988 = vadd.f32 %v2716, %v2919
      %v2989 = vadd.f32 %v2717, %v2921
      %v2990 = vadd.f32 %v2718, %v2923
      %v2991 = vadd.f32 %v2719, %v2925
      %v2992 = vadd.f32 %v2720, %v2927
      %v2993 = vadd.f32 %v2721, %v2929
      %v2994 = vadd.f32 %v2722, %v2931
      %v2995 = vadd.f32 %v2723, %v2933
      %v2996 = vadd.f32 %v2724, %v2935
      %v2997 = vadd.f32 %v2725, %v2937
      %v2998 = vadd.f32 %v2726, %v2939
      %v2999 = vadd.f32 %v2727, %v2941
      %v3000 = vadd.f32 %v2728, %v2943
      %v3001 = vadd.f32 %v2729, %v2945
      %v3002 = vadd.f32 %v2730, %v2947
      %v3003 = vadd.f32 %v2731, %v2949
      %v3004 = vadd.f32 %v2732, %v2951
      %v3005 = vadd.f32 %v2733, %v2953
      %v3006 = vadd.f32 %v2734, %v2955
      %v3007 = vadd.f32 %v2735, %v2957
      %v3008 = vadd.f32 %v2736, %v2959
      %v3009 = vadd.f32 %v2737, %v2961
      %3034 = vrot.lane.b32.xlu0 %v2866, 2
      %v3035 = vpop.permute.xlu0 %3034
      %3036 = vrot.lane.b32.xlu0 %v2867, 2
      %v3037 = vpop.permute.xlu0 %3036
      %3038 = vrot.lane.b32.xlu0 %v2868, 2
      %v3039 = vpop.permute.xlu0 %3038
      %3040 = vrot.lane.b32.xlu0 %v2869, 2
      %v3041 = vpop.permute.xlu0 %3040
      %3042 = vrot.lane.b32.xlu0 %v2870, 2
      %v3043 = vpop.permute.xlu0 %3042
      %3044 = vrot.lane.b32.xlu0 %v2871, 2
      %v3045 = vpop.permute.xlu0 %3044
      %3046 = vrot.lane.b32.xlu0 %v2872, 2
      %v3047 = vpop.permute.xlu0 %3046
      %3048 = vrot.lane.b32.xlu0 %v2873, 2
      %v3049 = vpop.permute.xlu0 %3048
      %3050 = vrot.lane.b32.xlu0 %v2874, 2
      %v3051 = vpop.permute.xlu0 %3050
      %3052 = vrot.lane.b32.xlu0 %v2875, 2
      %v3053 = vpop.permute.xlu0 %3052
      %3054 = vrot.lane.b32.xlu0 %v2876, 2
      %v3055 = vpop.permute.xlu0 %3054
      %3056 = vrot.lane.b32.xlu0 %v2877, 2
      %v3057 = vpop.permute.xlu0 %3056
      %3058 = vrot.lane.b32.xlu0 %v2878, 2
      %v3059 = vpop.permute.xlu0 %3058
      %3060 = vrot.lane.b32.xlu0 %v2879, 2
      %v3061 = vpop.permute.xlu0 %3060
      %3062 = vrot.lane.b32.xlu0 %v2880, 2
      %v3063 = vpop.permute.xlu0 %3062
      %3064 = vrot.lane.b32.xlu0 %v2881, 2
      %v3065 = vpop.permute.xlu0 %3064
      %3066 = vrot.lane.b32.xlu0 %v2882, 2
      %v3067 = vpop.permute.xlu0 %3066
      %3068 = vrot.lane.b32.xlu0 %v2883, 2
      %v3069 = vpop.permute.xlu0 %3068
      %3070 = vrot.lane.b32.xlu0 %v2884, 2
      %v3071 = vpop.permute.xlu0 %3070
      %3072 = vrot.lane.b32.xlu0 %v2885, 2
      %v3073 = vpop.permute.xlu0 %3072
      %3074 = vrot.lane.b32.xlu0 %v2886, 2
      %v3075 = vpop.permute.xlu0 %3074
      %3076 = vrot.lane.b32.xlu0 %v2887, 2
      %v3077 = vpop.permute.xlu0 %3076
      %3078 = vrot.lane.b32.xlu0 %v2888, 2
      %v3079 = vpop.permute.xlu0 %3078
      %3080 = vrot.lane.b32.xlu0 %v2889, 2
      %v3081 = vpop.permute.xlu0 %3080
      %v3106 = vadd.f32 %v2986, %v3035
      %v3107 = vadd.f32 %v2987, %v3037
      %v3108 = vadd.f32 %v2988, %v3039
      %v3109 = vadd.f32 %v2989, %v3041
      %v3110 = vadd.f32 %v2990, %v3043
      %v3111 = vadd.f32 %v2991, %v3045
      %v3112 = vadd.f32 %v2992, %v3047
      %v3113 = vadd.f32 %v2993, %v3049
      %v3114 = vadd.f32 %v2994, %v3051
      %v3115 = vadd.f32 %v2995, %v3053
      %v3116 = vadd.f32 %v2996, %v3055
      %v3117 = vadd.f32 %v2997, %v3057
      %v3118 = vadd.f32 %v2998, %v3059
      %v3119 = vadd.f32 %v2999, %v3061
      %v3120 = vadd.f32 %v3000, %v3063
      %v3121 = vadd.f32 %v3001, %v3065
      %v3122 = vadd.f32 %v3002, %v3067
      %v3123 = vadd.f32 %v3003, %v3069
      %v3124 = vadd.f32 %v3004, %v3071
      %v3125 = vadd.f32 %v3005, %v3073
      %v3126 = vadd.f32 %v3006, %v3075
      %v3127 = vadd.f32 %v3007, %v3077
      %v3128 = vadd.f32 %v3008, %v3079
      %v3129 = vadd.f32 %v3009, %v3081
      %v3130 = vlaneseq
      %v3131 = vshrl.u32 %v3130, 7
      %v3132 = vsub.s32 1, %v3131
      %v3133 = vrot.slane %v1961, %v3132
      %3135 = vrot.lane.b32.xlu0 %v3133, 2
      %v3136 = vpop.permute.xlu0 %3135
      %v3138 = vadd.f32 %v3106, %v3136
      %v3139 = vadd.f32 %v3107, %v3136
      %v3140 = vadd.f32 %v3108, %v3136
      %v3141 = vadd.f32 %v3109, %v3136
      %v3142 = vadd.f32 %v3110, %v3136
      %v3143 = vadd.f32 %v3111, %v3136
      %v3144 = vadd.f32 %v3112, %v3136
      %v3145 = vadd.f32 %v3113, %v3136
      %v3146 = vadd.f32 %v3114, %v3136
      %v3147 = vadd.f32 %v3115, %v3136
      %v3148 = vadd.f32 %v3116, %v3136
      %v3149 = vadd.f32 %v3117, %v3136
      %v3150 = vadd.f32 %v3118, %v3136
      %v3151 = vadd.f32 %v3119, %v3136
      %v3152 = vadd.f32 %v3120, %v3136
      %v3153 = vadd.f32 %v3121, %v3136
      %v3154 = vadd.f32 %v3122, %v3136
      %v3155 = vadd.f32 %v3123, %v3136
      %v3156 = vadd.f32 %v3124, %v3136
      %v3157 = vadd.f32 %v3125, %v3136
      %v3158 = vadd.f32 %v3126, %v3136
      %v3159 = vadd.f32 %v3127, %v3136
      %v3160 = vadd.f32 %v3128, %v3136
      %v3161 = vadd.f32 %v3129, %v3136
      %3186 = vrot.lane.b32.xlu0 %v3138, 126
      %v3187 = vpop.permute.xlu0 %3186
      %3188 = vrot.lane.b32.xlu0 %v3139, 126
      %v3189 = vpop.permute.xlu0 %3188
      %3190 = vrot.lane.b32.xlu0 %v3140, 126
      %v3191 = vpop.permute.xlu0 %3190
      %3192 = vrot.lane.b32.xlu0 %v3141, 126
      %v3193 = vpop.permute.xlu0 %3192
      %3194 = vrot.lane.b32.xlu0 %v3142, 126
      %v3195 = vpop.permute.xlu0 %3194
      %3196 = vrot.lane.b32.xlu0 %v3143, 126
      %v3197 = vpop.permute.xlu0 %3196
      %3198 = vrot.lane.b32.xlu0 %v3144, 126
      %v3199 = vpop.permute.xlu0 %3198
      %3200 = vrot.lane.b32.xlu0 %v3145, 126
      %v3201 = vpop.permute.xlu0 %3200
      %3202 = vrot.lane.b32.xlu0 %v3146, 126
      %v3203 = vpop.permute.xlu0 %3202
      %3204 = vrot.lane.b32.xlu0 %v3147, 126
      %v3205 = vpop.permute.xlu0 %3204
      %3206 = vrot.lane.b32.xlu0 %v3148, 126
      %v3207 = vpop.permute.xlu0 %3206
      %3208 = vrot.lane.b32.xlu0 %v3149, 126
      %v3209 = vpop.permute.xlu0 %3208
      %3210 = vrot.lane.b32.xlu0 %v3150, 126
      %v3211 = vpop.permute.xlu0 %3210
      %3212 = vrot.lane.b32.xlu0 %v3151, 126
      %v3213 = vpop.permute.xlu0 %3212
      %3214 = vrot.lane.b32.xlu0 %v3152, 126
      %v3215 = vpop.permute.xlu0 %3214
      %3216 = vrot.lane.b32.xlu0 %v3153, 126
      %v3217 = vpop.permute.xlu0 %3216
      %3218 = vrot.lane.b32.xlu0 %v3154, 126
      %v3219 = vpop.permute.xlu0 %3218
      %3220 = vrot.lane.b32.xlu0 %v3155, 126
      %v3221 = vpop.permute.xlu0 %3220
      %3222 = vrot.lane.b32.xlu0 %v3156, 126
      %v3223 = vpop.permute.xlu0 %3222
      %3224 = vrot.lane.b32.xlu0 %v3157, 126
      %v3225 = vpop.permute.xlu0 %3224
      %3226 = vrot.lane.b32.xlu0 %v3158, 126
      %v3227 = vpop.permute.xlu0 %3226
      %3228 = vrot.lane.b32.xlu0 %v3159, 126
      %v3229 = vpop.permute.xlu0 %3228
      %3230 = vrot.lane.b32.xlu0 %v3160, 126
      %v3231 = vpop.permute.xlu0 %3230
      %3232 = vrot.lane.b32.xlu0 %v3161, 126
      %v3233 = vpop.permute.xlu0 %3232
      %v3258 = vmul.f32 %v1083, %v3187
      %v3259 = vmul.f32 %v1086, %v3189
      %v3260 = vmul.f32 %v1091, %v3191
      %v3261 = vmul.f32 %v1094, %v3193
      %v3262 = vmul.f32 %v1099, %v3195
      %v3263 = vmul.f32 %v1102, %v3197
      %v3264 = vmul.f32 %v1107, %v3199
      %v3265 = vmul.f32 %v1110, %v3201
      %v3266 = vmul.f32 %v1115, %v3203
      %v3267 = vmul.f32 %v1118, %v3205
      %v3268 = vmul.f32 %v1123, %v3207
      %v3269 = vmul.f32 %v1126, %v3209
      %v3270 = vmul.f32 %v1131, %v3211
      %v3271 = vmul.f32 %v1134, %v3213
      %v3272 = vmul.f32 %v1139, %v3215
      %v3273 = vmul.f32 %v1142, %v3217
      %v3274 = vmul.f32 %v1147, %v3219
      %v3275 = vmul.f32 %v1150, %v3221
      %v3276 = vmul.f32 %v1155, %v3223
      %v3277 = vmul.f32 %v1158, %v3225
      %v3278 = vmul.f32 %v1163, %v3227
      %v3279 = vmul.f32 %v1166, %v3229
      %v3280 = vmul.f32 %v1171, %v3231
      %v3281 = vmul.f32 %v1174, %v3233
      %v3282 = vpack.c.bf16 %v3259, %v3258
      %v3283 = vpack.c.bf16 %v3261, %v3260
      %v3284 = vpack.c.bf16 %v3263, %v3262
      %v3285 = vpack.c.bf16 %v3265, %v3264
      %v3286 = vpack.c.bf16 %v3267, %v3266
      %v3287 = vpack.c.bf16 %v3269, %v3268
      %v3288 = vpack.c.bf16 %v3271, %v3270
      %v3289 = vpack.c.bf16 %v3273, %v3272
      %v3290 = vpack.c.bf16 %v3275, %v3274
      %v3291 = vpack.c.bf16 %v3277, %v3276
      %v3292 = vpack.c.bf16 %v3279, %v3278
      %v3293 = vpack.c.bf16 %v3281, %v3280
      %v3294 = vld [vmem:[%s7] sm:$0x1]
      %v3295 = vld [vmem:[%s8] sm:$0x1]
      %v3297 = vlaneseq
      %v3298 = vshrl.u32 %v3297, 7
      %v3299 = vsub.s32 0, %v3298
      %v3300 = vrot.slane %v3295, %v3299
      %vm3302 = vcmask 15360
      %v3304 = vsel %vm3302, %v3282, 0
      %v3307 = vsel %vm3302, %v3283, 0
      %v3310 = vsel %vm3302, %v3284, 0
      %v3313 = vsel %vm3302, %v3285, 0
      %v3316 = vsel %vm3302, %v3286, 0
      %v3319 = vsel %vm3302, %v3287, 0
      %v3322 = vsel %vm3302, %v3288, 0
      %v3325 = vsel %vm3302, %v3289, 0
      %v3328 = vsel %vm3302, %v3290, 0
      %v3331 = vsel %vm3302, %v3291, 0
      %v3334 = vsel %vm3302, %v3292, 0
      %v3337 = vsel %vm3302, %v3293, 0
      %vm3339 = vcmask 1040384
      %v3341 = vsel %vm3339, %v3294, 0
      %3343 = vmatprep.subr.bf16.mxu0 0
      %3344 = vmatpush1.bf16.msra.mxu0 %v3341
      %3345 = vmatprep.subr.bf16.mxu0 0
      %3346 = vmatpush1.bf16.msra.mxu0 0
      %3347 = vmatprep.subr.bf16.mxu0 0
      %3348 = vmatpush1.bf16.msra.mxu0 0
      %3349 = vmatprep.subr.bf16.mxu0 0
      %3350 = vmatpush1.bf16.msra.mxu0 0
      %3351 = vmatprep.subr.bf16.mxu0 0
      %3352 = vmatpush1.bf16.msra.mxu0 0
      %3353 = vmatprep.subr.bf16.mxu0 0
      %3354 = vmatpush1.bf16.msra.mxu0 0
      %3355 = vmatprep.subr.bf16.mxu0 0
      %3356 = vmatpush1.bf16.msra.mxu0 0
      %3357 = vmatprep.subr.bf16.mxu0 0
      %3358 = vmatpush1.bf16.msra.mxu0 0
      %3359 = vmatprep.subr.bf16.mxu0 0
      %3360 = vmatpush1.bf16.msra.mxu0 0
      %3361 = vmatprep.subr.bf16.mxu0 0
      %3362 = vmatpush1.bf16.msra.mxu0 0
      %3363 = vmatprep.subr.bf16.mxu0 0
      %3364 = vmatpush1.bf16.msra.mxu0 0
      %3365 = vmatprep.subr.bf16.mxu0 0
      %3366 = vmatpush1.bf16.msra.mxu0 0
      %3367 = vmatprep.subr.bf16.mxu0 0
      %3368 = vmatpush1.bf16.msra.mxu0 0
      %3369 = vmatprep.subr.bf16.mxu0 0
      %3370 = vmatpush1.bf16.msra.mxu0 0
      %3371 = vmatprep.subr.bf16.mxu0 0
      %3372 = vmatpush1.bf16.msra.mxu0 0
      %3373 = vmatprep.subr.bf16.mxu0 0
      %3374 = vmatpush1.bf16.msra.mxu0 0
      %3375 = vmatprep.mubr.bf16.mxu0 0
      %3376 = vmatmul.mubr.bf16.gmra.mrb[0].mxu0 %v3304
      %v3377 = vpop.f32.mrb[0].mxu0
      %v3378 = vadd.f32 %v3300, %v3377
      %v3379 = vpop.f32.mrb[0].mxu0
      %v3380 = vpop.f32.mrb[0].mxu0
      %v3381 = vadd.f32 %v3300, %v3380
      %v3382 = vpop.f32.mrb[0].mxu0
      %3383 = vmatprep.mubr.bf16.mxu0 0
      %3384 = vmatmul.mubr.bf16.gmra.mrb[0].mxu0 %v3307
      %v3385 = vpop.f32.mrb[0].mxu0
      %v3386 = vadd.f32 %v3300, %v3385
      %v3387 = vpop.f32.mrb[0].mxu0
      %v3388 = vpop.f32.mrb[0].mxu0
      %v3389 = vadd.f32 %v3300, %v3388
      %v3390 = vpop.f32.mrb[0].mxu0
      %3391 = vmatprep.mubr.bf16.mxu0 0
      %3392 = vmatmul.mubr.bf16.gmra.mrb[0].mxu0 %v3310
      %v3393 = vpop.f32.mrb[0].mxu0
      %v3394 = vadd.f32 %v3300, %v3393
      %v3395 = vpop.f32.mrb[0].mxu0
      %v3396 = vpop.f32.mrb[0].mxu0
      %v3397 = vadd.f32 %v3300, %v3396
      %v3398 = vpop.f32.mrb[0].mxu0
      %3399 = vmatprep.mubr.bf16.mxu0 0
      %3400 = vmatmul.mubr.bf16.gmra.mrb[0].mxu0 %v3313
      %v3401 = vpop.f32.mrb[0].mxu0
      %v3402 = vadd.f32 %v3300, %v3401
      %v3403 = vpop.f32.mrb[0].mxu0
      %v3404 = vpop.f32.mrb[0].mxu0
      %v3405 = vadd.f32 %v3300, %v3404
      %v3406 = vpop.f32.mrb[0].mxu0
      %3407 = vmatprep.mubr.bf16.mxu0 0
      %3408 = vmatmul.mubr.bf16.gmra.mrb[0].mxu0 %v3316
      %v3409 = vpop.f32.mrb[0].mxu0
      %v3410 = vadd.f32 %v3300, %v3409
      %v3411 = vpop.f32.mrb[0].mxu0
      %v3412 = vpop.f32.mrb[0].mxu0
      %v3413 = vadd.f32 %v3300, %v3412
      %v3414 = vpop.f32.mrb[0].mxu0
      %3415 = vmatprep.mubr.bf16.mxu0 0
      %3416 = vmatmul.mubr.bf16.gmra.mrb[0].mxu0 %v3319
      %v3417 = vpop.f32.mrb[0].mxu0
      %v3418 = vadd.f32 %v3300, %v3417
      %v3419 = vpop.f32.mrb[0].mxu0
      %v3420 = vpop.f32.mrb[0].mxu0
      %v3421 = vadd.f32 %v3300, %v3420
      %v3422 = vpop.f32.mrb[0].mxu0
      %3423 = vmatprep.mubr.bf16.mxu0 0
      %3424 = vmatmul.mubr.bf16.gmra.mrb[0].mxu0 %v3322
      %v3425 = vpop.f32.mrb[0].mxu0
      %v3426 = vadd.f32 %v3300, %v3425
      %v3427 = vpop.f32.mrb[0].mxu0
      %v3428 = vpop.f32.mrb[0].mxu0
      %v3429 = vadd.f32 %v3300, %v3428
      %v3430 = vpop.f32.mrb[0].mxu0
      %3431 = vmatprep.mubr.bf16.mxu0 0
      %3432 = vmatmul.mubr.bf16.gmra.mrb[0].mxu0 %v3325
      %v3433 = vpop.f32.mrb[0].mxu0
      %v3434 = vadd.f32 %v3300, %v3433
      %v3435 = vpop.f32.mrb[0].mxu0
      %v3436 = vpop.f32.mrb[0].mxu0
      %v3437 = vadd.f32 %v3300, %v3436
      %v3438 = vpop.f32.mrb[0].mxu0
      %3439 = vmatprep.mubr.bf16.mxu0 0
      %3440 = vmatmul.mubr.bf16.gmra.mrb[0].mxu0 %v3328
      %v3441 = vpop.f32.mrb[0].mxu0
      %v3442 = vadd.f32 %v3300, %v3441
      %v3443 = vpop.f32.mrb[0].mxu0
      %v3444 = vpop.f32.mrb[0].mxu0
      %v3445 = vadd.f32 %v3300, %v3444
      %v3446 = vpop.f32.mrb[0].mxu0
      %3447 = vmatprep.mubr.bf16.mxu0 0
      %3448 = vmatmul.mubr.bf16.gmra.mrb[0].mxu0 %v3331
      %v3449 = vpop.f32.mrb[0].mxu0
      %v3450 = vadd.f32 %v3300, %v3449
      %v3451 = vpop.f32.mrb[0].mxu0
      %v3452 = vpop.f32.mrb[0].mxu0
      %v3453 = vadd.f32 %v3300, %v3452
      %v3454 = vpop.f32.mrb[0].mxu0
      %3455 = vmatprep.mubr.bf16.mxu0 0
      %3456 = vmatmul.mubr.bf16.gmra.mrb[0].mxu0 %v3334
      %v3457 = vpop.f32.mrb[0].mxu0
      %v3458 = vadd.f32 %v3300, %v3457
      %v3459 = vpop.f32.mrb[0].mxu0
      %v3460 = vpop.f32.mrb[0].mxu0
      %v3461 = vadd.f32 %v3300, %v3460
      %v3462 = vpop.f32.mrb[0].mxu0
      %3463 = vmatprep.mubr.bf16.mxu0 0
      %3464 = vmatmul.mubr.bf16.gmra.mrb[0].mxu0 %v3337
      %v3465 = vpop.f32.mrb[0].mxu0
      %v3466 = vadd.f32 %v3300, %v3465
      %v3467 = vpop.f32.mrb[0].mxu0
      %v3468 = vpop.f32.mrb[0].mxu0
      %v3469 = vadd.f32 %v3300, %v3468
      %v3470 = vpop.f32.mrb[0].mxu0
      %3471 = vdwg.mxu0
      %3472 = vrot.lane.b32.xlu0 %v3138, 124
      %v3473 = vpop.permute.xlu0 %3472
      %3474 = vrot.lane.b32.xlu0 %v3139, 124
      %v3475 = vpop.permute.xlu0 %3474
      %3476 = vrot.lane.b32.xlu0 %v3140, 124
      %v3477 = vpop.permute.xlu0 %3476
      %3478 = vrot.lane.b32.xlu0 %v3141, 124
      %v3479 = vpop.permute.xlu0 %3478
      %3480 = vrot.lane.b32.xlu0 %v3142, 124
      %v3481 = vpop.permute.xlu0 %3480
      %3482 = vrot.lane.b32.xlu0 %v3143, 124
      %v3483 = vpop.permute.xlu0 %3482
      %3484 = vrot.lane.b32.xlu0 %v3144, 124
      %v3485 = vpop.permute.xlu0 %3484
      %3486 = vrot.lane.b32.xlu0 %v3145, 124
      %v3487 = vpop.permute.xlu0 %3486
      %3488 = vrot.lane.b32.xlu0 %v3146, 124
      %v3489 = vpop.permute.xlu0 %3488
      %3490 = vrot.lane.b32.xlu0 %v3147, 124
      %v3491 = vpop.permute.xlu0 %3490
      %3492 = vrot.lane.b32.xlu0 %v3148, 124
      %v3493 = vpop.permute.xlu0 %3492
      %3494 = vrot.lane.b32.xlu0 %v3149, 124
      %v3495 = vpop.permute.xlu0 %3494
      %3496 = vrot.lane.b32.xlu0 %v3150, 124
      %v3497 = vpop.permute.xlu0 %3496
      %3498 = vrot.lane.b32.xlu0 %v3151, 124
      %v3499 = vpop.permute.xlu0 %3498
      %3500 = vrot.lane.b32.xlu0 %v3152, 124
      %v3501 = vpop.permute.xlu0 %3500
      %3502 = vrot.lane.b32.xlu0 %v3153, 124
      %v3503 = vpop.permute.xlu0 %3502
      %3504 = vrot.lane.b32.xlu0 %v3154, 124
      %v3505 = vpop.permute.xlu0 %3504
      %3506 = vrot.lane.b32.xlu0 %v3155, 124
      %v3507 = vpop.permute.xlu0 %3506
      %3508 = vrot.lane.b32.xlu0 %v3156, 124
      %v3509 = vpop.permute.xlu0 %3508
      %3510 = vrot.lane.b32.xlu0 %v3157, 124
      %v3511 = vpop.permute.xlu0 %3510
      %3512 = vrot.lane.b32.xlu0 %v3158, 124
      %v3513 = vpop.permute.xlu0 %3512
      %3514 = vrot.lane.b32.xlu0 %v3159, 124
      %v3515 = vpop.permute.xlu0 %3514
      %3516 = vrot.lane.b32.xlu0 %v3160, 124
      %v3517 = vpop.permute.xlu0 %3516
      %3518 = vrot.lane.b32.xlu0 %v3161, 124
      %v3519 = vpop.permute.xlu0 %3518
      %v3544 = vmul.f32 %v3378, %v3473
      %v3545 = vmul.f32 %v3381, %v3475
      %v3546 = vmul.f32 %v3386, %v3477
      %v3547 = vmul.f32 %v3389, %v3479
      %v3548 = vmul.f32 %v3394, %v3481
      %v3549 = vmul.f32 %v3397, %v3483
      %v3550 = vmul.f32 %v3402, %v3485
      %v3551 = vmul.f32 %v3405, %v3487
      %v3552 = vmul.f32 %v3410, %v3489
      %v3553 = vmul.f32 %v3413, %v3491
      %v3554 = vmul.f32 %v3418, %v3493
      %v3555 = vmul.f32 %v3421, %v3495
      %v3556 = vmul.f32 %v3426, %v3497
      %v3557 = vmul.f32 %v3429, %v3499
      %v3558 = vmul.f32 %v3434, %v3501
      %v3559 = vmul.f32 %v3437, %v3503
      %v3560 = vmul.f32 %v3442, %v3505
      %v3561 = vmul.f32 %v3445, %v3507
      %v3562 = vmul.f32 %v3450, %v3509
      %v3563 = vmul.f32 %v3453, %v3511
      %v3564 = vmul.f32 %v3458, %v3513
      %v3565 = vmul.f32 %v3461, %v3515
      %v3566 = vmul.f32 %v3466, %v3517
      %v3567 = vmul.f32 %v3469, %v3519
      %v3568 = vpack.c.bf16 %v3545, %v3544
      %v3569 = vpack.c.bf16 %v3547, %v3546
      %v3570 = vpack.c.bf16 %v3549, %v3548
      %v3571 = vpack.c.bf16 %v3551, %v3550
      %v3572 = vpack.c.bf16 %v3553, %v3552
      %v3573 = vpack.c.bf16 %v3555, %v3554
      %v3574 = vpack.c.bf16 %v3557, %v3556
      %v3575 = vpack.c.bf16 %v3559, %v3558
      %v3576 = vpack.c.bf16 %v3561, %v3560
      %v3577 = vpack.c.bf16 %v3563, %v3562
      %v3578 = vpack.c.bf16 %v3565, %v3564
      %v3579 = vpack.c.bf16 %v3567, %v3566
      %v3580 = vld [vmem:[%s9] sm:$0x3]
      %v3581 = vlaneseq
      %v3582 = vshrl.u32 %v3581, 7
      %v3583 = vsub.s32 2, %v3582
      %v3584 = vrot.slane %v472, %v3583
      %vm3585 = vcmask 31744
      %v3587 = vsel %vm3585, %v3568, 0
      %v3590 = vsel %vm3585, %v3569, 0
      %v3593 = vsel %vm3585, %v3570, 0
      %v3596 = vsel %vm3585, %v3571, 0
      %v3599 = vsel %vm3585, %v3572, 0
      %v3602 = vsel %vm3585, %v3573, 0
      %v3605 = vsel %vm3585, %v3574, 0
      %v3608 = vsel %vm3585, %v3575, 0
      %v3611 = vsel %vm3585, %v3576, 0
      %v3614 = vsel %vm3585, %v3577, 0
      %v3617 = vsel %vm3585, %v3578, 0
      %v3620 = vsel %vm3585, %v3579, 0
      %vm3622 = vcmask 1041408
      %v3624 = vsel %vm3622, %v3580, 0
      %3626 = vmatprep.subr.bf16.mxu0 0
      %3627 = vmatpush1.bf16.msra.mxu0 %v3624
      %3628 = vmatprep.subr.bf16.mxu0 0
      %3629 = vmatpush1.bf16.msra.mxu0 0
      %3630 = vmatprep.subr.bf16.mxu0 0
      %3631 = vmatpush1.bf16.msra.mxu0 0
      %3632 = vmatprep.subr.bf16.mxu0 0
      %3633 = vmatpush1.bf16.msra.mxu0 0
      %3634 = vmatprep.subr.bf16.mxu0 0
      %3635 = vmatpush1.bf16.msra.mxu0 0
      %3636 = vmatprep.subr.bf16.mxu0 0
      %3637 = vmatpush1.bf16.msra.mxu0 0
      %3638 = vmatprep.subr.bf16.mxu0 0
      %3639 = vmatpush1.bf16.msra.mxu0 0
      %3640 = vmatprep.subr.bf16.mxu0 0
      %3641 = vmatpush1.bf16.msra.mxu0 0
      %3642 = vmatprep.subr.bf16.mxu0 0
      %3643 = vmatpush1.bf16.msra.mxu0 0
      %3644 = vmatprep.subr.bf16.mxu0 0
      %3645 = vmatpush1.bf16.msra.mxu0 0
      %3646 = vmatprep.subr.bf16.mxu0 0
      %3647 = vmatpush1.bf16.msra.mxu0 0
      %3648 = vmatprep.subr.bf16.mxu0 0
      %3649 = vmatpush1.bf16.msra.mxu0 0
      %3650 = vmatprep.subr.bf16.mxu0 0
      %3651 = vmatpush1.bf16.msra.mxu0 0
      %3652 = vmatprep.subr.bf16.mxu0 0
      %3653 = vmatpush1.bf16.msra.mxu0 0
      %3654 = vmatprep.subr.bf16.mxu0 0
      %3655 = vmatpush1.bf16.msra.mxu0 0
      %3656 = vmatprep.subr.bf16.mxu0 0
      %3657 = vmatpush1.bf16.msra.mxu0 0
      %3658 = vmatprep.mubr.bf16.mxu0 0
      %3659 = vmatmul.mubr.bf16.gmra.mrb[0].mxu0 %v3587
      %v3660 = vpop.f32.mrb[0].mxu0
      %v3661 = vadd.f32 %v3584, %v3660
      %v3662 = vpop.f32.mrb[0].mxu0
      %v3663 = vpop.f32.mrb[0].mxu0
      %v3664 = vadd.f32 %v3584, %v3663
      %v3665 = vpop.f32.mrb[0].mxu0
      %3666 = vmatprep.mubr.bf16.mxu0 0
      %3667 = vmatmul.mubr.bf16.gmra.mrb[0].mxu0 %v3590
      %v3668 = vpop.f32.mrb[0].mxu0
      %v3669 = vadd.f32 %v3584, %v3668
      %v3670 = vpop.f32.mrb[0].mxu0
      %v3671 = vpop.f32.mrb[0].mxu0
      %v3672 = vadd.f32 %v3584, %v3671
      %v3673 = vpop.f32.mrb[0].mxu0
      %3674 = vmatprep.mubr.bf16.mxu0 0
      %3675 = vmatmul.mubr.bf16.gmra.mrb[0].mxu0 %v3593
      %v3676 = vpop.f32.mrb[0].mxu0
      %v3677 = vadd.f32 %v3584, %v3676
      %v3678 = vpop.f32.mrb[0].mxu0
      %v3679 = vpop.f32.mrb[0].mxu0
      %v3680 = vadd.f32 %v3584, %v3679
      %v3681 = vpop.f32.mrb[0].mxu0
      %3682 = vmatprep.mubr.bf16.mxu0 0
      %3683 = vmatmul.mubr.bf16.gmra.mrb[0].mxu0 %v3596
      %v3684 = vpop.f32.mrb[0].mxu0
      %v3685 = vadd.f32 %v3584, %v3684
      %v3686 = vpop.f32.mrb[0].mxu0
      %v3687 = vpop.f32.mrb[0].mxu0
      %v3688 = vadd.f32 %v3584, %v3687
      %v3689 = vpop.f32.mrb[0].mxu0
      %3690 = vmatprep.mubr.bf16.mxu0 0
      %3691 = vmatmul.mubr.bf16.gmra.mrb[0].mxu0 %v3599
      %v3692 = vpop.f32.mrb[0].mxu0
      %v3693 = vadd.f32 %v3584, %v3692
      %v3694 = vpop.f32.mrb[0].mxu0
      %v3695 = vpop.f32.mrb[0].mxu0
      %v3696 = vadd.f32 %v3584, %v3695
      %v3697 = vpop.f32.mrb[0].mxu0
      %3698 = vmatprep.mubr.bf16.mxu0 0
      %3699 = vmatmul.mubr.bf16.gmra.mrb[0].mxu0 %v3602
      %v3700 = vpop.f32.mrb[0].mxu0
      %v3701 = vadd.f32 %v3584, %v3700
      %v3702 = vpop.f32.mrb[0].mxu0
      %v3703 = vpop.f32.mrb[0].mxu0
      %v3704 = vadd.f32 %v3584, %v3703
      %v3705 = vpop.f32.mrb[0].mxu0
      %3706 = vmatprep.mubr.bf16.mxu0 0
      %3707 = vmatmul.mubr.bf16.gmra.mrb[0].mxu0 %v3605
      %v3708 = vpop.f32.mrb[0].mxu0
      %v3709 = vadd.f32 %v3584, %v3708
      %v3710 = vpop.f32.mrb[0].mxu0
      %v3711 = vpop.f32.mrb[0].mxu0
      %v3712 = vadd.f32 %v3584, %v3711
      %v3713 = vpop.f32.mrb[0].mxu0
      %3714 = vmatprep.mubr.bf16.mxu0 0
      %3715 = vmatmul.mubr.bf16.gmra.mrb[0].mxu0 %v3608
      %v3716 = vpop.f32.mrb[0].mxu0
      %v3717 = vadd.f32 %v3584, %v3716
      %v3718 = vpop.f32.mrb[0].mxu0
      %v3719 = vpop.f32.mrb[0].mxu0
      %v3720 = vadd.f32 %v3584, %v3719
      %v3721 = vpop.f32.mrb[0].mxu0
      %3722 = vmatprep.mubr.bf16.mxu0 0
      %3723 = vmatmul.mubr.bf16.gmra.mrb[0].mxu0 %v3611
      %v3724 = vpop.f32.mrb[0].mxu0
      %v3725 = vadd.f32 %v3584, %v3724
      %v3726 = vpop.f32.mrb[0].mxu0
      %v3727 = vpop.f32.mrb[0].mxu0
      %v3728 = vadd.f32 %v3584, %v3727
      %v3729 = vpop.f32.mrb[0].mxu0
      %3730 = vmatprep.mubr.bf16.mxu0 0
      %3731 = vmatmul.mubr.bf16.gmra.mrb[0].mxu0 %v3614
      %v3732 = vpop.f32.mrb[0].mxu0
      %v3733 = vadd.f32 %v3584, %v3732
      %v3734 = vpop.f32.mrb[0].mxu0
      %v3735 = vpop.f32.mrb[0].mxu0
      %v3736 = vadd.f32 %v3584, %v3735
      %v3737 = vpop.f32.mrb[0].mxu0
      %3738 = vmatprep.mubr.bf16.mxu0 0
      %3739 = vmatmul.mubr.bf16.gmra.mrb[0].mxu0 %v3617
      %v3740 = vpop.f32.mrb[0].mxu0
      %v3741 = vadd.f32 %v3584, %v3740
      %v3742 = vpop.f32.mrb[0].mxu0
      %v3743 = vpop.f32.mrb[0].mxu0
      %v3744 = vadd.f32 %v3584, %v3743
      %v3745 = vpop.f32.mrb[0].mxu0
      %3746 = vmatprep.mubr.bf16.mxu0 0
      %3747 = vmatmul.mubr.bf16.gmra.mrb[0].mxu0 %v3620
      %v3748 = vpop.f32.mrb[0].mxu0
      %v3749 = vadd.f32 %v3584, %v3748
      %v3750 = vpop.f32.mrb[0].mxu0
      %v3751 = vpop.f32.mrb[0].mxu0
      %v3752 = vadd.f32 %v3584, %v3751
      %v3753 = vpop.f32.mrb[0].mxu0
      %3754 = vdwg.mxu0
      %3755 = vrot.lane.b32.xlu0 %v3138, 120
      %v3756 = vpop.permute.xlu0 %3755
      %3757 = vrot.lane.b32.xlu0 %v3139, 120
      %v3758 = vpop.permute.xlu0 %3757
      %3759 = vrot.lane.b32.xlu0 %v3140, 120
      %v3760 = vpop.permute.xlu0 %3759
      %3761 = vrot.lane.b32.xlu0 %v3141, 120
      %v3762 = vpop.permute.xlu0 %3761
      %3763 = vrot.lane.b32.xlu0 %v3142, 120
      %v3764 = vpop.permute.xlu0 %3763
      %3765 = vrot.lane.b32.xlu0 %v3143, 120
      %v3766 = vpop.permute.xlu0 %3765
      %3767 = vrot.lane.b32.xlu0 %v3144, 120
      %v3768 = vpop.permute.xlu0 %3767
      %3769 = vrot.lane.b32.xlu0 %v3145, 120
      %v3770 = vpop.permute.xlu0 %3769
      %3771 = vrot.lane.b32.xlu0 %v3146, 120
      %v3772 = vpop.permute.xlu0 %3771
      %3773 = vrot.lane.b32.xlu0 %v3147, 120
      %v3774 = vpop.permute.xlu0 %3773
      %3775 = vrot.lane.b32.xlu0 %v3148, 120
      %v3776 = vpop.permute.xlu0 %3775
      %3777 = vrot.lane.b32.xlu0 %v3149, 120
      %v3778 = vpop.permute.xlu0 %3777
      %3779 = vrot.lane.b32.xlu0 %v3150, 120
      %v3780 = vpop.permute.xlu0 %3779
      %3781 = vrot.lane.b32.xlu0 %v3151, 120
      %v3782 = vpop.permute.xlu0 %3781
      %3783 = vrot.lane.b32.xlu0 %v3152, 120
      %v3784 = vpop.permute.xlu0 %3783
      %3785 = vrot.lane.b32.xlu0 %v3153, 120
      %v3786 = vpop.permute.xlu0 %3785
      %3787 = vrot.lane.b32.xlu0 %v3154, 120
      %v3788 = vpop.permute.xlu0 %3787
      %3789 = vrot.lane.b32.xlu0 %v3155, 120
      %v3790 = vpop.permute.xlu0 %3789
      %3791 = vrot.lane.b32.xlu0 %v3156, 120
      %v3792 = vpop.permute.xlu0 %3791
      %3793 = vrot.lane.b32.xlu0 %v3157, 120
      %v3794 = vpop.permute.xlu0 %3793
      %3795 = vrot.lane.b32.xlu0 %v3158, 120
      %v3796 = vpop.permute.xlu0 %3795
      %3797 = vrot.lane.b32.xlu0 %v3159, 120
      %v3798 = vpop.permute.xlu0 %3797
      %3799 = vrot.lane.b32.xlu0 %v3160, 120
      %v3800 = vpop.permute.xlu0 %3799
      %3801 = vrot.lane.b32.xlu0 %v3161, 120
      %v3802 = vpop.permute.xlu0 %3801
      %v3827 = vmul.f32 %v3661, %v3756
      %v3828 = vmul.f32 %v3664, %v3758
      %v3829 = vmul.f32 %v3669, %v3760
      %v3830 = vmul.f32 %v3672, %v3762
      %v3831 = vmul.f32 %v3677, %v3764
      %v3832 = vmul.f32 %v3680, %v3766
      %v3833 = vmul.f32 %v3685, %v3768
      %v3834 = vmul.f32 %v3688, %v3770
      %v3835 = vmul.f32 %v3693, %v3772
      %v3836 = vmul.f32 %v3696, %v3774
      %v3837 = vmul.f32 %v3701, %v3776
      %v3838 = vmul.f32 %v3704, %v3778
      %v3839 = vmul.f32 %v3709, %v3780
      %v3840 = vmul.f32 %v3712, %v3782
      %v3841 = vmul.f32 %v3717, %v3784
      %v3842 = vmul.f32 %v3720, %v3786
      %v3843 = vmul.f32 %v3725, %v3788
      %v3844 = vmul.f32 %v3728, %v3790
      %v3845 = vmul.f32 %v3733, %v3792
      %v3846 = vmul.f32 %v3736, %v3794
      %v3847 = vmul.f32 %v3741, %v3796
      %v3848 = vmul.f32 %v3744, %v3798
      %v3849 = vmul.f32 %v3749, %v3800
      %v3850 = vmul.f32 %v3752, %v3802
      %v3851 = vpack.c.bf16 %v3828, %v3827
      %v3852 = vpack.c.bf16 %v3830, %v3829
      %v3853 = vpack.c.bf16 %v3832, %v3831
      %v3854 = vpack.c.bf16 %v3834, %v3833
      %v3855 = vpack.c.bf16 %v3836, %v3835
      %v3856 = vpack.c.bf16 %v3838, %v3837
      %v3857 = vpack.c.bf16 %v3840, %v3839
      %v3858 = vpack.c.bf16 %v3842, %v3841
      %v3859 = vpack.c.bf16 %v3844, %v3843
      %v3860 = vpack.c.bf16 %v3846, %v3845
      %v3861 = vpack.c.bf16 %v3848, %v3847
      %v3862 = vpack.c.bf16 %v3850, %v3849
      %v3863 = vld [vmem:[%s10] sm:$0xf]
      %v3864 = vlaneseq
      %v3865 = vshrl.u32 %v3864, 7
      %v3866 = vsub.s32 3, %v3865
      %v3867 = vrot.slane %v472, %v3866
      %v3869 = vsel %vm546, %v3851, 0
      %v3872 = vsel %vm546, %v3852, 0
      %v3875 = vsel %vm546, %v3853, 0
      %v3878 = vsel %vm546, %v3854, 0
      %v3881 = vsel %vm546, %v3855, 0
      %v3884 = vsel %vm546, %v3856, 0
      %v3887 = vsel %vm546, %v3857, 0
      %v3890 = vsel %vm546, %v3858, 0
      %v3893 = vsel %vm546, %v3859, 0
      %v3896 = vsel %vm546, %v3860, 0
      %v3899 = vsel %vm546, %v3861, 0
      %v3902 = vsel %vm546, %v3862, 0
      %v3905 = vsel %vm1044, %v3863, 0
      %3907 = vmatprep.subr.bf16.mxu0 0
      %3908 = vmatpush1.bf16.msra.mxu0 %v3905
      %3909 = vmatprep.subr.bf16.mxu0 0
      %3910 = vmatpush1.bf16.msra.mxu0 0
      %3911 = vmatprep.subr.bf16.mxu0 0
      %3912 = vmatpush1.bf16.msra.mxu0 0
      %3913 = vmatprep.subr.bf16.mxu0 0
      %3914 = vmatpush1.bf16.msra.mxu0 0
      %3915 = vmatprep.subr.bf16.mxu0 0
      %3916 = vmatpush1.bf16.msra.mxu0 0
      %3917 = vmatprep.subr.bf16.mxu0 0
      %3918 = vmatpush1.bf16.msra.mxu0 0
      %3919 = vmatprep.subr.bf16.mxu0 0
      %3920 = vmatpush1.bf16.msra.mxu0 0
      %3921 = vmatprep.subr.bf16.mxu0 0
      %3922 = vmatpush1.bf16.msra.mxu0 0
      %3923 = vmatprep.subr.bf16.mxu0 0
      %3924 = vmatpush1.bf16.msra.mxu0 0
      %3925 = vmatprep.subr.bf16.mxu0 0
      %3926 = vmatpush1.bf16.msra.mxu0 0
      %3927 = vmatprep.subr.bf16.mxu0 0
      %3928 = vmatpush1.bf16.msra.mxu0 0
      %3929 = vmatprep.subr.bf16.mxu0 0
      %3930 = vmatpush1.bf16.msra.mxu0 0
      %3931 = vmatprep.subr.bf16.mxu0 0
      %3932 = vmatpush1.bf16.msra.mxu0 0
      %3933 = vmatprep.subr.bf16.mxu0 0
      %3934 = vmatpush1.bf16.msra.mxu0 0
      %3935 = vmatprep.subr.bf16.mxu0 0
      %3936 = vmatpush1.bf16.msra.mxu0 0
      %3937 = vmatprep.subr.bf16.mxu0 0
      %3938 = vmatpush1.bf16.msra.mxu0 0
      %3939 = vmatprep.mubr.bf16.mxu0 0
      %3940 = vmatmul.mubr.bf16.gmra.mrb[0].mxu0 %v3869
      %v3941 = vpop.f32.mrb[0].mxu0
      %v3942 = vadd.f32 %v3867, %v3941
      %v3943 = vpop.f32.mrb[0].mxu0
      %v3944 = vpop.f32.mrb[0].mxu0
      %v3945 = vadd.f32 %v3867, %v3944
      %v3946 = vpop.f32.mrb[0].mxu0
      %3947 = vmatprep.mubr.bf16.mxu0 0
      %3948 = vmatmul.mubr.bf16.gmra.mrb[0].mxu0 %v3872
      %v3949 = vpop.f32.mrb[0].mxu0
      %v3950 = vadd.f32 %v3867, %v3949
      %v3951 = vpop.f32.mrb[0].mxu0
      %v3952 = vpop.f32.mrb[0].mxu0
      %v3953 = vadd.f32 %v3867, %v3952
      %v3954 = vpop.f32.mrb[0].mxu0
      %3955 = vmatprep.mubr.bf16.mxu0 0
      %3956 = vmatmul.mubr.bf16.gmra.mrb[0].mxu0 %v3875
      %v3957 = vpop.f32.mrb[0].mxu0
      %v3958 = vadd.f32 %v3867, %v3957
      %v3959 = vpop.f32.mrb[0].mxu0
      %v3960 = vpop.f32.mrb[0].mxu0
      %v3961 = vadd.f32 %v3867, %v3960
      %v3962 = vpop.f32.mrb[0].mxu0
      %3963 = vmatprep.mubr.bf16.mxu0 0
      %3964 = vmatmul.mubr.bf16.gmra.mrb[0].mxu0 %v3878
      %v3965 = vpop.f32.mrb[0].mxu0
      %v3966 = vadd.f32 %v3867, %v3965
      %v3967 = vpop.f32.mrb[0].mxu0
      %v3968 = vpop.f32.mrb[0].mxu0
      %v3969 = vadd.f32 %v3867, %v3968
      %v3970 = vpop.f32.mrb[0].mxu0
      %3971 = vmatprep.mubr.bf16.mxu0 0
      %3972 = vmatmul.mubr.bf16.gmra.mrb[0].mxu0 %v3881
      %v3973 = vpop.f32.mrb[0].mxu0
      %v3974 = vadd.f32 %v3867, %v3973
      %v3975 = vpop.f32.mrb[0].mxu0
      %v3976 = vpop.f32.mrb[0].mxu0
      %v3977 = vadd.f32 %v3867, %v3976
      %v3978 = vpop.f32.mrb[0].mxu0
      %3979 = vmatprep.mubr.bf16.mxu0 0
      %3980 = vmatmul.mubr.bf16.gmra.mrb[0].mxu0 %v3884
      %v3981 = vpop.f32.mrb[0].mxu0
      %v3982 = vadd.f32 %v3867, %v3981
      %v3983 = vpop.f32.mrb[0].mxu0
      %v3984 = vpop.f32.mrb[0].mxu0
      %v3985 = vadd.f32 %v3867, %v3984
      %v3986 = vpop.f32.mrb[0].mxu0
      %3987 = vmatprep.mubr.bf16.mxu0 0
      %3988 = vmatmul.mubr.bf16.gmra.mrb[0].mxu0 %v3887
      %v3989 = vpop.f32.mrb[0].mxu0
      %v3990 = vadd.f32 %v3867, %v3989
      %v3991 = vpop.f32.mrb[0].mxu0
      %v3992 = vpop.f32.mrb[0].mxu0
      %v3993 = vadd.f32 %v3867, %v3992
      %v3994 = vpop.f32.mrb[0].mxu0
      %3995 = vmatprep.mubr.bf16.mxu0 0
      %3996 = vmatmul.mubr.bf16.gmra.mrb[0].mxu0 %v3890
      %v3997 = vpop.f32.mrb[0].mxu0
      %v3998 = vadd.f32 %v3867, %v3997
      %v3999 = vpop.f32.mrb[0].mxu0
      %v4000 = vpop.f32.mrb[0].mxu0
      %v4001 = vadd.f32 %v3867, %v4000
      %v4002 = vpop.f32.mrb[0].mxu0
      %4003 = vmatprep.mubr.bf16.mxu0 0
      %4004 = vmatmul.mubr.bf16.gmra.mrb[0].mxu0 %v3893
      %v4005 = vpop.f32.mrb[0].mxu0
      %v4006 = vadd.f32 %v3867, %v4005
      %v4007 = vpop.f32.mrb[0].mxu0
      %v4008 = vpop.f32.mrb[0].mxu0
      %v4009 = vadd.f32 %v3867, %v4008
      %v4010 = vpop.f32.mrb[0].mxu0
      %4011 = vmatprep.mubr.bf16.mxu0 0
      %4012 = vmatmul.mubr.bf16.gmra.mrb[0].mxu0 %v3896
      %v4013 = vpop.f32.mrb[0].mxu0
      %v4014 = vadd.f32 %v3867, %v4013
      %v4015 = vpop.f32.mrb[0].mxu0
      %v4016 = vpop.f32.mrb[0].mxu0
      %v4017 = vadd.f32 %v3867, %v4016
      %v4018 = vpop.f32.mrb[0].mxu0
      %4019 = vmatprep.mubr.bf16.mxu0 0
      %4020 = vmatmul.mubr.bf16.gmra.mrb[0].mxu0 %v3899
      %v4021 = vpop.f32.mrb[0].mxu0
      %v4022 = vadd.f32 %v3867, %v4021
      %v4023 = vpop.f32.mrb[0].mxu0
      %v4024 = vpop.f32.mrb[0].mxu0
      %v4025 = vadd.f32 %v3867, %v4024
      %v4026 = vpop.f32.mrb[0].mxu0
      %4027 = vmatprep.mubr.bf16.mxu0 0
      %4028 = vmatmul.mubr.bf16.gmra.mrb[0].mxu0 %v3902
      %v4029 = vpop.f32.mrb[0].mxu0
      %v4030 = vadd.f32 %v3867, %v4029
      %v4031 = vpop.f32.mrb[0].mxu0
      %v4032 = vpop.f32.mrb[0].mxu0
      %v4033 = vadd.f32 %v3867, %v4032
      %v4034 = vpop.f32.mrb[0].mxu0
      %4035 = vdwg.mxu0
      %v4036 = vlaneseq
      %v4037 = vshrl.u32 %v4036, 7
      %v4038 = vsub.s32 4, %v4037
      %v4039 = vrot.slane %v472, %v4038
      %v4040 = vmul.f32 %v4039, %v3942
      %v4041 = vmul.f32 %v4039, %v3945
      %v4042 = vmul.f32 %v4039, %v3950
      %v4043 = vmul.f32 %v4039, %v3953
      %v4044 = vmul.f32 %v4039, %v3958
      %v4045 = vmul.f32 %v4039, %v3961
      %v4046 = vmul.f32 %v4039, %v3966
      %v4047 = vmul.f32 %v4039, %v3969
      %v4048 = vmul.f32 %v4039, %v3974
      %v4049 = vmul.f32 %v4039, %v3977
      %v4050 = vmul.f32 %v4039, %v3982
      %v4051 = vmul.f32 %v4039, %v3985
      %v4052 = vmul.f32 %v4039, %v3990
      %v4053 = vmul.f32 %v4039, %v3993
      %v4054 = vmul.f32 %v4039, %v3998
      %v4055 = vmul.f32 %v4039, %v4001
      %v4056 = vmul.f32 %v4039, %v4006
      %v4057 = vmul.f32 %v4039, %v4009
      %v4058 = vmul.f32 %v4039, %v4014
      %v4059 = vmul.f32 %v4039, %v4017
      %v4060 = vmul.f32 %v4039, %v4022
      %v4061 = vmul.f32 %v4039, %v4025
      %v4062 = vmul.f32 %v4039, %v4030
      %v4063 = vmul.f32 %v4039, %v4033
      %v4064 = vadd.f32 %v522, %v4040
      %v4065 = vadd.f32 %v523, %v4041
      %v4066 = vadd.f32 %v524, %v4042
      %v4067 = vadd.f32 %v525, %v4043
      %v4068 = vadd.f32 %v526, %v4044
      %v4069 = vadd.f32 %v527, %v4045
      %v4070 = vadd.f32 %v528, %v4046
      %v4071 = vadd.f32 %v529, %v4047
      %v4072 = vadd.f32 %v530, %v4048
      %v4073 = vadd.f32 %v531, %v4049
      %v4074 = vadd.f32 %v532, %v4050
      %v4075 = vadd.f32 %v533, %v4051
      %v4076 = vadd.f32 %v534, %v4052
      %v4077 = vadd.f32 %v535, %v4053
      %v4078 = vadd.f32 %v536, %v4054
      %v4079 = vadd.f32 %v537, %v4055
      %v4080 = vadd.f32 %v538, %v4056
      %v4081 = vadd.f32 %v539, %v4057
      %v4082 = vadd.f32 %v540, %v4058
      %v4083 = vadd.f32 %v541, %v4059
      %v4084 = vadd.f32 %v542, %v4060
      %v4085 = vadd.f32 %v543, %v4061
      %v4086 = vadd.f32 %v544, %v4062
      %v4087 = vadd.f32 %v545, %v4063
      %v4088 = vsel %vm546, %v4064, 0.0
      %4089 = vadd.xlane.f32.xlu0 %v4088
      %v4090 = vpop.xlane.xlu0 %4089
      %v4091 = vsel %vm546, %v4065, 0.0
      %4092 = vadd.xlane.f32.xlu0 %v4091
      %v4093 = vpop.xlane.xlu0 %4092
      %v4094 = vsel %vm546, %v4066, 0.0
      %4095 = vadd.xlane.f32.xlu0 %v4094
      %v4096 = vpop.xlane.xlu0 %4095
      %v4097 = vsel %vm546, %v4067, 0.0
      %4098 = vadd.xlane.f32.xlu0 %v4097
      %v4099 = vpop.xlane.xlu0 %4098
      %v4100 = vsel %vm546, %v4068, 0.0
      %4101 = vadd.xlane.f32.xlu0 %v4100
      %v4102 = vpop.xlane.xlu0 %4101
      %v4103 = vsel %vm546, %v4069, 0.0
      %4104 = vadd.xlane.f32.xlu0 %v4103
      %v4105 = vpop.xlane.xlu0 %4104
      %v4106 = vsel %vm546, %v4070, 0.0
      %4107 = vadd.xlane.f32.xlu0 %v4106
      %v4108 = vpop.xlane.xlu0 %4107
      %v4109 = vsel %vm546, %v4071, 0.0
      %4110 = vadd.xlane.f32.xlu0 %v4109
      %v4111 = vpop.xlane.xlu0 %4110
      %v4112 = vsel %vm546, %v4072, 0.0
      %4113 = vadd.xlane.f32.xlu0 %v4112
      %v4114 = vpop.xlane.xlu0 %4113
      %v4115 = vsel %vm546, %v4073, 0.0
      %4116 = vadd.xlane.f32.xlu0 %v4115
      %v4117 = vpop.xlane.xlu0 %4116
      %v4118 = vsel %vm546, %v4074, 0.0
      %4119 = vadd.xlane.f32.xlu0 %v4118
      %v4120 = vpop.xlane.xlu0 %4119
      %v4121 = vsel %vm546, %v4075, 0.0
      %4122 = vadd.xlane.f32.xlu0 %v4121
      %v4123 = vpop.xlane.xlu0 %4122
      %v4124 = vsel %vm546, %v4076, 0.0
      %4125 = vadd.xlane.f32.xlu0 %v4124
      %v4126 = vpop.xlane.xlu0 %4125
      %v4127 = vsel %vm546, %v4077, 0.0
      %4128 = vadd.xlane.f32.xlu0 %v4127
      %v4129 = vpop.xlane.xlu0 %4128
      %v4130 = vsel %vm546, %v4078, 0.0
      %4131 = vadd.xlane.f32.xlu0 %v4130
      %v4132 = vpop.xlane.xlu0 %4131
      %v4133 = vsel %vm546, %v4079, 0.0
      %4134 = vadd.xlane.f32.xlu0 %v4133
      %v4135 = vpop.xlane.xlu0 %4134
      %v4136 = vsel %vm546, %v4080, 0.0
      %4137 = vadd.xlane.f32.xlu0 %v4136
      %v4138 = vpop.xlane.xlu0 %4137
      %v4139 = vsel %vm546, %v4081, 0.0
      %4140 = vadd.xlane.f32.xlu0 %v4139
      %v4141 = vpop.xlane.xlu0 %4140
      %v4142 = vsel %vm546, %v4082, 0.0
      %4143 = vadd.xlane.f32.xlu0 %v4142
      %v4144 = vpop.xlane.xlu0 %4143
      %v4145 = vsel %vm546, %v4083, 0.0
      %4146 = vadd.xlane.f32.xlu0 %v4145
      %v4147 = vpop.xlane.xlu0 %4146
      %v4148 = vsel %vm546, %v4084, 0.0
      %4149 = vadd.xlane.f32.xlu0 %v4148
      %v4150 = vpop.xlane.xlu0 %4149
      %v4151 = vsel %vm546, %v4085, 0.0
      %4152 = vadd.xlane.f32.xlu0 %v4151
      %v4153 = vpop.xlane.xlu0 %4152
      %v4154 = vsel %vm546, %v4086, 0.0
      %4155 = vadd.xlane.f32.xlu0 %v4154
      %v4156 = vpop.xlane.xlu0 %4155
      %v4157 = vsel %vm546, %v4087, 0.0
      %4158 = vadd.xlane.f32.xlu0 %v4157
      %v4159 = vpop.xlane.xlu0 %4158
      %v4160 = vmul.f32 %v4090, %v619
      %v4161 = vmul.f32 %v4093, %v619
      %v4162 = vmul.f32 %v4096, %v619
      %v4163 = vmul.f32 %v4099, %v619
      %v4164 = vmul.f32 %v4102, %v619
      %v4165 = vmul.f32 %v4105, %v619
      %v4166 = vmul.f32 %v4108, %v619
      %v4167 = vmul.f32 %v4111, %v619
      %v4168 = vmul.f32 %v4114, %v619
      %v4169 = vmul.f32 %v4117, %v619
      %v4170 = vmul.f32 %v4120, %v619
      %v4171 = vmul.f32 %v4123, %v619
      %v4172 = vmul.f32 %v4126, %v619
      %v4173 = vmul.f32 %v4129, %v619
      %v4174 = vmul.f32 %v4132, %v619
      %v4175 = vmul.f32 %v4135, %v619
      %v4176 = vmul.f32 %v4138, %v619
      %v4177 = vmul.f32 %v4141, %v619
      %v4178 = vmul.f32 %v4144, %v619
      %v4179 = vmul.f32 %v4147, %v619
      %v4180 = vmul.f32 %v4150, %v619
      %v4181 = vmul.f32 %v4153, %v619
      %v4182 = vmul.f32 %v4156, %v619
      %v4183 = vmul.f32 %v4159, %v619
      %v4184 = vmul.f32 %v4064, %v4064
      %v4185 = vmul.f32 %v4065, %v4065
      %v4186 = vmul.f32 %v4066, %v4066
      %v4187 = vmul.f32 %v4067, %v4067
      %v4188 = vmul.f32 %v4068, %v4068
      %v4189 = vmul.f32 %v4069, %v4069
      %v4190 = vmul.f32 %v4070, %v4070
      %v4191 = vmul.f32 %v4071, %v4071
      %v4192 = vmul.f32 %v4072, %v4072
      %v4193 = vmul.f32 %v4073, %v4073
      %v4194 = vmul.f32 %v4074, %v4074
      %v4195 = vmul.f32 %v4075, %v4075
      %v4196 = vmul.f32 %v4076, %v4076
      %v4197 = vmul.f32 %v4077, %v4077
      %v4198 = vmul.f32 %v4078, %v4078
      %v4199 = vmul.f32 %v4079, %v4079
      %v4200 = vmul.f32 %v4080, %v4080
      %v4201 = vmul.f32 %v4081, %v4081
      %v4202 = vmul.f32 %v4082, %v4082
      %v4203 = vmul.f32 %v4083, %v4083
      %v4204 = vmul.f32 %v4084, %v4084
      %v4205 = vmul.f32 %v4085, %v4085
      %v4206 = vmul.f32 %v4086, %v4086
      %v4207 = vmul.f32 %v4087, %v4087
      %v4208 = vsel %vm546, %v4184, 0.0
      %4209 = vadd.xlane.f32.xlu0 %v4208
      %v4210 = vpop.xlane.xlu0 %4209
      %v4211 = vsel %vm546, %v4185, 0.0
      %4212 = vadd.xlane.f32.xlu0 %v4211
      %v4213 = vpop.xlane.xlu0 %4212
      %v4214 = vsel %vm546, %v4186, 0.0
      %4215 = vadd.xlane.f32.xlu0 %v4214
      %v4216 = vpop.xlane.xlu0 %4215
      %v4217 = vsel %vm546, %v4187, 0.0
      %4218 = vadd.xlane.f32.xlu0 %v4217
      %v4219 = vpop.xlane.xlu0 %4218
      %v4220 = vsel %vm546, %v4188, 0.0
      %4221 = vadd.xlane.f32.xlu0 %v4220
      %v4222 = vpop.xlane.xlu0 %4221
      %v4223 = vsel %vm546, %v4189, 0.0
      %4224 = vadd.xlane.f32.xlu0 %v4223
      %v4225 = vpop.xlane.xlu0 %4224
      %v4226 = vsel %vm546, %v4190, 0.0
      %4227 = vadd.xlane.f32.xlu0 %v4226
      %v4228 = vpop.xlane.xlu0 %4227
      %v4229 = vsel %vm546, %v4191, 0.0
      %4230 = vadd.xlane.f32.xlu0 %v4229
      %v4231 = vpop.xlane.xlu0 %4230
      %v4232 = vsel %vm546, %v4192, 0.0
      %4233 = vadd.xlane.f32.xlu0 %v4232
      %v4234 = vpop.xlane.xlu0 %4233
      %v4235 = vsel %vm546, %v4193, 0.0
      %4236 = vadd.xlane.f32.xlu0 %v4235
      %v4237 = vpop.xlane.xlu0 %4236
      %v4238 = vsel %vm546, %v4194, 0.0
      %4239 = vadd.xlane.f32.xlu0 %v4238
      %v4240 = vpop.xlane.xlu0 %4239
      %v4241 = vsel %vm546, %v4195, 0.0
      %4242 = vadd.xlane.f32.xlu0 %v4241
      %v4243 = vpop.xlane.xlu0 %4242
      %v4244 = vsel %vm546, %v4196, 0.0
      %4245 = vadd.xlane.f32.xlu0 %v4244
      %v4246 = vpop.xlane.xlu0 %4245
      %v4247 = vsel %vm546, %v4197, 0.0
      %4248 = vadd.xlane.f32.xlu0 %v4247
      %v4249 = vpop.xlane.xlu0 %4248
      %v4250 = vsel %vm546, %v4198, 0.0
      %4251 = vadd.xlane.f32.xlu0 %v4250
      %v4252 = vpop.xlane.xlu0 %4251
      %v4253 = vsel %vm546, %v4199, 0.0
      %4254 = vadd.xlane.f32.xlu0 %v4253
      %v4255 = vpop.xlane.xlu0 %4254
      %v4256 = vsel %vm546, %v4200, 0.0
      %4257 = vadd.xlane.f32.xlu0 %v4256
      %v4258 = vpop.xlane.xlu0 %4257
      %v4259 = vsel %vm546, %v4201, 0.0
      %4260 = vadd.xlane.f32.xlu0 %v4259
      %v4261 = vpop.xlane.xlu0 %4260
      %v4262 = vsel %vm546, %v4202, 0.0
      %4263 = vadd.xlane.f32.xlu0 %v4262
      %v4264 = vpop.xlane.xlu0 %4263
      %v4265 = vsel %vm546, %v4203, 0.0
      %4266 = vadd.xlane.f32.xlu0 %v4265
      %v4267 = vpop.xlane.xlu0 %4266
      %v4268 = vsel %vm546, %v4204, 0.0
      %4269 = vadd.xlane.f32.xlu0 %v4268
      %v4270 = vpop.xlane.xlu0 %4269
      %v4271 = vsel %vm546, %v4205, 0.0
      %4272 = vadd.xlane.f32.xlu0 %v4271
      %v4273 = vpop.xlane.xlu0 %4272
      %v4274 = vsel %vm546, %v4206, 0.0
      %4275 = vadd.xlane.f32.xlu0 %v4274
      %v4276 = vpop.xlane.xlu0 %4275
      %v4277 = vsel %vm546, %v4207, 0.0
      %4278 = vadd.xlane.f32.xlu0 %v4277
      %v4279 = vpop.xlane.xlu0 %4278
      %v4280 = vmul.f32 %v4210, %v619
      %v4281 = vmul.f32 %v4213, %v619
      %v4282 = vmul.f32 %v4216, %v619
      %v4283 = vmul.f32 %v4219, %v619
      %v4284 = vmul.f32 %v4222, %v619
      %v4285 = vmul.f32 %v4225, %v619
      %v4286 = vmul.f32 %v4228, %v619
      %v4287 = vmul.f32 %v4231, %v619
      %v4288 = vmul.f32 %v4234, %v619
      %v4289 = vmul.f32 %v4237, %v619
      %v4290 = vmul.f32 %v4240, %v619
      %v4291 = vmul.f32 %v4243, %v619
      %v4292 = vmul.f32 %v4246, %v619
      %v4293 = vmul.f32 %v4249, %v619
      %v4294 = vmul.f32 %v4252, %v619
      %v4295 = vmul.f32 %v4255, %v619
      %v4296 = vmul.f32 %v4258, %v619
      %v4297 = vmul.f32 %v4261, %v619
      %v4298 = vmul.f32 %v4264, %v619
      %v4299 = vmul.f32 %v4267, %v619
      %v4300 = vmul.f32 %v4270, %v619
      %v4301 = vmul.f32 %v4273, %v619
      %v4302 = vmul.f32 %v4276, %v619
      %v4303 = vmul.f32 %v4279, %v619
      %v4304 = vmul.f32 %v4160, %v4160
      %v4305 = vmul.f32 %v4161, %v4161
      %v4306 = vmul.f32 %v4162, %v4162
      %v4307 = vmul.f32 %v4163, %v4163
      %v4308 = vmul.f32 %v4164, %v4164
      %v4309 = vmul.f32 %v4165, %v4165
      %v4310 = vmul.f32 %v4166, %v4166
      %v4311 = vmul.f32 %v4167, %v4167
      %v4312 = vmul.f32 %v4168, %v4168
      %v4313 = vmul.f32 %v4169, %v4169
      %v4314 = vmul.f32 %v4170, %v4170
      %v4315 = vmul.f32 %v4171, %v4171
      %v4316 = vmul.f32 %v4172, %v4172
      %v4317 = vmul.f32 %v4173, %v4173
      %v4318 = vmul.f32 %v4174, %v4174
      %v4319 = vmul.f32 %v4175, %v4175
      %v4320 = vmul.f32 %v4176, %v4176
      %v4321 = vmul.f32 %v4177, %v4177
      %v4322 = vmul.f32 %v4178, %v4178
      %v4323 = vmul.f32 %v4179, %v4179
      %v4324 = vmul.f32 %v4180, %v4180
      %v4325 = vmul.f32 %v4181, %v4181
      %v4326 = vmul.f32 %v4182, %v4182
      %v4327 = vmul.f32 %v4183, %v4183
      %v4328 = vsub.f32 %v4280, %v4304
      %v4329 = vsub.f32 %v4281, %v4305
      %v4330 = vsub.f32 %v4282, %v4306
      %v4331 = vsub.f32 %v4283, %v4307
      %v4332 = vsub.f32 %v4284, %v4308
      %v4333 = vsub.f32 %v4285, %v4309
      %v4334 = vsub.f32 %v4286, %v4310
      %v4335 = vsub.f32 %v4287, %v4311
      %v4336 = vsub.f32 %v4288, %v4312
      %v4337 = vsub.f32 %v4289, %v4313
      %v4338 = vsub.f32 %v4290, %v4314
      %v4339 = vsub.f32 %v4291, %v4315
      %v4340 = vsub.f32 %v4292, %v4316
      %v4341 = vsub.f32 %v4293, %v4317
      %v4342 = vsub.f32 %v4294, %v4318
      %v4343 = vsub.f32 %v4295, %v4319
      %v4344 = vsub.f32 %v4296, %v4320
      %v4345 = vsub.f32 %v4297, %v4321
      %v4346 = vsub.f32 %v4298, %v4322
      %v4347 = vsub.f32 %v4299, %v4323
      %v4348 = vsub.f32 %v4300, %v4324
      %v4349 = vsub.f32 %v4301, %v4325
      %v4350 = vsub.f32 %v4302, %v4326
      %v4351 = vsub.f32 %v4303, %v4327
      %v4352 = vmax.f32 %v4328, 0.0
      %v4353 = vmax.f32 %v4329, 0.0
      %v4354 = vmax.f32 %v4330, 0.0
      %v4355 = vmax.f32 %v4331, 0.0
      %v4356 = vmax.f32 %v4332, 0.0
      %v4357 = vmax.f32 %v4333, 0.0
      %v4358 = vmax.f32 %v4334, 0.0
      %v4359 = vmax.f32 %v4335, 0.0
      %v4360 = vmax.f32 %v4336, 0.0
      %v4361 = vmax.f32 %v4337, 0.0
      %v4362 = vmax.f32 %v4338, 0.0
      %v4363 = vmax.f32 %v4339, 0.0
      %v4364 = vmax.f32 %v4340, 0.0
      %v4365 = vmax.f32 %v4341, 0.0
      %v4366 = vmax.f32 %v4342, 0.0
      %v4367 = vmax.f32 %v4343, 0.0
      %v4368 = vmax.f32 %v4344, 0.0
      %v4369 = vmax.f32 %v4345, 0.0
      %v4370 = vmax.f32 %v4346, 0.0
      %v4371 = vmax.f32 %v4347, 0.0
      %v4372 = vmax.f32 %v4348, 0.0
      %v4373 = vmax.f32 %v4349, 0.0
      %v4374 = vmax.f32 %v4350, 0.0
      %v4375 = vmax.f32 %v4351, 0.0
      %v4376 = vsub.f32 %v4064, %v4160
      %v4377 = vsub.f32 %v4065, %v4161
      %v4378 = vsub.f32 %v4066, %v4162
      %v4379 = vsub.f32 %v4067, %v4163
      %v4380 = vsub.f32 %v4068, %v4164
      %v4381 = vsub.f32 %v4069, %v4165
      %v4382 = vsub.f32 %v4070, %v4166
      %v4383 = vsub.f32 %v4071, %v4167
      %v4384 = vsub.f32 %v4072, %v4168
      %v4385 = vsub.f32 %v4073, %v4169
      %v4386 = vsub.f32 %v4074, %v4170
      %v4387 = vsub.f32 %v4075, %v4171
      %v4388 = vsub.f32 %v4076, %v4172
      %v4389 = vsub.f32 %v4077, %v4173
      %v4390 = vsub.f32 %v4078, %v4174
      %v4391 = vsub.f32 %v4079, %v4175
      %v4392 = vsub.f32 %v4080, %v4176
      %v4393 = vsub.f32 %v4081, %v4177
      %v4394 = vsub.f32 %v4082, %v4178
      %v4395 = vsub.f32 %v4083, %v4179
      %v4396 = vsub.f32 %v4084, %v4180
      %v4397 = vsub.f32 %v4085, %v4181
      %v4398 = vsub.f32 %v4086, %v4182
      %v4399 = vsub.f32 %v4087, %v4183
      %v4400 = vadd.f32 %v4352, 1e-06
      %v4401 = vadd.f32 %v4353, 1e-06
      %v4402 = vadd.f32 %v4354, 1e-06
      %v4403 = vadd.f32 %v4355, 1e-06
      %v4404 = vadd.f32 %v4356, 1e-06
      %v4405 = vadd.f32 %v4357, 1e-06
      %v4406 = vadd.f32 %v4358, 1e-06
      %v4407 = vadd.f32 %v4359, 1e-06
      %v4408 = vadd.f32 %v4360, 1e-06
      %v4409 = vadd.f32 %v4361, 1e-06
      %v4410 = vadd.f32 %v4362, 1e-06
      %v4411 = vadd.f32 %v4363, 1e-06
      %v4412 = vadd.f32 %v4364, 1e-06
      %v4413 = vadd.f32 %v4365, 1e-06
      %v4414 = vadd.f32 %v4366, 1e-06
      %v4415 = vadd.f32 %v4367, 1e-06
      %v4416 = vadd.f32 %v4368, 1e-06
      %v4417 = vadd.f32 %v4369, 1e-06
      %v4418 = vadd.f32 %v4370, 1e-06
      %v4419 = vadd.f32 %v4371, 1e-06
      %v4420 = vadd.f32 %v4372, 1e-06
      %v4421 = vadd.f32 %v4373, 1e-06
      %v4422 = vadd.f32 %v4374, 1e-06
      %v4423 = vadd.f32 %v4375, 1e-06
      %v4424 = vrsqrt.pop %v4400
      %v4425 = vrsqrt.pop %v4401
      %v4426 = vrsqrt.pop %v4402
      %v4427 = vrsqrt.pop %v4403
      %v4428 = vrsqrt.pop %v4404
      %v4429 = vrsqrt.pop %v4405
      %v4430 = vrsqrt.pop %v4406
      %v4431 = vrsqrt.pop %v4407
      %v4432 = vrsqrt.pop %v4408
      %v4433 = vrsqrt.pop %v4409
      %v4434 = vrsqrt.pop %v4410
      %v4435 = vrsqrt.pop %v4411
      %v4436 = vrsqrt.pop %v4412
      %v4437 = vrsqrt.pop %v4413
      %v4438 = vrsqrt.pop %v4414
      %v4439 = vrsqrt.pop %v4415
      %v4440 = vrsqrt.pop %v4416
      %v4441 = vrsqrt.pop %v4417
      %v4442 = vrsqrt.pop %v4418
      %v4443 = vrsqrt.pop %v4419
      %v4444 = vrsqrt.pop %v4420
      %v4445 = vrsqrt.pop %v4421
      %v4446 = vrsqrt.pop %v4422
      %v4447 = vrsqrt.pop %v4423
      %v4448 = vmul.f32 %v4376, %v4424
      %v4449 = vmul.f32 %v4377, %v4425
      %v4450 = vmul.f32 %v4378, %v4426
      %v4451 = vmul.f32 %v4379, %v4427
      %v4452 = vmul.f32 %v4380, %v4428
      %v4453 = vmul.f32 %v4381, %v4429
      %v4454 = vmul.f32 %v4382, %v4430
      %v4455 = vmul.f32 %v4383, %v4431
      %v4456 = vmul.f32 %v4384, %v4432
      %v4457 = vmul.f32 %v4385, %v4433
      %v4458 = vmul.f32 %v4386, %v4434
      %v4459 = vmul.f32 %v4387, %v4435
      %v4460 = vmul.f32 %v4388, %v4436
      %v4461 = vmul.f32 %v4389, %v4437
      %v4462 = vmul.f32 %v4390, %v4438
      %v4463 = vmul.f32 %v4391, %v4439
      %v4464 = vmul.f32 %v4392, %v4440
      %v4465 = vmul.f32 %v4393, %v4441
      %v4466 = vmul.f32 %v4394, %v4442
      %v4467 = vmul.f32 %v4395, %v4443
      %v4468 = vmul.f32 %v4396, %v4444
      %v4469 = vmul.f32 %v4397, %v4445
      %v4470 = vmul.f32 %v4398, %v4446
      %v4471 = vmul.f32 %v4399, %v4447
      %v4472 = vlaneseq
      %v4473 = vshrl.u32 %v4472, 7
      %v4474 = vsub.s32 5, %v4473
      %v4475 = vrot.slane %v472, %v4474
      %v4476 = vmul.f32 %v4475, %v4448
      %v4477 = vmul.f32 %v4475, %v4449
      %v4478 = vmul.f32 %v4475, %v4450
      %v4479 = vmul.f32 %v4475, %v4451
      %v4480 = vmul.f32 %v4475, %v4452
      %v4481 = vmul.f32 %v4475, %v4453
      %v4482 = vmul.f32 %v4475, %v4454
      %v4483 = vmul.f32 %v4475, %v4455
      %v4484 = vmul.f32 %v4475, %v4456
      %v4485 = vmul.f32 %v4475, %v4457
      %v4486 = vmul.f32 %v4475, %v4458
      %v4487 = vmul.f32 %v4475, %v4459
      %v4488 = vmul.f32 %v4475, %v4460
      %v4489 = vmul.f32 %v4475, %v4461
      %v4490 = vmul.f32 %v4475, %v4462
      %v4491 = vmul.f32 %v4475, %v4463
      %v4492 = vmul.f32 %v4475, %v4464
      %v4493 = vmul.f32 %v4475, %v4465
      %v4494 = vmul.f32 %v4475, %v4466
      %v4495 = vmul.f32 %v4475, %v4467
      %v4496 = vmul.f32 %v4475, %v4468
      %v4497 = vmul.f32 %v4475, %v4469
      %v4498 = vmul.f32 %v4475, %v4470
      %v4499 = vmul.f32 %v4475, %v4471
      %v4500 = vlaneseq
      %v4501 = vshrl.u32 %v4500, 7
      %v4502 = vsub.s32 6, %v4501
      %v4503 = vrot.slane %v472, %v4502
      %v4504 = vadd.f32 %v4476, %v4503
      %v4505 = vadd.f32 %v4477, %v4503
      %v4506 = vadd.f32 %v4478, %v4503
      %v4507 = vadd.f32 %v4479, %v4503
      %v4508 = vadd.f32 %v4480, %v4503
      %v4509 = vadd.f32 %v4481, %v4503
      %v4510 = vadd.f32 %v4482, %v4503
      %v4511 = vadd.f32 %v4483, %v4503
      %v4512 = vadd.f32 %v4484, %v4503
      %v4513 = vadd.f32 %v4485, %v4503
      %v4514 = vadd.f32 %v4486, %v4503
      %v4515 = vadd.f32 %v4487, %v4503
      %v4516 = vadd.f32 %v4488, %v4503
      %v4517 = vadd.f32 %v4489, %v4503
      %v4518 = vadd.f32 %v4490, %v4503
      %v4519 = vadd.f32 %v4491, %v4503
      %v4520 = vadd.f32 %v4492, %v4503
      %v4521 = vadd.f32 %v4493, %v4503
      %v4522 = vadd.f32 %v4494, %v4503
      %v4523 = vadd.f32 %v4495, %v4503
      %v4524 = vadd.f32 %v4496, %v4503
      %v4525 = vadd.f32 %v4497, %v4503
      %v4526 = vadd.f32 %v4498, %v4503
      %v4527 = vadd.f32 %v4499, %v4503
      %v4528 = vpack.c.bf16 %v4505, %v4504
      %v4529 = vpack.c.bf16 %v4507, %v4506
      %v4530 = vpack.c.bf16 %v4509, %v4508
      %v4531 = vpack.c.bf16 %v4511, %v4510
      %v4532 = vpack.c.bf16 %v4513, %v4512
      %v4533 = vpack.c.bf16 %v4515, %v4514
      %v4534 = vpack.c.bf16 %v4517, %v4516
      %v4535 = vpack.c.bf16 %v4519, %v4518
      %v4536 = vpack.c.bf16 %v4521, %v4520
      %v4537 = vpack.c.bf16 %v4523, %v4522
      %v4538 = vpack.c.bf16 %v4525, %v4524
      %v4539 = vpack.c.bf16 %v4527, %v4526
      %v4540 = vld [vmem:[%s11] sm:$0xf]
      %v4541 = vld [vmem:[%s12] sm:$0x1]
      %v4543 = vlaneseq
      %v4544 = vshrl.u32 %v4543, 7
      %v4545 = vsub.s32 0, %v4544
      %v4546 = vrot.slane %v4541, %v4545
      %v4549 = vsel %vm546, %v4528, 0
      %v4552 = vsel %vm546, %v4529, 0
      %v4555 = vsel %vm546, %v4530, 0
      %v4558 = vsel %vm546, %v4531, 0
      %v4561 = vsel %vm546, %v4532, 0
      %v4564 = vsel %vm546, %v4533, 0
      %v4567 = vsel %vm546, %v4534, 0
      %v4570 = vsel %vm546, %v4535, 0
      %v4573 = vsel %vm546, %v4536, 0
      %v4576 = vsel %vm546, %v4537, 0
      %v4579 = vsel %vm546, %v4538, 0
      %v4582 = vsel %vm546, %v4539, 0
      %v4585 = vsel %vm1044, %v4540, 0
      %4587 = vmatprep.subr.bf16.mxu0 0
      %4588 = vmatpush1.bf16.msra.mxu0 %v4585
      %4589 = vmatprep.subr.bf16.mxu0 0
      %4590 = vmatpush1.bf16.msra.mxu0 0
      %4591 = vmatprep.subr.bf16.mxu0 0
      %4592 = vmatpush1.bf16.msra.mxu0 0
      %4593 = vmatprep.subr.bf16.mxu0 0
      %4594 = vmatpush1.bf16.msra.mxu0 0
      %4595 = vmatprep.subr.bf16.mxu0 0
      %4596 = vmatpush1.bf16.msra.mxu0 0
      %4597 = vmatprep.subr.bf16.mxu0 0
      %4598 = vmatpush1.bf16.msra.mxu0 0
      %4599 = vmatprep.subr.bf16.mxu0 0
      %4600 = vmatpush1.bf16.msra.mxu0 0
      %4601 = vmatprep.subr.bf16.mxu0 0
      %4602 = vmatpush1.bf16.msra.mxu0 0
      %4603 = vmatprep.subr.bf16.mxu0 0
      %4604 = vmatpush1.bf16.msra.mxu0 0
      %4605 = vmatprep.subr.bf16.mxu0 0
      %4606 = vmatpush1.bf16.msra.mxu0 0
      %4607 = vmatprep.subr.bf16.mxu0 0
      %4608 = vmatpush1.bf16.msra.mxu0 0
      %4609 = vmatprep.subr.bf16.mxu0 0
      %4610 = vmatpush1.bf16.msra.mxu0 0
      %4611 = vmatprep.subr.bf16.mxu0 0
      %4612 = vmatpush1.bf16.msra.mxu0 0
      %4613 = vmatprep.subr.bf16.mxu0 0
      %4614 = vmatpush1.bf16.msra.mxu0 0
      %4615 = vmatprep.subr.bf16.mxu0 0
      %4616 = vmatpush1.bf16.msra.mxu0 0
      %4617 = vmatprep.subr.bf16.mxu0 0
      %4618 = vmatpush1.bf16.msra.mxu0 0
      %4619 = vmatprep.mubr.bf16.mxu0 0
      %4620 = vmatmul.mubr.bf16.gmra.mrb[0].mxu0 %v4549
      %v4621 = vpop.f32.mrb[0].mxu0
      %v4622 = vadd.f32 %v4546, %v4621
      %v4623 = vpop.f32.mrb[0].mxu0
      %v4624 = vpop.f32.mrb[0].mxu0
      %v4625 = vadd.f32 %v4546, %v4624
      %v4626 = vpop.f32.mrb[0].mxu0
      %4627 = vmatprep.mubr.bf16.mxu0 0
      %4628 = vmatmul.mubr.bf16.gmra.mrb[0].mxu0 %v4552
      %v4629 = vpop.f32.mrb[0].mxu0
      %v4630 = vadd.f32 %v4546, %v4629
      %v4631 = vpop.f32.mrb[0].mxu0
      %v4632 = vpop.f32.mrb[0].mxu0
      %v4633 = vadd.f32 %v4546, %v4632
      %v4634 = vpop.f32.mrb[0].mxu0
      %4635 = vmatprep.mubr.bf16.mxu0 0
      %4636 = vmatmul.mubr.bf16.gmra.mrb[0].mxu0 %v4555
      %v4637 = vpop.f32.mrb[0].mxu0
      %v4638 = vadd.f32 %v4546, %v4637
      %v4639 = vpop.f32.mrb[0].mxu0
      %v4640 = vpop.f32.mrb[0].mxu0
      %v4641 = vadd.f32 %v4546, %v4640
      %v4642 = vpop.f32.mrb[0].mxu0
      %4643 = vmatprep.mubr.bf16.mxu0 0
      %4644 = vmatmul.mubr.bf16.gmra.mrb[0].mxu0 %v4558
      %v4645 = vpop.f32.mrb[0].mxu0
      %v4646 = vadd.f32 %v4546, %v4645
      %v4647 = vpop.f32.mrb[0].mxu0
      %v4648 = vpop.f32.mrb[0].mxu0
      %v4649 = vadd.f32 %v4546, %v4648
      %v4650 = vpop.f32.mrb[0].mxu0
      %4651 = vmatprep.mubr.bf16.mxu0 0
      %4652 = vmatmul.mubr.bf16.gmra.mrb[0].mxu0 %v4561
      %v4653 = vpop.f32.mrb[0].mxu0
      %v4654 = vadd.f32 %v4546, %v4653
      %v4655 = vpop.f32.mrb[0].mxu0
      %v4656 = vpop.f32.mrb[0].mxu0
      %v4657 = vadd.f32 %v4546, %v4656
      %v4658 = vpop.f32.mrb[0].mxu0
      %4659 = vmatprep.mubr.bf16.mxu0 0
      %4660 = vmatmul.mubr.bf16.gmra.mrb[0].mxu0 %v4564
      %v4661 = vpop.f32.mrb[0].mxu0
      %v4662 = vadd.f32 %v4546, %v4661
      %v4663 = vpop.f32.mrb[0].mxu0
      %v4664 = vpop.f32.mrb[0].mxu0
      %v4665 = vadd.f32 %v4546, %v4664
      %v4666 = vpop.f32.mrb[0].mxu0
      %4667 = vmatprep.mubr.bf16.mxu0 0
      %4668 = vmatmul.mubr.bf16.gmra.mrb[0].mxu0 %v4567
      %v4669 = vpop.f32.mrb[0].mxu0
      %v4670 = vadd.f32 %v4546, %v4669
      %v4671 = vpop.f32.mrb[0].mxu0
      %v4672 = vpop.f32.mrb[0].mxu0
      %v4673 = vadd.f32 %v4546, %v4672
      %v4674 = vpop.f32.mrb[0].mxu0
      %4675 = vmatprep.mubr.bf16.mxu0 0
      %4676 = vmatmul.mubr.bf16.gmra.mrb[0].mxu0 %v4570
      %v4677 = vpop.f32.mrb[0].mxu0
      %v4678 = vadd.f32 %v4546, %v4677
      %v4679 = vpop.f32.mrb[0].mxu0
      %v4680 = vpop.f32.mrb[0].mxu0
      %v4681 = vadd.f32 %v4546, %v4680
      %v4682 = vpop.f32.mrb[0].mxu0
      %4683 = vmatprep.mubr.bf16.mxu0 0
      %4684 = vmatmul.mubr.bf16.gmra.mrb[0].mxu0 %v4573
      %v4685 = vpop.f32.mrb[0].mxu0
      %v4686 = vadd.f32 %v4546, %v4685
      %v4687 = vpop.f32.mrb[0].mxu0
      %v4688 = vpop.f32.mrb[0].mxu0
      %v4689 = vadd.f32 %v4546, %v4688
      %v4690 = vpop.f32.mrb[0].mxu0
      %4691 = vmatprep.mubr.bf16.mxu0 0
      %4692 = vmatmul.mubr.bf16.gmra.mrb[0].mxu0 %v4576
      %v4693 = vpop.f32.mrb[0].mxu0
      %v4694 = vadd.f32 %v4546, %v4693
      %v4695 = vpop.f32.mrb[0].mxu0
      %v4696 = vpop.f32.mrb[0].mxu0
      %v4697 = vadd.f32 %v4546, %v4696
      %v4698 = vpop.f32.mrb[0].mxu0
      %4699 = vmatprep.mubr.bf16.mxu0 0
      %4700 = vmatmul.mubr.bf16.gmra.mrb[0].mxu0 %v4579
      %v4701 = vpop.f32.mrb[0].mxu0
      %v4702 = vadd.f32 %v4546, %v4701
      %v4703 = vpop.f32.mrb[0].mxu0
      %v4704 = vpop.f32.mrb[0].mxu0
      %v4705 = vadd.f32 %v4546, %v4704
      %v4706 = vpop.f32.mrb[0].mxu0
      %4707 = vmatprep.mubr.bf16.mxu0 0
      %4708 = vmatmul.mubr.bf16.gmra.mrb[0].mxu0 %v4582
      %v4709 = vpop.f32.mrb[0].mxu0
      %v4710 = vadd.f32 %v4546, %v4709
      %v4711 = vpop.f32.mrb[0].mxu0
      %v4712 = vpop.f32.mrb[0].mxu0
      %v4713 = vadd.f32 %v4546, %v4712
      %v4714 = vpop.f32.mrb[0].mxu0
      %4715 = vdwg.mxu0
      %v4716 = vmul.f32 %v4622, 0.5
      %v4717 = vmul.f32 %v4625, 0.5
      %v4718 = vmul.f32 %v4630, 0.5
      %v4719 = vmul.f32 %v4633, 0.5
      %v4720 = vmul.f32 %v4638, 0.5
      %v4721 = vmul.f32 %v4641, 0.5
      %v4722 = vmul.f32 %v4646, 0.5
      %v4723 = vmul.f32 %v4649, 0.5
      %v4724 = vmul.f32 %v4654, 0.5
      %v4725 = vmul.f32 %v4657, 0.5
      %v4726 = vmul.f32 %v4662, 0.5
      %v4727 = vmul.f32 %v4665, 0.5
      %v4728 = vmul.f32 %v4670, 0.5
      %v4729 = vmul.f32 %v4673, 0.5
      %v4730 = vmul.f32 %v4678, 0.5
      %v4731 = vmul.f32 %v4681, 0.5
      %v4732 = vmul.f32 %v4686, 0.5
      %v4733 = vmul.f32 %v4689, 0.5
      %v4734 = vmul.f32 %v4694, 0.5
      %v4735 = vmul.f32 %v4697, 0.5
      %v4736 = vmul.f32 %v4702, 0.5
      %v4737 = vmul.f32 %v4705, 0.5
      %v4738 = vmul.f32 %v4710, 0.5
      %v4739 = vmul.f32 %v4713, 0.5
      %v4740 = vmul.f32 %v4622, %v4622
      %v4741 = vmul.f32 %v4625, %v4625
      %v4742 = vmul.f32 %v4630, %v4630
      %v4743 = vmul.f32 %v4633, %v4633
      %v4744 = vmul.f32 %v4638, %v4638
      %v4745 = vmul.f32 %v4641, %v4641
      %v4746 = vmul.f32 %v4646, %v4646
      %v4747 = vmul.f32 %v4649, %v4649
      %v4748 = vmul.f32 %v4654, %v4654
      %v4749 = vmul.f32 %v4657, %v4657
      %v4750 = vmul.f32 %v4662, %v4662
      %v4751 = vmul.f32 %v4665, %v4665
      %v4752 = vmul.f32 %v4670, %v4670
      %v4753 = vmul.f32 %v4673, %v4673
      %v4754 = vmul.f32 %v4678, %v4678
      %v4755 = vmul.f32 %v4681, %v4681
      %v4756 = vmul.f32 %v4686, %v4686
      %v4757 = vmul.f32 %v4689, %v4689
      %v4758 = vmul.f32 %v4694, %v4694
      %v4759 = vmul.f32 %v4697, %v4697
      %v4760 = vmul.f32 %v4702, %v4702
      %v4761 = vmul.f32 %v4705, %v4705
      %v4762 = vmul.f32 %v4710, %v4710
      %v4763 = vmul.f32 %v4713, %v4713
      %v4764 = vmul.f32 %v4740, %v4622
      %v4765 = vmul.f32 %v4741, %v4625
      %v4766 = vmul.f32 %v4742, %v4630
      %v4767 = vmul.f32 %v4743, %v4633
      %v4768 = vmul.f32 %v4744, %v4638
      %v4769 = vmul.f32 %v4745, %v4641
      %v4770 = vmul.f32 %v4746, %v4646
      %v4771 = vmul.f32 %v4747, %v4649
      %v4772 = vmul.f32 %v4748, %v4654
      %v4773 = vmul.f32 %v4749, %v4657
      %v4774 = vmul.f32 %v4750, %v4662
      %v4775 = vmul.f32 %v4751, %v4665
      %v4776 = vmul.f32 %v4752, %v4670
      %v4777 = vmul.f32 %v4753, %v4673
      %v4778 = vmul.f32 %v4754, %v4678
      %v4779 = vmul.f32 %v4755, %v4681
      %v4780 = vmul.f32 %v4756, %v4686
      %v4781 = vmul.f32 %v4757, %v4689
      %v4782 = vmul.f32 %v4758, %v4694
      %v4783 = vmul.f32 %v4759, %v4697
      %v4784 = vmul.f32 %v4760, %v4702
      %v4785 = vmul.f32 %v4761, %v4705
      %v4786 = vmul.f32 %v4762, %v4710
      %v4787 = vmul.f32 %v4763, %v4713
      %v4788 = vmul.f32 %v4764, 0.044715
      %v4789 = vmul.f32 %v4765, 0.044715
      %v4790 = vmul.f32 %v4766, 0.044715
      %v4791 = vmul.f32 %v4767, 0.044715
      %v4792 = vmul.f32 %v4768, 0.044715
      %v4793 = vmul.f32 %v4769, 0.044715
      %v4794 = vmul.f32 %v4770, 0.044715
      %v4795 = vmul.f32 %v4771, 0.044715
      %v4796 = vmul.f32 %v4772, 0.044715
      %v4797 = vmul.f32 %v4773, 0.044715
      %v4798 = vmul.f32 %v4774, 0.044715
      %v4799 = vmul.f32 %v4775, 0.044715
      %v4800 = vmul.f32 %v4776, 0.044715
      %v4801 = vmul.f32 %v4777, 0.044715
      %v4802 = vmul.f32 %v4778, 0.044715
      %v4803 = vmul.f32 %v4779, 0.044715
      %v4804 = vmul.f32 %v4780, 0.044715
      %v4805 = vmul.f32 %v4781, 0.044715
      %v4806 = vmul.f32 %v4782, 0.044715
      %v4807 = vmul.f32 %v4783, 0.044715
      %v4808 = vmul.f32 %v4784, 0.044715
      %v4809 = vmul.f32 %v4785, 0.044715
      %v4810 = vmul.f32 %v4786, 0.044715
      %v4811 = vmul.f32 %v4787, 0.044715
      %v4812 = vadd.f32 %v4622, %v4788
      %v4813 = vadd.f32 %v4625, %v4789
      %v4814 = vadd.f32 %v4630, %v4790
      %v4815 = vadd.f32 %v4633, %v4791
      %v4816 = vadd.f32 %v4638, %v4792
      %v4817 = vadd.f32 %v4641, %v4793
      %v4818 = vadd.f32 %v4646, %v4794
      %v4819 = vadd.f32 %v4649, %v4795
      %v4820 = vadd.f32 %v4654, %v4796
      %v4821 = vadd.f32 %v4657, %v4797
      %v4822 = vadd.f32 %v4662, %v4798
      %v4823 = vadd.f32 %v4665, %v4799
      %v4824 = vadd.f32 %v4670, %v4800
      %v4825 = vadd.f32 %v4673, %v4801
      %v4826 = vadd.f32 %v4678, %v4802
      %v4827 = vadd.f32 %v4681, %v4803
      %v4828 = vadd.f32 %v4686, %v4804
      %v4829 = vadd.f32 %v4689, %v4805
      %v4830 = vadd.f32 %v4694, %v4806
      %v4831 = vadd.f32 %v4697, %v4807
      %v4832 = vadd.f32 %v4702, %v4808
      %v4833 = vadd.f32 %v4705, %v4809
      %v4834 = vadd.f32 %v4710, %v4810
      %v4835 = vadd.f32 %v4713, %v4811
      %v4836 = vmul.f32 %v4812, 0.7978846
      %v4837 = vmul.f32 %v4813, 0.7978846
      %v4838 = vmul.f32 %v4814, 0.7978846
      %v4839 = vmul.f32 %v4815, 0.7978846
      %v4840 = vmul.f32 %v4816, 0.7978846
      %v4841 = vmul.f32 %v4817, 0.7978846
      %v4842 = vmul.f32 %v4818, 0.7978846
      %v4843 = vmul.f32 %v4819, 0.7978846
      %v4844 = vmul.f32 %v4820, 0.7978846
      %v4845 = vmul.f32 %v4821, 0.7978846
      %v4846 = vmul.f32 %v4822, 0.7978846
      %v4847 = vmul.f32 %v4823, 0.7978846
      %v4848 = vmul.f32 %v4824, 0.7978846
      %v4849 = vmul.f32 %v4825, 0.7978846
      %v4850 = vmul.f32 %v4826, 0.7978846
      %v4851 = vmul.f32 %v4827, 0.7978846
      %v4852 = vmul.f32 %v4828, 0.7978846
      %v4853 = vmul.f32 %v4829, 0.7978846
      %v4854 = vmul.f32 %v4830, 0.7978846
      %v4855 = vmul.f32 %v4831, 0.7978846
      %v4856 = vmul.f32 %v4832, 0.7978846
      %v4857 = vmul.f32 %v4833, 0.7978846
      %v4858 = vmul.f32 %v4834, 0.7978846
      %v4859 = vmul.f32 %v4835, 0.7978846
      %v4860 = vtanh.pop %v4836
      %v4861 = vtanh.pop %v4837
      %v4862 = vtanh.pop %v4838
      %v4863 = vtanh.pop %v4839
      %v4864 = vtanh.pop %v4840
      %v4865 = vtanh.pop %v4841
      %v4866 = vtanh.pop %v4842
      %v4867 = vtanh.pop %v4843
      %v4868 = vtanh.pop %v4844
      %v4869 = vtanh.pop %v4845
      %v4870 = vtanh.pop %v4846
      %v4871 = vtanh.pop %v4847
      %v4872 = vtanh.pop %v4848
      %v4873 = vtanh.pop %v4849
      %v4874 = vtanh.pop %v4850
      %v4875 = vtanh.pop %v4851
      %v4876 = vtanh.pop %v4852
      %v4877 = vtanh.pop %v4853
      %v4878 = vtanh.pop %v4854
      %v4879 = vtanh.pop %v4855
      %v4880 = vtanh.pop %v4856
      %v4881 = vtanh.pop %v4857
      %v4882 = vtanh.pop %v4858
      %v4883 = vtanh.pop %v4859
      %v4884 = vadd.f32 %v4860, 1.0
      %v4885 = vadd.f32 %v4861, 1.0
      %v4886 = vadd.f32 %v4862, 1.0
      %v4887 = vadd.f32 %v4863, 1.0
      %v4888 = vadd.f32 %v4864, 1.0
      %v4889 = vadd.f32 %v4865, 1.0
      %v4890 = vadd.f32 %v4866, 1.0
      %v4891 = vadd.f32 %v4867, 1.0
      %v4892 = vadd.f32 %v4868, 1.0
      %v4893 = vadd.f32 %v4869, 1.0
      %v4894 = vadd.f32 %v4870, 1.0
      %v4895 = vadd.f32 %v4871, 1.0
      %v4896 = vadd.f32 %v4872, 1.0
      %v4897 = vadd.f32 %v4873, 1.0
      %v4898 = vadd.f32 %v4874, 1.0
      %v4899 = vadd.f32 %v4875, 1.0
      %v4900 = vadd.f32 %v4876, 1.0
      %v4901 = vadd.f32 %v4877, 1.0
      %v4902 = vadd.f32 %v4878, 1.0
      %v4903 = vadd.f32 %v4879, 1.0
      %v4904 = vadd.f32 %v4880, 1.0
      %v4905 = vadd.f32 %v4881, 1.0
      %v4906 = vadd.f32 %v4882, 1.0
      %v4907 = vadd.f32 %v4883, 1.0
      %v4908 = vmul.f32 %v4716, %v4884
      %v4909 = vmul.f32 %v4717, %v4885
      %v4910 = vmul.f32 %v4718, %v4886
      %v4911 = vmul.f32 %v4719, %v4887
      %v4912 = vmul.f32 %v4720, %v4888
      %v4913 = vmul.f32 %v4721, %v4889
      %v4914 = vmul.f32 %v4722, %v4890
      %v4915 = vmul.f32 %v4723, %v4891
      %v4916 = vmul.f32 %v4724, %v4892
      %v4917 = vmul.f32 %v4725, %v4893
      %v4918 = vmul.f32 %v4726, %v4894
      %v4919 = vmul.f32 %v4727, %v4895
      %v4920 = vmul.f32 %v4728, %v4896
      %v4921 = vmul.f32 %v4729, %v4897
      %v4922 = vmul.f32 %v4730, %v4898
      %v4923 = vmul.f32 %v4731, %v4899
      %v4924 = vmul.f32 %v4732, %v4900
      %v4925 = vmul.f32 %v4733, %v4901
      %v4926 = vmul.f32 %v4734, %v4902
      %v4927 = vmul.f32 %v4735, %v4903
      %v4928 = vmul.f32 %v4736, %v4904
      %v4929 = vmul.f32 %v4737, %v4905
      %v4930 = vmul.f32 %v4738, %v4906
      %v4931 = vmul.f32 %v4739, %v4907
      %v4932 = vpack.c.bf16 %v4909, %v4908
      %v4933 = vpack.c.bf16 %v4911, %v4910
      %v4934 = vpack.c.bf16 %v4913, %v4912
      %v4935 = vpack.c.bf16 %v4915, %v4914
      %v4936 = vpack.c.bf16 %v4917, %v4916
      %v4937 = vpack.c.bf16 %v4919, %v4918
      %v4938 = vpack.c.bf16 %v4921, %v4920
      %v4939 = vpack.c.bf16 %v4923, %v4922
      %v4940 = vpack.c.bf16 %v4925, %v4924
      %v4941 = vpack.c.bf16 %v4927, %v4926
      %v4942 = vpack.c.bf16 %v4929, %v4928
      %v4943 = vpack.c.bf16 %v4931, %v4930
      %v4944 = vld [vmem:[%s13] sm:$0xf]
      %v4945 = vld [vmem:[%s13 + $0x4] sm:$0xf]
      %v4946 = vld [vmem:[%s13 + $0x8] sm:$0xf]
      %v4947 = vld [vmem:[%s13 + $0xc] sm:$0xf]
      %v4948 = vlaneseq
      %v4949 = vshrl.u32 %v4948, 7
      %v4950 = vsub.s32 7, %v4949
      %v4951 = vrot.slane %v472, %v4950
      %v4956 = vunpack.c.l.b16 %v4944
      %v4957 = vunpack.c.l.b16 %v4945
      %v4958 = vunpack.c.l.b16 %v4946
      %v4959 = vunpack.c.l.b16 %v4947
      %v4960 = vpack.c.b16 %v4957, %v4956
      %v4961 = vpack.c.b16 %v4959, %v4958
      %vm4964 = vcmask 261120
      %v4966 = vsel %vm4964, %v4932, 0
      %v4969 = vsel %vm4964, %v4933, 0
      %v4972 = vsel %vm4964, %v4934, 0
      %v4975 = vsel %vm4964, %v4935, 0
      %v4978 = vsel %vm4964, %v4936, 0
      %v4981 = vsel %vm4964, %v4937, 0
      %v4984 = vsel %vm4964, %v4938, 0
      %v4987 = vsel %vm4964, %v4939, 0
      %v4990 = vsel %vm4964, %v4940, 0
      %v4993 = vsel %vm4964, %v4941, 0
      %v4996 = vsel %vm4964, %v4942, 0
      %v4999 = vsel %vm4964, %v4943, 0
      %5001 = vmatprep.subr.bf16.mxu0 0
      %5002 = vmatpush1.bf16.msra.mxu0 %v4960
      %5003 = vmatprep.subr.bf16.mxu0 0
      %5004 = vmatpush1.bf16.msra.mxu0 %v4961
      %5005 = vmatprep.subr.bf16.mxu0 0
      %5006 = vmatpush1.bf16.msra.mxu0 0
      %5007 = vmatprep.subr.bf16.mxu0 0
      %5008 = vmatpush1.bf16.msra.mxu0 0
      %5009 = vmatprep.subr.bf16.mxu0 0
      %5010 = vmatpush1.bf16.msra.mxu0 0
      %5011 = vmatprep.subr.bf16.mxu0 0
      %5012 = vmatpush1.bf16.msra.mxu0 0
      %5013 = vmatprep.subr.bf16.mxu0 0
      %5014 = vmatpush1.bf16.msra.mxu0 0
      %5015 = vmatprep.subr.bf16.mxu0 0
      %5016 = vmatpush1.bf16.msra.mxu0 0
      %5017 = vmatprep.subr.bf16.mxu0 0
      %5018 = vmatpush1.bf16.msra.mxu0 0
      %5019 = vmatprep.subr.bf16.mxu0 0
      %5020 = vmatpush1.bf16.msra.mxu0 0
      %5021 = vmatprep.subr.bf16.mxu0 0
      %5022 = vmatpush1.bf16.msra.mxu0 0
      %5023 = vmatprep.subr.bf16.mxu0 0
      %5024 = vmatpush1.bf16.msra.mxu0 0
      %5025 = vmatprep.subr.bf16.mxu0 0
      %5026 = vmatpush1.bf16.msra.mxu0 0
      %5027 = vmatprep.subr.bf16.mxu0 0
      %5028 = vmatpush1.bf16.msra.mxu0 0
      %5029 = vmatprep.subr.bf16.mxu0 0
      %5030 = vmatpush1.bf16.msra.mxu0 0
      %5031 = vmatprep.subr.bf16.mxu0 0
      %5032 = vmatpush1.bf16.msra.mxu0 0
      %5033 = vmatprep.mubr.bf16.mxu0 0
      %5034 = vmatmul.mubr.bf16.gmra.mrb[0].mxu0 %v4966
      %v5035 = vpop.f32.mrb[0].mxu0
      %v5036 = vadd.f32 %v4951, %v5035
      %v5037 = vpop.f32.mrb[0].mxu0
      %v5038 = vpop.f32.mrb[0].mxu0
      %v5039 = vadd.f32 %v4951, %v5038
      %v5040 = vpop.f32.mrb[0].mxu0
      %5041 = vmatprep.mubr.bf16.mxu0 0
      %5042 = vmatmul.mubr.bf16.gmra.mrb[0].mxu0 %v4969
      %v5043 = vpop.f32.mrb[0].mxu0
      %v5044 = vadd.f32 %v4951, %v5043
      %v5045 = vpop.f32.mrb[0].mxu0
      %v5046 = vpop.f32.mrb[0].mxu0
      %v5047 = vadd.f32 %v4951, %v5046
      %v5048 = vpop.f32.mrb[0].mxu0
      %5049 = vmatprep.mubr.bf16.mxu0 0
      %5050 = vmatmul.mubr.bf16.gmra.mrb[0].mxu0 %v4972
      %v5051 = vpop.f32.mrb[0].mxu0
      %v5052 = vadd.f32 %v4951, %v5051
      %v5053 = vpop.f32.mrb[0].mxu0
      %v5054 = vpop.f32.mrb[0].mxu0
      %v5055 = vadd.f32 %v4951, %v5054
      %v5056 = vpop.f32.mrb[0].mxu0
      %5057 = vmatprep.mubr.bf16.mxu0 0
      %5058 = vmatmul.mubr.bf16.gmra.mrb[0].mxu0 %v4975
      %v5059 = vpop.f32.mrb[0].mxu0
      %v5060 = vadd.f32 %v4951, %v5059
      %v5061 = vpop.f32.mrb[0].mxu0
      %v5062 = vpop.f32.mrb[0].mxu0
      %v5063 = vadd.f32 %v4951, %v5062
      %v5064 = vpop.f32.mrb[0].mxu0
      %5065 = vmatprep.mubr.bf16.mxu0 0
      %5066 = vmatmul.mubr.bf16.gmra.mrb[0].mxu0 %v4978
      %v5067 = vpop.f32.mrb[0].mxu0
      %v5068 = vadd.f32 %v4951, %v5067
      %v5069 = vpop.f32.mrb[0].mxu0
      %v5070 = vpop.f32.mrb[0].mxu0
      %v5071 = vadd.f32 %v4951, %v5070
      %v5072 = vpop.f32.mrb[0].mxu0
      %5073 = vmatprep.mubr.bf16.mxu0 0
      %5074 = vmatmul.mubr.bf16.gmra.mrb[0].mxu0 %v4981
      %v5075 = vpop.f32.mrb[0].mxu0
      %v5076 = vadd.f32 %v4951, %v5075
      %v5077 = vpop.f32.mrb[0].mxu0
      %v5078 = vpop.f32.mrb[0].mxu0
      %v5079 = vadd.f32 %v4951, %v5078
      %v5080 = vpop.f32.mrb[0].mxu0
      %5081 = vmatprep.mubr.bf16.mxu0 0
      %5082 = vmatmul.mubr.bf16.gmra.mrb[0].mxu0 %v4984
      %v5083 = vpop.f32.mrb[0].mxu0
      %v5084 = vadd.f32 %v4951, %v5083
      %v5085 = vpop.f32.mrb[0].mxu0
      %v5086 = vpop.f32.mrb[0].mxu0
      %v5087 = vadd.f32 %v4951, %v5086
      %v5088 = vpop.f32.mrb[0].mxu0
      %5089 = vmatprep.mubr.bf16.mxu0 0
      %5090 = vmatmul.mubr.bf16.gmra.mrb[0].mxu0 %v4987
      %v5091 = vpop.f32.mrb[0].mxu0
      %v5092 = vadd.f32 %v4951, %v5091
      %v5093 = vpop.f32.mrb[0].mxu0
      %v5094 = vpop.f32.mrb[0].mxu0
      %v5095 = vadd.f32 %v4951, %v5094
      %v5096 = vpop.f32.mrb[0].mxu0
      %5097 = vmatprep.mubr.bf16.mxu0 0
      %5098 = vmatmul.mubr.bf16.gmra.mrb[0].mxu0 %v4990
      %v5099 = vpop.f32.mrb[0].mxu0
      %v5100 = vadd.f32 %v4951, %v5099
      %v5101 = vpop.f32.mrb[0].mxu0
      %v5102 = vpop.f32.mrb[0].mxu0
      %v5103 = vadd.f32 %v4951, %v5102
      %v5104 = vpop.f32.mrb[0].mxu0
      %5105 = vmatprep.mubr.bf16.mxu0 0
      %5106 = vmatmul.mubr.bf16.gmra.mrb[0].mxu0 %v4993
      %v5107 = vpop.f32.mrb[0].mxu0
      %v5108 = vadd.f32 %v4951, %v5107
      %v5109 = vpop.f32.mrb[0].mxu0
      %v5110 = vpop.f32.mrb[0].mxu0
      %v5111 = vadd.f32 %v4951, %v5110
      %v5112 = vpop.f32.mrb[0].mxu0
      %5113 = vmatprep.mubr.bf16.mxu0 0
      %5114 = vmatmul.mubr.bf16.gmra.mrb[0].mxu0 %v4996
      %v5115 = vpop.f32.mrb[0].mxu0
      %v5116 = vadd.f32 %v4951, %v5115
      %v5117 = vpop.f32.mrb[0].mxu0
      %v5118 = vpop.f32.mrb[0].mxu0
      %v5119 = vadd.f32 %v4951, %v5118
      %v5120 = vpop.f32.mrb[0].mxu0
      %5121 = vmatprep.mubr.bf16.mxu0 0
      %5122 = vmatmul.mubr.bf16.gmra.mrb[0].mxu0 %v4999
      %v5123 = vpop.f32.mrb[0].mxu0
      %v5124 = vadd.f32 %v4951, %v5123
      %v5125 = vpop.f32.mrb[0].mxu0
      %v5126 = vpop.f32.mrb[0].mxu0
      %v5127 = vadd.f32 %v4951, %v5126
      %v5128 = vpop.f32.mrb[0].mxu0
      %5129 = vdwg.mxu0
      %v5130 = vlaneseq
      %v5131 = vshrl.u32 %v5130, 7
      %v5132 = vsub.s32 0, %v5131
      %v5133 = vrot.slane %v473, %v5132
      %v5134 = vmul.f32 %v5133, %v5036
      %v5135 = vmul.f32 %v5133, %v5039
      %v5136 = vmul.f32 %v5133, %v5044
      %v5137 = vmul.f32 %v5133, %v5047
      %v5138 = vmul.f32 %v5133, %v5052
      %v5139 = vmul.f32 %v5133, %v5055
      %v5140 = vmul.f32 %v5133, %v5060
      %v5141 = vmul.f32 %v5133, %v5063
      %v5142 = vmul.f32 %v5133, %v5068
      %v5143 = vmul.f32 %v5133, %v5071
      %v5144 = vmul.f32 %v5133, %v5076
      %v5145 = vmul.f32 %v5133, %v5079
      %v5146 = vmul.f32 %v5133, %v5084
      %v5147 = vmul.f32 %v5133, %v5087
      %v5148 = vmul.f32 %v5133, %v5092
      %v5149 = vmul.f32 %v5133, %v5095
      %v5150 = vmul.f32 %v5133, %v5100
      %v5151 = vmul.f32 %v5133, %v5103
      %v5152 = vmul.f32 %v5133, %v5108
      %v5153 = vmul.f32 %v5133, %v5111
      %v5154 = vmul.f32 %v5133, %v5116
      %v5155 = vmul.f32 %v5133, %v5119
      %v5156 = vmul.f32 %v5133, %v5124
      %v5157 = vmul.f32 %v5133, %v5127
      %v5158 = vadd.f32 %v4064, %v5134
      %v5159 = vadd.f32 %v4065, %v5135
      %v5160 = vadd.f32 %v4066, %v5136
      %v5161 = vadd.f32 %v4067, %v5137
      %v5162 = vadd.f32 %v4068, %v5138
      %v5163 = vadd.f32 %v4069, %v5139
      %v5164 = vadd.f32 %v4070, %v5140
      %v5165 = vadd.f32 %v4071, %v5141
      %v5166 = vadd.f32 %v4072, %v5142
      %v5167 = vadd.f32 %v4073, %v5143
      %v5168 = vadd.f32 %v4074, %v5144
      %v5169 = vadd.f32 %v4075, %v5145
      %v5170 = vadd.f32 %v4076, %v5146
      %v5171 = vadd.f32 %v4077, %v5147
      %v5172 = vadd.f32 %v4078, %v5148
      %v5173 = vadd.f32 %v4079, %v5149
      %v5174 = vadd.f32 %v4080, %v5150
      %v5175 = vadd.f32 %v4081, %v5151
      %v5176 = vadd.f32 %v4082, %v5152
      %v5177 = vadd.f32 %v4083, %v5153
      %v5178 = vadd.f32 %v4084, %v5154
      %v5179 = vadd.f32 %v4085, %v5155
      %v5180 = vadd.f32 %v4086, %v5156
      %v5181 = vadd.f32 %v4087, %v5157
      %5182 = vst.msk [vmem:[%s469] sm:$0xff] %vm546, %v5158
      %5183 = vst.msk [vmem:[%s469 + $0x8] sm:$0xff] %vm546, %v5159
      %5184 = vst.msk [vmem:[%s469 + $0x10] sm:$0xff] %vm546, %v5160
      %5185 = vst.msk [vmem:[%s469 + $0x18] sm:$0xff] %vm546, %v5161
      %5186 = vst.msk [vmem:[%s469 + $0x20] sm:$0xff] %vm546, %v5162
      %5187 = vst.msk [vmem:[%s469 + $0x28] sm:$0xff] %vm546, %v5163
      %5188 = vst.msk [vmem:[%s469 + $0x30] sm:$0xff] %vm546, %v5164
      %5189 = vst.msk [vmem:[%s469 + $0x38] sm:$0xff] %vm546, %v5165
      %5190 = vst.msk [vmem:[%s469 + $0x40] sm:$0xff] %vm546, %v5166
      %5191 = vst.msk [vmem:[%s469 + $0x48] sm:$0xff] %vm546, %v5167
      %5192 = vst.msk [vmem:[%s469 + $0x50] sm:$0xff] %vm546, %v5168
      %5193 = vst.msk [vmem:[%s469 + $0x58] sm:$0xff] %vm546, %v5169
      %5194 = vst.msk [vmem:[%s469 + $0x60] sm:$0xff] %vm546, %v5170
      %5195 = vst.msk [vmem:[%s469 + $0x68] sm:$0xff] %vm546, %v5171
      %5196 = vst.msk [vmem:[%s469 + $0x70] sm:$0xff] %vm546, %v5172
      %5197 = vst.msk [vmem:[%s469 + $0x78] sm:$0xff] %vm546, %v5173
      %5198 = vst.msk [vmem:[%s469 + $0x80] sm:$0xff] %vm546, %v5174
      %5199 = vst.msk [vmem:[%s469 + $0x88] sm:$0xff] %vm546, %v5175
      %5200 = vst.msk [vmem:[%s469 + $0x90] sm:$0xff] %vm546, %v5176
      %5201 = vst.msk [vmem:[%s469 + $0x98] sm:$0xff] %vm546, %v5177
      %5202 = vst.msk [vmem:[%s469 + $0xa0] sm:$0xff] %vm546, %v5178
      %5203 = vst.msk [vmem:[%s469 + $0xa8] sm:$0xff] %vm546, %v5179
      %5204 = vst.msk [vmem:[%s469 + $0xb0] sm:$0xff] %vm546, %v5180
      %5205 = vst.msk [vmem:[%s469 + $0xb8] sm:$0xff] %vm546, %v5181
      %s5206 = smul.u32 24, %s25
      %p5207 = scmp.lt.s32.totalorder %s5206, 47
      %s5208 = scalar_select %p5207, %s5206, 47
      %s5209 = smul.addr %s5208, 8
      %s5210 = scalar_lea.vmem %s14, %s5209
      // Predicated region
      $region77: #{tpu_custom_call.1} parent=75 // pred_check
        %p5211 = pneg %p342
      $region78: #{tpu_custom_call.1} parent=75 // pred_check_branch
        %5213 = sbr.rel (%p5211) target = $region80
      $region79: #{tpu_custom_call.1} parent=75 // pred_region
        %s5214 = smul.u32 24, %s25
      $region80: #{tpu_custom_call.1} parent=75 // pred_fallthru
        _
    $region76: #{tpu_custom_call.1} parent=5 // pred_fallthru
      _
    %p5215 = scmp.le.s32.totalorder 2, %s20
    // Predicated region
    $region81: #{tpu_custom_call.1} parent=5 // pred_check
      %p5216 = pneg %p5215
    $region82: #{tpu_custom_call.1} parent=5 // pred_check_branch
      %5218 = sbr.rel (%p5216) target = $region84
    $region83: #{tpu_custom_call.1} parent=5 // pred_region
      %s5219 = ssub.s32 %s20, 2
      // Predicated region
      $region85: #{tpu_custom_call.1} parent=83 // pred_check
        %p5220 = pneg %p348
      $region86: #{tpu_custom_call.1} parent=83 // pred_check_branch
        %5222 = sbr.rel (%p5220) target = $region88
      $region87: #{tpu_custom_call.1} parent=83 // pred_region
        %s5223 = smul.u32 24, %s26
        %p5224 = scmp.lt.s32.totalorder %s5223, 47
        %s5225 = scalar_select %p5224, %s5223, 47
        %s5226 = smul.addr %s5225, 8
        %s5227 = scalar_lea.vmem %s14, %s5226
      $region88: #{tpu_custom_call.1} parent=83 // pred_fallthru
        _
    $region84: #{tpu_custom_call.1} parent=5 // pred_fallthru
      _
  $region6: #{tpu_custom_call.1} parent=0 // loop_footer
    %s24 = sadd.s32 1, %s20
  $region7: #{tpu_custom_call.1} parent=0 // loop_footer_branch
    %19 = sbr.rel target = $region3
  $region8: #{tpu_custom_call.1} parent=0 // loop_exit
    _

</llo_original>
